<compile_context>
chip_gen: v6e
topology: v6e:2x2x1
jax: 0.10.0
libtpu: 0.0.40
codegen_flags: <defaults>
</compile_context>

<pallas_src>
import functools

import jax
import jax.numpy as jnp
import numpy as np
from jax.experimental import pallas as pl
from jax.experimental.pallas import tpu as pltpu

# Architecture constants implied by the PyTorch module (fc(2592) => 84x84, batch=1).
_K1, _S1, _C1OUT = 8, 4, 16          # conv1: 8x8, stride 4, 16 filters
_K2, _S2, _C2OUT = 4, 2, 32          # conv2: 4x4, stride 2, 32 filters
_H = _W = 84
_G1 = (_H - _K1) // _S1 + 1          # 20 : conv1 output grid
_P1 = _G1 // 2                       # 10 : per-parity grid (9x9 zero-padded to 10x10)
_NPOS = _P1 * _P1                    # 100: conv2 spatial positions per padded grid
_G2 = (_G1 - _K2) // _S2 + 1         # 9  : conv2 output grid
_FC_IN, _FC_OUT = 2592, 256
_FLAT = _C2OUT * _NPOS               # 3200: flattened (c, 10x10) fc input
_LANE = 128                          # lane width / parity-slab stride / padded out width


# ----------------------------------------------------------------------------
# Fused kernel: conv1 + conv2 + flatten + fc + output.
# ----------------------------------------------------------------------------
def _dqn_kernel(p1_ref, w1_ref, b1_ref, w2_ref, b2_ref,
                fcw_hbm_ref, fcb_ref, ow_ref, ob_ref,
                o_ref, fcw_vmem, h2f_ref, fcw_sem):
    # p1_ref     : (64*Cin, 512)  bf16  im2col, 4 parity blocks of 128 lanes each
    # w1_ref     : (16, 64*Cin)   bf16  conv1 weights, feature order (kh, kw, cin)
    # b1_ref     : (16, 1)        f32
    # w2_ref     : (32, 256)      bf16  conv2 weights concatenated along K
    # b2_ref     : (32, 1)        f32
    # fcw_hbm_ref: (3200, 256)    bf16  fc weights, left in HBM (pl.ANY)
    # fcb_ref    : (1, 256)       f32
    # ow_ref     : (256, 128)     bf16  output weights zero-padded to 128 lanes
    # ob_ref     : (1, 128)       f32
    # o_ref      : (1, 128)       f32
    # fcw_vmem   : (3200, 256)    bf16  scratch, target of the overlapped DMA
    # h2f_ref    : (1, 3200)      f32   scratch, flattened conv2 activations
    # fcw_sem    : DMA semaphore

    # Kick off the big fc-weight DMA first so it overlaps the whole conv stage.
    fcw_copy = pltpu.make_async_copy(fcw_hbm_ref, fcw_vmem, fcw_sem)
    fcw_copy.start()

    # ---- conv1: one matmul over all four 128-lane parity blocks ------------
    h1 = jnp.dot(w1_ref[...], p1_ref[...],
                 preferred_element_type=jnp.float32)                 # (16, 512)
    h1 = jnp.maximum(h1 + b1_ref[...], 0.0).astype(jnp.bfloat16)

    # ---- conv2: one long-K matmul -------------------------------------------
    # RHS row block ((2p+q)*4 + 2a+b) holds parity (p,q) activations shifted
    # left by 10*a+b lanes; shifts (<=11) stay inside the 128-lane slab, and
    # any over-read of the pad lanes only lands on output positions whose fc
    # weights are zero (9x9 -> 10x10 padding), so no masking is needed.
    rows = []
    for p in range(2):
        for q in range(2):
            base = (2 * p + q) * _LANE
            for a in range(2):
                for b in range(2):
                    s = _P1 * a + b
                    rows.append(h1[:, base + s: base + s + _NPOS])   # (16, 100)
    rhs = jnp.concatenate(rows, axis=0)                              # (256, 100)
    h2 = jnp.dot(w2_ref[...], rhs, preferred_element_type=jnp.float32)
    h2 = jnp.maximum(h2 + b2_ref[...], 0.0)                          # (32, 100) f32

    # ---- flatten (torch CHW order on the padded 10x10 grid) -----------------
    for c in range(_C2OUT):
        h2f_ref[:, pl.ds(c * _NPOS, _NPOS)] = h2[c:c + 1, :]

    # ---- fc: single (1,3200)@(3200,256) matmul on the freshly DMA'd weights -
    fcw_copy.wait()
    h3 = jnp.dot(h2f_ref[...].astype(jnp.bfloat16), fcw_vmem[...],
                 preferred_element_type=jnp.float32)                 # (1, 256)
    h3 = jnp.maximum(h3 + fcb_ref[...], 0.0).astype(jnp.bfloat16)

    # ---- output layer (lane-dense, zero-padded to 128) ----------------------
    o_ref[...] = jnp.dot(h3, ow_ref[...],
                         preferred_element_type=jnp.float32) + ob_ref[...]


def _fused_forward(p1, prep):
    vmem = functools.partial(pl.BlockSpec, memory_space=pltpu.MemorySpace.VMEM)
    return pl.pallas_call(
        _dqn_kernel,
        out_shape=jax.ShapeDtypeStruct((1, _LANE), jnp.float32),
        in_specs=[vmem(), vmem(), vmem(), vmem(), vmem(),
                  pl.BlockSpec(memory_space=pl.ANY),    # fcw: stays in HBM, DMA'd in-kernel
                  vmem(), vmem(), vmem()],
        out_specs=vmem(),
        scratch_shapes=[pltpu.VMEM((_FLAT, _FC_OUT), jnp.bfloat16),
                        pltpu.VMEM((1, _FLAT), jnp.float32),
                        pltpu.SemaphoreType.DMA],
    )(p1, prep["w1"], prep["b1"], prep["w2"], prep["b2"],
      prep["fcw"], prep["fcb"], prep["ow"], prep["ob"])


# ----------------------------------------------------------------------------
# Wrapper-side im2col for conv1: bf16 cast first, static strided slices only,
# stacked so the (features, positions) layout needs no transpose.
# ----------------------------------------------------------------------------
def _conv1_patches(x_chw):
    """(Cin, 84, 84) f32 -> (64*Cin, 512) bf16: 4 parity blocks, 128-lane aligned."""
    cin = x_chw.shape[0]
    x = x_chw.astype(jnp.bfloat16)                                # cast before relayout
    span = _S1 * (_G1 - 1) + 1                                    # 77
    slabs = [x[:, kh:kh + span:_S1, kw:kw + span:_S1]             # (Cin, 20, 20)
             for kh in range(_K1) for kw in range(_K1)]
    pat = jnp.stack(slabs, axis=0)                                # (64, Cin, 20, 20)
    feat = _K1 * _K1 * cin
    blocks = []
    for p in range(2):
        for q in range(2):
            blk = pat[:, :, p::2, q::2].reshape(feat, _NPOS)      # (feat, 100)
            blocks.append(jnp.pad(blk, ((0, 0), (0, _LANE - _NPOS))))
    return jnp.concatenate(blocks, axis=-1)                       # (feat, 512)


def deep_q_net_forward(x_nchw, prep, *, output_shape):
    """x_nchw: (1, Cin, 84, 84) float32 -> (output_shape,) Q-values."""
    p1 = _conv1_patches(x_nchw[0])
    out = _fused_forward(p1, prep)
    return out[0, :output_shape]


# ----------------------------------------------------------------------------
# One-time weight preprocessing (hoisted out of the forward).  Accepts
# PyTorch-layout weights: conv (Cout, Cin, kH, kW), linear (out, in).
# ----------------------------------------------------------------------------
def prepare_params(params):
    f32, bf16 = jnp.float32, jnp.bfloat16
    cin = params["conv1_w"].shape[1]

    # conv1: feature order (kh, kw, cin) to match the im2col rows.
    w1 = params["conv1_w"].transpose(0, 2, 3, 1).reshape(_C1OUT, _K1 * _K1 * cin)

    # conv2: concatenate the 16 (kh,kw) taps along K in the same (parity, offset)
    # order the kernel stacks its RHS: K index = ((2p+q)*4 + 2a+b)*16 + c1.
    cols = []
    for p in range(2):
        for q in range(2):
            for a in range(2):
                for b in range(2):
                    cols.append(params["conv2_w"][:, :, 2 * a + p, 2 * b + q])
    w2 = jnp.concatenate(cols, axis=1)                            # (32, 256)

    # fc: fold torch.flatten's (c, oh, ow) order, zero-pad 9x9 -> 10x10 spatial
    # (masks the conv2 edge garbage), pre-flatten to (3200, 256).
    fc_w = params["fc_w"].T.reshape(_C2OUT, _G2, _G2, _FC_OUT)
    fcw = jnp.zeros((_C2OUT, _P1, _P1, _FC_OUT), f32)
    fcw = fcw.at[:, :_G2, :_G2, :].set(fc_w).reshape(_FLAT, _FC_OUT)

    n_actions = params["out_w"].shape[0]
    assert n_actions <= _LANE
    ow = jnp.zeros((_FC_OUT, _LANE), f32).at[:, :n_actions].set(params["out_w"].T)
    ob = jnp.zeros((1, _LANE), f32).at[0, :n_actions].set(params["out_b"])

    return dict(
        w1=w1.astype(bf16),
        b1=params["conv1_b"].reshape(_C1OUT, 1).astype(f32),
        w2=w2.astype(bf16),
        b2=params["conv2_b"].reshape(_C2OUT, 1).astype(f32),
        fcw=fcw.astype(bf16),
        fcb=params["fc_b"].reshape(1, _FC_OUT).astype(f32),
        ow=ow.astype(bf16),
        ob=ob.astype(f32),
    )


# ----------------------------------------------------------------------------
# Deterministic synthetic parameters (PyTorch layouts) and a pure-JAX reference.
# ----------------------------------------------------------------------------
def init_params(key, input_channels, output_shape):
    ks = jax.random.split(key, 8)

    def u(k, shape, fan_in):
        bound = 1.0 / np.sqrt(fan_in)
        return jax.random.uniform(k, shape, jnp.float32, -bound, bound)

    return {
        "conv1_w": u(ks[0], (_C1OUT, input_channels, _K1, _K1), input_channels * _K1 * _K1),
        "conv1_b": u(ks[1], (_C1OUT,), input_channels * _K1 * _K1),
        "conv2_w": u(ks[2], (_C2OUT, _C1OUT, _K2, _K2), _C1OUT * _K2 * _K2),
        "conv2_b": u(ks[3], (_C2OUT,), _C1OUT * _K2 * _K2),
        "fc_w":    u(ks[4], (_FC_OUT, _FC_IN), _FC_IN),
        "fc_b":    u(ks[5], (_FC_OUT,), _FC_IN),
        "out_w":   u(ks[6], (output_shape, _FC_OUT), _FC_OUT),
        "out_b":   u(ks[7], (output_shape,), _FC_OUT),
    }


def reference_forward(x_nchw, params):
    dn = ("NCHW", "OIHW", "NCHW")
    y = jax.lax.conv_general_dilated(x_nchw, params["conv1_w"], (_S1, _S1), "VALID",
                                     dimension_numbers=dn)
    y = jnp.maximum(y + params["conv1_b"][None, :, None, None], 0.0)
    y = jax.lax.conv_general_dilated(y, params["conv2_w"], (_S2, _S2), "VALID",
                                     dimension_numbers=dn)
    y = jnp.maximum(y + params["conv2_b"][None, :, None, None], 0.0)
    flat = y.reshape(-1)                                  # torch.flatten (batch=1)
    h = jnp.maximum(flat @ params["fc_w"].T + params["fc_b"], 0.0)
    return h @ params["out_w"].T + params["out_b"]


if __name__ == "__main__":
    input_channels = 4      # stacked Atari frames
    output_shape = 6        # number of actions
    key = jax.random.PRNGKey(0)
    k_params, k_x = jax.random.split(key)

    params = init_params(k_params, input_channels, output_shape)
    prep = prepare_params(params)                          # one-time, outside the forward
    x = jax.random.normal(k_x, (1, input_channels, _H, _W), jnp.float32)

    fwd = jax.jit(functools.partial(deep_q_net_forward, output_shape=output_shape))
    q = jax.block_until_ready(fwd(x, prep))
    assert q.shape == (output_shape,)

    q_ref = jax.block_until_ready(jax.jit(reference_forward)(x, params))
    np.testing.assert_allclose(np.asarray(q), np.asarray(q_ref), rtol=5e-2, atol=1e-2)
    print("KERNEL_OK")
</pallas_src>

<mosaic_0001>
module attributes {stable_mosaic.version = 11 : i64} {
  func.func @_dqn_kernel(%arg0: memref<256x512xbf16, #tpu.memory_space<vmem>>, %arg1: memref<16x256xbf16, #tpu.memory_space<vmem>>, %arg2: memref<16x1xf32, #tpu.memory_space<vmem>>, %arg3: memref<32x256xbf16, #tpu.memory_space<vmem>>, %arg4: memref<32x1xf32, #tpu.memory_space<vmem>>, %arg5: memref<3200x256xbf16, #tpu.memory_space<any>>, %arg6: memref<1x256xf32, #tpu.memory_space<vmem>>, %arg7: memref<256x128xbf16, #tpu.memory_space<vmem>>, %arg8: memref<1x128xf32, #tpu.memory_space<vmem>>, %arg9: memref<1x128xf32, #tpu.memory_space<vmem>>, %arg10: memref<3200x256xbf16, #tpu.memory_space<vmem>>, %arg11: memref<1x3200xf32, #tpu.memory_space<vmem>>, %arg12: memref<!tpu.dma_semaphore, #tpu.memory_space<semaphore_mem>>) attributes {dimension_semantics = [], scalar_prefetch = 0 : i64, scratch_operands = 3 : i64, tpu.core_type = #tpu.core_type<tc>} {
    tpu.enqueue_dma source(%arg5 : memref<3200x256xbf16, #tpu.memory_space<any>>) target(%arg10 : memref<3200x256xbf16, #tpu.memory_space<vmem>>) target_semaphore(%arg12 : memref<!tpu.dma_semaphore, #tpu.memory_space<semaphore_mem>>)
    %c0 = arith.constant 0 : index
    %c0_0 = arith.constant 0 : index
    %0 = vector.load %arg1[%c0, %c0_0] : memref<16x256xbf16, #tpu.memory_space<vmem>>, vector<16x256xbf16>
    %c0_1 = arith.constant 0 : index
    %c0_2 = arith.constant 0 : index
    %1 = vector.load %arg0[%c0_1, %c0_2] : memref<256x512xbf16, #tpu.memory_space<vmem>>, vector<256x512xbf16>
    %cst = arith.constant dense<0.000000e+00> : vector<16x512xf32>
    %2 = tpu.matmul %0, %1, %cst {dimension_numbers = #tpu.dot_dimension_numbers<[1], [0], [0], [1], [0, 0, 1, 1], [], []>} : vector<16x256xbf16>, vector<256x512xbf16>, vector<16x512xf32> -> vector<16x512xf32>
    %c0_3 = arith.constant 0 : index
    %c0_4 = arith.constant 0 : index
    %3 = vector.load %arg2[%c0_3, %c0_4] : memref<16x1xf32, #tpu.memory_space<vmem>>, vector<16x1xf32>
    %4 = vector.broadcast %3 : vector<16x1xf32> to vector<16x512xf32>
    %5 = arith.addf %2, %4 : vector<16x512xf32>
    %cst_5 = arith.constant 0.000000e+00 : f32
    %6 = vector.broadcast %cst_5 : f32 to vector<16x512xf32>
    %7 = arith.maximumf %5, %6 : vector<16x512xf32>
    %8 = arith.truncf %7 : vector<16x512xf32> to vector<16x512xbf16>
    %9 = vector.extract_strided_slice %8 {offsets = [0, 0], sizes = [16, 100], strides = [1, 1]} : vector<16x512xbf16> to vector<16x100xbf16>
    %10 = vector.extract_strided_slice %8 {offsets = [0, 1], sizes = [16, 100], strides = [1, 1]} : vector<16x512xbf16> to vector<16x100xbf16>
    %11 = vector.extract_strided_slice %8 {offsets = [0, 10], sizes = [16, 100], strides = [1, 1]} : vector<16x512xbf16> to vector<16x100xbf16>
    %12 = vector.extract_strided_slice %8 {offsets = [0, 11], sizes = [16, 100], strides = [1, 1]} : vector<16x512xbf16> to vector<16x100xbf16>
    %13 = vector.extract_strided_slice %8 {offsets = [0, 128], sizes = [16, 100], strides = [1, 1]} : vector<16x512xbf16> to vector<16x100xbf16>
    %14 = vector.extract_strided_slice %8 {offsets = [0, 129], sizes = [16, 100], strides = [1, 1]} : vector<16x512xbf16> to vector<16x100xbf16>
    %15 = vector.extract_strided_slice %8 {offsets = [0, 138], sizes = [16, 100], strides = [1, 1]} : vector<16x512xbf16> to vector<16x100xbf16>
    %16 = vector.extract_strided_slice %8 {offsets = [0, 139], sizes = [16, 100], strides = [1, 1]} : vector<16x512xbf16> to vector<16x100xbf16>
    %17 = vector.extract_strided_slice %8 {offsets = [0, 256], sizes = [16, 100], strides = [1, 1]} : vector<16x512xbf16> to vector<16x100xbf16>
    %18 = vector.extract_strided_slice %8 {offsets = [0, 257], sizes = [16, 100], strides = [1, 1]} : vector<16x512xbf16> to vector<16x100xbf16>
    %19 = vector.extract_strided_slice %8 {offsets = [0, 266], sizes = [16, 100], strides = [1, 1]} : vector<16x512xbf16> to vector<16x100xbf16>
    %20 = vector.extract_strided_slice %8 {offsets = [0, 267], sizes = [16, 100], strides = [1, 1]} : vector<16x512xbf16> to vector<16x100xbf16>
    %21 = vector.extract_strided_slice %8 {offsets = [0, 384], sizes = [16, 100], strides = [1, 1]} : vector<16x512xbf16> to vector<16x100xbf16>
    %22 = vector.extract_strided_slice %8 {offsets = [0, 385], sizes = [16, 100], strides = [1, 1]} : vector<16x512xbf16> to vector<16x100xbf16>
    %23 = vector.extract_strided_slice %8 {offsets = [0, 394], sizes = [16, 100], strides = [1, 1]} : vector<16x512xbf16> to vector<16x100xbf16>
    %24 = vector.extract_strided_slice %8 {offsets = [0, 395], sizes = [16, 100], strides = [1, 1]} : vector<16x512xbf16> to vector<16x100xbf16>
    %25 = tpu.concatenate %9, %10, %11, %12, %13, %14, %15, %16, %17, %18, %19, %20, %21, %22, %23, %24 in 0 : vector<16x100xbf16>, vector<16x100xbf16>, vector<16x100xbf16>, vector<16x100xbf16>, vector<16x100xbf16>, vector<16x100xbf16>, vector<16x100xbf16>, vector<16x100xbf16>, vector<16x100xbf16>, vector<16x100xbf16>, vector<16x100xbf16>, vector<16x100xbf16>, vector<16x100xbf16>, vector<16x100xbf16>, vector<16x100xbf16>, vector<16x100xbf16> -> vector<256x100xbf16>
    %c0_6 = arith.constant 0 : index
    %c0_7 = arith.constant 0 : index
    %26 = vector.load %arg3[%c0_6, %c0_7] : memref<32x256xbf16, #tpu.memory_space<vmem>>, vector<32x256xbf16>
    %cst_8 = arith.constant dense<0.000000e+00> : vector<32x100xf32>
    %27 = tpu.matmul %26, %25, %cst_8 {dimension_numbers = #tpu.dot_dimension_numbers<[1], [0], [0], [1], [0, 0, 1, 1], [], []>} : vector<32x256xbf16>, vector<256x100xbf16>, vector<32x100xf32> -> vector<32x100xf32>
    %c0_9 = arith.constant 0 : index
    %c0_10 = arith.constant 0 : index
    %28 = vector.load %arg4[%c0_9, %c0_10] : memref<32x1xf32, #tpu.memory_space<vmem>>, vector<32x1xf32>
    %29 = vector.broadcast %28 : vector<32x1xf32> to vector<32x100xf32>
    %30 = arith.addf %27, %29 : vector<32x100xf32>
    %cst_11 = arith.constant 0.000000e+00 : f32
    %31 = vector.broadcast %cst_11 : f32 to vector<32x100xf32>
    %32 = arith.maximumf %30, %31 : vector<32x100xf32>
    %33 = vector.extract_strided_slice %32 {offsets = [0, 0], sizes = [1, 100], strides = [1, 1]} : vector<32x100xf32> to vector<1x100xf32>
    %c0_12 = arith.constant 0 : index
    %c0_13 = arith.constant 0 : index
    %34 = vector.load %arg11[%c0_12, %c0_13] : memref<1x3200xf32, #tpu.memory_space<vmem>>, vector<1x100xf32>
    tpu.vector_store %arg11[%c0_12, %c0_13], %33 {strides = array<i32>} : memref<1x3200xf32, #tpu.memory_space<vmem>>, vector<1x100xf32>,
    %35 = vector.extract_strided_slice %32 {offsets = [1, 0], sizes = [1, 100], strides = [1, 1]} : vector<32x100xf32> to vector<1x100xf32>
    %c0_14 = arith.constant 0 : index
    %c100 = arith.constant 100 : index
    %36 = vector.load %arg11[%c0_14, %c100] : memref<1x3200xf32, #tpu.memory_space<vmem>>, vector<1x100xf32>
    tpu.vector_store %arg11[%c0_14, %c100], %35 {strides = array<i32>} : memref<1x3200xf32, #tpu.memory_space<vmem>>, vector<1x100xf32>,
    %37 = vector.extract_strided_slice %32 {offsets = [2, 0], sizes = [1, 100], strides = [1, 1]} : vector<32x100xf32> to vector<1x100xf32>
    %c0_15 = arith.constant 0 : index
    %c200 = arith.constant 200 : index
    %38 = vector.load %arg11[%c0_15, %c200] : memref<1x3200xf32, #tpu.memory_space<vmem>>, vector<1x100xf32>
    tpu.vector_store %arg11[%c0_15, %c200], %37 {strides = array<i32>} : memref<1x3200xf32, #tpu.memory_space<vmem>>, vector<1x100xf32>,
    %39 = vector.extract_strided_slice %32 {offsets = [3, 0], sizes = [1, 100], strides = [1, 1]} : vector<32x100xf32> to vector<1x100xf32>
    %c0_16 = arith.constant 0 : index
    %c300 = arith.constant 300 : index
    %40 = vector.load %arg11[%c0_16, %c300] : memref<1x3200xf32, #tpu.memory_space<vmem>>, vector<1x100xf32>
    tpu.vector_store %arg11[%c0_16, %c300], %39 {strides = array<i32>} : memref<1x3200xf32, #tpu.memory_space<vmem>>, vector<1x100xf32>,
    %41 = vector.extract_strided_slice %32 {offsets = [4, 0], sizes = [1, 100], strides = [1, 1]} : vector<32x100xf32> to vector<1x100xf32>
    %c0_17 = arith.constant 0 : index
    %c400 = arith.constant 400 : index
    %42 = vector.load %arg11[%c0_17, %c400] : memref<1x3200xf32, #tpu.memory_space<vmem>>, vector<1x100xf32>
    tpu.vector_store %arg11[%c0_17, %c400], %41 {strides = array<i32>} : memref<1x3200xf32, #tpu.memory_space<vmem>>, vector<1x100xf32>,
    %43 = vector.extract_strided_slice %32 {offsets = [5, 0], sizes = [1, 100], strides = [1, 1]} : vector<32x100xf32> to vector<1x100xf32>
    %c0_18 = arith.constant 0 : index
    %c500 = arith.constant 500 : index
    %44 = vector.load %arg11[%c0_18, %c500] : memref<1x3200xf32, #tpu.memory_space<vmem>>, vector<1x100xf32>
    tpu.vector_store %arg11[%c0_18, %c500], %43 {strides = array<i32>} : memref<1x3200xf32, #tpu.memory_space<vmem>>, vector<1x100xf32>,
    %45 = vector.extract_strided_slice %32 {offsets = [6, 0], sizes = [1, 100], strides = [1, 1]} : vector<32x100xf32> to vector<1x100xf32>
    %c0_19 = arith.constant 0 : index
    %c600 = arith.constant 600 : index
    %46 = vector.load %arg11[%c0_19, %c600] : memref<1x3200xf32, #tpu.memory_space<vmem>>, vector<1x100xf32>
    tpu.vector_store %arg11[%c0_19, %c600], %45 {strides = array<i32>} : memref<1x3200xf32, #tpu.memory_space<vmem>>, vector<1x100xf32>,
    %47 = vector.extract_strided_slice %32 {offsets = [7, 0], sizes = [1, 100], strides = [1, 1]} : vector<32x100xf32> to vector<1x100xf32>
    %c0_20 = arith.constant 0 : index
    %c700 = arith.constant 700 : index
    %48 = vector.load %arg11[%c0_20, %c700] : memref<1x3200xf32, #tpu.memory_space<vmem>>, vector<1x100xf32>
    tpu.vector_store %arg11[%c0_20, %c700], %47 {strides = array<i32>} : memref<1x3200xf32, #tpu.memory_space<vmem>>, vector<1x100xf32>,
    %49 = vector.extract_strided_slice %32 {offsets = [8, 0], sizes = [1, 100], strides = [1, 1]} : vector<32x100xf32> to vector<1x100xf32>
    %c0_21 = arith.constant 0 : index
    %c800 = arith.constant 800 : index
    %50 = vector.load %arg11[%c0_21, %c800] : memref<1x3200xf32, #tpu.memory_space<vmem>>, vector<1x100xf32>
    tpu.vector_store %arg11[%c0_21, %c800], %49 {strides = array<i32>} : memref<1x3200xf32, #tpu.memory_space<vmem>>, vector<1x100xf32>,
    %51 = vector.extract_strided_slice %32 {offsets = [9, 0], sizes = [1, 100], strides = [1, 1]} : vector<32x100xf32> to vector<1x100xf32>
    %c0_22 = arith.constant 0 : index
    %c900 = arith.constant 900 : index
    %52 = vector.load %arg11[%c0_22, %c900] : memref<1x3200xf32, #tpu.memory_space<vmem>>, vector<1x100xf32>
    tpu.vector_store %arg11[%c0_22, %c900], %51 {strides = array<i32>} : memref<1x3200xf32, #tpu.memory_space<vmem>>, vector<1x100xf32>,
    %53 = vector.extract_strided_slice %32 {offsets = [10, 0], sizes = [1, 100], strides = [1, 1]} : vector<32x100xf32> to vector<1x100xf32>
    %c0_23 = arith.constant 0 : index
    %c1000 = arith.constant 1000 : index
    %54 = vector.load %arg11[%c0_23, %c1000] : memref<1x3200xf32, #tpu.memory_space<vmem>>, vector<1x100xf32>
    tpu.vector_store %arg11[%c0_23, %c1000], %53 {strides = array<i32>} : memref<1x3200xf32, #tpu.memory_space<vmem>>, vector<1x100xf32>,
    %55 = vector.extract_strided_slice %32 {offsets = [11, 0], sizes = [1, 100], strides = [1, 1]} : vector<32x100xf32> to vector<1x100xf32>
    %c0_24 = arith.constant 0 : index
    %c1100 = arith.constant 1100 : index
    %56 = vector.load %arg11[%c0_24, %c1100] : memref<1x3200xf32, #tpu.memory_space<vmem>>, vector<1x100xf32>
    tpu.vector_store %arg11[%c0_24, %c1100], %55 {strides = array<i32>} : memref<1x3200xf32, #tpu.memory_space<vmem>>, vector<1x100xf32>,
    %57 = vector.extract_strided_slice %32 {offsets = [12, 0], sizes = [1, 100], strides = [1, 1]} : vector<32x100xf32> to vector<1x100xf32>
    %c0_25 = arith.constant 0 : index
    %c1200 = arith.constant 1200 : index
    %58 = vector.load %arg11[%c0_25, %c1200] : memref<1x3200xf32, #tpu.memory_space<vmem>>, vector<1x100xf32>
    tpu.vector_store %arg11[%c0_25, %c1200], %57 {strides = array<i32>} : memref<1x3200xf32, #tpu.memory_space<vmem>>, vector<1x100xf32>,
    %59 = vector.extract_strided_slice %32 {offsets = [13, 0], sizes = [1, 100], strides = [1, 1]} : vector<32x100xf32> to vector<1x100xf32>
    %c0_26 = arith.constant 0 : index
    %c1300 = arith.constant 1300 : index
    %60 = vector.load %arg11[%c0_26, %c1300] : memref<1x3200xf32, #tpu.memory_space<vmem>>, vector<1x100xf32>
    tpu.vector_store %arg11[%c0_26, %c1300], %59 {strides = array<i32>} : memref<1x3200xf32, #tpu.memory_space<vmem>>, vector<1x100xf32>,
    %61 = vector.extract_strided_slice %32 {offsets = [14, 0], sizes = [1, 100], strides = [1, 1]} : vector<32x100xf32> to vector<1x100xf32>
    %c0_27 = arith.constant 0 : index
    %c1400 = arith.constant 1400 : index
    %62 = vector.load %arg11[%c0_27, %c1400] : memref<1x3200xf32, #tpu.memory_space<vmem>>, vector<1x100xf32>
    tpu.vector_store %arg11[%c0_27, %c1400], %61 {strides = array<i32>} : memref<1x3200xf32, #tpu.memory_space<vmem>>, vector<1x100xf32>,
    %63 = vector.extract_strided_slice %32 {offsets = [15, 0], sizes = [1, 100], strides = [1, 1]} : vector<32x100xf32> to vector<1x100xf32>
    %c0_28 = arith.constant 0 : index
    %c1500 = arith.constant 1500 : index
    %64 = vector.load %arg11[%c0_28, %c1500] : memref<1x3200xf32, #tpu.memory_space<vmem>>, vector<1x100xf32>
    tpu.vector_store %arg11[%c0_28, %c1500], %63 {strides = array<i32>} : memref<1x3200xf32, #tpu.memory_space<vmem>>, vector<1x100xf32>,
    %65 = vector.extract_strided_slice %32 {offsets = [16, 0], sizes = [1, 100], strides = [1, 1]} : vector<32x100xf32> to vector<1x100xf32>
    %c0_29 = arith.constant 0 : index
    %c1600 = arith.constant 1600 : index
    %66 = vector.load %arg11[%c0_29, %c1600] : memref<1x3200xf32, #tpu.memory_space<vmem>>, vector<1x100xf32>
    tpu.vector_store %arg11[%c0_29, %c1600], %65 {strides = array<i32>} : memref<1x3200xf32, #tpu.memory_space<vmem>>, vector<1x100xf32>,
    %67 = vector.extract_strided_slice %32 {offsets = [17, 0], sizes = [1, 100], strides = [1, 1]} : vector<32x100xf32> to vector<1x100xf32>
    %c0_30 = arith.constant 0 : index
    %c1700 = arith.constant 1700 : index
    %68 = vector.load %arg11[%c0_30, %c1700] : memref<1x3200xf32, #tpu.memory_space<vmem>>, vector<1x100xf32>
    tpu.vector_store %arg11[%c0_30, %c1700], %67 {strides = array<i32>} : memref<1x3200xf32, #tpu.memory_space<vmem>>, vector<1x100xf32>,
    %69 = vector.extract_strided_slice %32 {offsets = [18, 0], sizes = [1, 100], strides = [1, 1]} : vector<32x100xf32> to vector<1x100xf32>
    %c0_31 = arith.constant 0 : index
    %c1800 = arith.constant 1800 : index
    %70 = vector.load %arg11[%c0_31, %c1800] : memref<1x3200xf32, #tpu.memory_space<vmem>>, vector<1x100xf32>
    tpu.vector_store %arg11[%c0_31, %c1800], %69 {strides = array<i32>} : memref<1x3200xf32, #tpu.memory_space<vmem>>, vector<1x100xf32>,
    %71 = vector.extract_strided_slice %32 {offsets = [19, 0], sizes = [1, 100], strides = [1, 1]} : vector<32x100xf32> to vector<1x100xf32>
    %c0_32 = arith.constant 0 : index
    %c1900 = arith.constant 1900 : index
    %72 = vector.load %arg11[%c0_32, %c1900] : memref<1x3200xf32, #tpu.memory_space<vmem>>, vector<1x100xf32>
    tpu.vector_store %arg11[%c0_32, %c1900], %71 {strides = array<i32>} : memref<1x3200xf32, #tpu.memory_space<vmem>>, vector<1x100xf32>,
    %73 = vector.extract_strided_slice %32 {offsets = [20, 0], sizes = [1, 100], strides = [1, 1]} : vector<32x100xf32> to vector<1x100xf32>
    %c0_33 = arith.constant 0 : index
    %c2000 = arith.constant 2000 : index
    %74 = vector.load %arg11[%c0_33, %c2000] : memref<1x3200xf32, #tpu.memory_space<vmem>>, vector<1x100xf32>
    tpu.vector_store %arg11[%c0_33, %c2000], %73 {strides = array<i32>} : memref<1x3200xf32, #tpu.memory_space<vmem>>, vector<1x100xf32>,
    %75 = vector.extract_strided_slice %32 {offsets = [21, 0], sizes = [1, 100], strides = [1, 1]} : vector<32x100xf32> to vector<1x100xf32>
    %c0_34 = arith.constant 0 : index
    %c2100 = arith.constant 2100 : index
    %76 = vector.load %arg11[%c0_34, %c2100] : memref<1x3200xf32, #tpu.memory_space<vmem>>, vector<1x100xf32>
    tpu.vector_store %arg11[%c0_34, %c2100], %75 {strides = array<i32>} : memref<1x3200xf32, #tpu.memory_space<vmem>>, vector<1x100xf32>,
    %77 = vector.extract_strided_slice %32 {offsets = [22, 0], sizes = [1, 100], strides = [1, 1]} : vector<32x100xf32> to vector<1x100xf32>
    %c0_35 = arith.constant 0 : index
    %c2200 = arith.constant 2200 : index
    %78 = vector.load %arg11[%c0_35, %c2200] : memref<1x3200xf32, #tpu.memory_space<vmem>>, vector<1x100xf32>
    tpu.vector_store %arg11[%c0_35, %c2200], %77 {strides = array<i32>} : memref<1x3200xf32, #tpu.memory_space<vmem>>, vector<1x100xf32>,
    %79 = vector.extract_strided_slice %32 {offsets = [23, 0], sizes = [1, 100], strides = [1, 1]} : vector<32x100xf32> to vector<1x100xf32>
    %c0_36 = arith.constant 0 : index
    %c2300 = arith.constant 2300 : index
    %80 = vector.load %arg11[%c0_36, %c2300] : memref<1x3200xf32, #tpu.memory_space<vmem>>, vector<1x100xf32>
    tpu.vector_store %arg11[%c0_36, %c2300], %79 {strides = array<i32>} : memref<1x3200xf32, #tpu.memory_space<vmem>>, vector<1x100xf32>,
    %81 = vector.extract_strided_slice %32 {offsets = [24, 0], sizes = [1, 100], strides = [1, 1]} : vector<32x100xf32> to vector<1x100xf32>
    %c0_37 = arith.constant 0 : index
    %c2400 = arith.constant 2400 : index
    %82 = vector.load %arg11[%c0_37, %c2400] : memref<1x3200xf32, #tpu.memory_space<vmem>>, vector<1x100xf32>
    tpu.vector_store %arg11[%c0_37, %c2400], %81 {strides = array<i32>} : memref<1x3200xf32, #tpu.memory_space<vmem>>, vector<1x100xf32>,
    %83 = vector.extract_strided_slice %32 {offsets = [25, 0], sizes = [1, 100], strides = [1, 1]} : vector<32x100xf32> to vector<1x100xf32>
    %c0_38 = arith.constant 0 : index
    %c2500 = arith.constant 2500 : index
    %84 = vector.load %arg11[%c0_38, %c2500] : memref<1x3200xf32, #tpu.memory_space<vmem>>, vector<1x100xf32>
    tpu.vector_store %arg11[%c0_38, %c2500], %83 {strides = array<i32>} : memref<1x3200xf32, #tpu.memory_space<vmem>>, vector<1x100xf32>,
    %85 = vector.extract_strided_slice %32 {offsets = [26, 0], sizes = [1, 100], strides = [1, 1]} : vector<32x100xf32> to vector<1x100xf32>
    %c0_39 = arith.constant 0 : index
    %c2600 = arith.constant 2600 : index
    %86 = vector.load %arg11[%c0_39, %c2600] : memref<1x3200xf32, #tpu.memory_space<vmem>>, vector<1x100xf32>
    tpu.vector_store %arg11[%c0_39, %c2600], %85 {strides = array<i32>} : memref<1x3200xf32, #tpu.memory_space<vmem>>, vector<1x100xf32>,
    %87 = vector.extract_strided_slice %32 {offsets = [27, 0], sizes = [1, 100], strides = [1, 1]} : vector<32x100xf32> to vector<1x100xf32>
    %c0_40 = arith.constant 0 : index
    %c2700 = arith.constant 2700 : index
    %88 = vector.load %arg11[%c0_40, %c2700] : memref<1x3200xf32, #tpu.memory_space<vmem>>, vector<1x100xf32>
    tpu.vector_store %arg11[%c0_40, %c2700], %87 {strides = array<i32>} : memref<1x3200xf32, #tpu.memory_space<vmem>>, vector<1x100xf32>,
    %89 = vector.extract_strided_slice %32 {offsets = [28, 0], sizes = [1, 100], strides = [1, 1]} : vector<32x100xf32> to vector<1x100xf32>
    %c0_41 = arith.constant 0 : index
    %c2800 = arith.constant 2800 : index
    %90 = vector.load %arg11[%c0_41, %c2800] : memref<1x3200xf32, #tpu.memory_space<vmem>>, vector<1x100xf32>
    tpu.vector_store %arg11[%c0_41, %c2800], %89 {strides = array<i32>} : memref<1x3200xf32, #tpu.memory_space<vmem>>, vector<1x100xf32>,
    %91 = vector.extract_strided_slice %32 {offsets = [29, 0], sizes = [1, 100], strides = [1, 1]} : vector<32x100xf32> to vector<1x100xf32>
    %c0_42 = arith.constant 0 : index
    %c2900 = arith.constant 2900 : index
    %92 = vector.load %arg11[%c0_42, %c2900] : memref<1x3200xf32, #tpu.memory_space<vmem>>, vector<1x100xf32>
    tpu.vector_store %arg11[%c0_42, %c2900], %91 {strides = array<i32>} : memref<1x3200xf32, #tpu.memory_space<vmem>>, vector<1x100xf32>,
    %93 = vector.extract_strided_slice %32 {offsets = [30, 0], sizes = [1, 100], strides = [1, 1]} : vector<32x100xf32> to vector<1x100xf32>
    %c0_43 = arith.constant 0 : index
    %c3000 = arith.constant 3000 : index
    %94 = vector.load %arg11[%c0_43, %c3000] : memref<1x3200xf32, #tpu.memory_space<vmem>>, vector<1x100xf32>
    tpu.vector_store %arg11[%c0_43, %c3000], %93 {strides = array<i32>} : memref<1x3200xf32, #tpu.memory_space<vmem>>, vector<1x100xf32>,
    %95 = vector.extract_strided_slice %32 {offsets = [31, 0], sizes = [1, 100], strides = [1, 1]} : vector<32x100xf32> to vector<1x100xf32>
    %c0_44 = arith.constant 0 : index
    %c3100 = arith.constant 3100 : index
    %96 = vector.load %arg11[%c0_44, %c3100] : memref<1x3200xf32, #tpu.memory_space<vmem>>, vector<1x100xf32>
    tpu.vector_store %arg11[%c0_44, %c3100], %95 {strides = array<i32>} : memref<1x3200xf32, #tpu.memory_space<vmem>>, vector<1x100xf32>,
    tpu.wait_dma2 semaphore(%arg12 : memref<!tpu.dma_semaphore, #tpu.memory_space<semaphore_mem>>) src(%arg5 : memref<3200x256xbf16, #tpu.memory_space<any>>) dst(%arg10 : memref<3200x256xbf16, #tpu.memory_space<vmem>>)
    %c0_45 = arith.constant 0 : index
    %c0_46 = arith.constant 0 : index
    %97 = vector.load %arg11[%c0_45, %c0_46] : memref<1x3200xf32, #tpu.memory_space<vmem>>, vector<1x3200xf32>
    %98 = arith.truncf %97 : vector<1x3200xf32> to vector<1x3200xbf16>
    %c0_47 = arith.constant 0 : index
    %c0_48 = arith.constant 0 : index
    %99 = vector.load %arg10[%c0_47, %c0_48] : memref<3200x256xbf16, #tpu.memory_space<vmem>>, vector<3200x256xbf16>
    %cst_49 = arith.constant dense<0.000000e+00> : vector<1x256xf32>
    %100 = tpu.matmul %98, %99, %cst_49 {dimension_numbers = #tpu.dot_dimension_numbers<[1], [0], [0], [1], [0, 0, 1, 1], [], []>} : vector<1x3200xbf16>, vector<3200x256xbf16>, vector<1x256xf32> -> vector<1x256xf32>
    %c0_50 = arith.constant 0 : index
    %c0_51 = arith.constant 0 : index
    %101 = vector.load %arg6[%c0_50, %c0_51] : memref<1x256xf32, #tpu.memory_space<vmem>>, vector<1x256xf32>
    %102 = arith.addf %100, %101 : vector<1x256xf32>
    %cst_52 = arith.constant 0.000000e+00 : f32
    %103 = vector.broadcast %cst_52 : f32 to vector<1x256xf32>
    %104 = arith.maximumf %102, %103 : vector<1x256xf32>
    %105 = arith.truncf %104 : vector<1x256xf32> to vector<1x256xbf16>
    %c0_53 = arith.constant 0 : index
    %c0_54 = arith.constant 0 : index
    %106 = vector.load %arg7[%c0_53, %c0_54] : memref<256x128xbf16, #tpu.memory_space<vmem>>, vector<256x128xbf16>
    %cst_55 = arith.constant dense<0.000000e+00> : vector<1x128xf32>
    %107 = tpu.matmul %105, %106, %cst_55 {dimension_numbers = #tpu.dot_dimension_numbers<[1], [0], [0], [1], [0, 0, 1, 1], [], []>} : vector<1x256xbf16>, vector<256x128xbf16>, vector<1x128xf32> -> vector<1x128xf32>
    %c0_56 = arith.constant 0 : index
    %c0_57 = arith.constant 0 : index
    %108 = vector.load %arg8[%c0_56, %c0_57] : memref<1x128xf32, #tpu.memory_space<vmem>>, vector<1x128xf32>
    %109 = arith.addf %107, %108 : vector<1x128xf32>
    %c0_58 = arith.constant 0 : index
    %c0_59 = arith.constant 0 : index
    %110 = vector.load %arg9[%c0_58, %c0_59] : memref<1x128xf32, #tpu.memory_space<vmem>>, vector<1x128xf32>
    tpu.vector_store %arg9[%c0_58, %c0_59], %109 {strides = array<i32>} : memref<1x128xf32, #tpu.memory_space<vmem>>, vector<1x128xf32>,
    return
  }
}

</mosaic_0001>

<llo_original>
// kernel: deep_q_net_forward.1
$region0: #{deep_q_net_forward.1}
  #allocation0 [shape = 'u32[]', space=smem, size = 0x4, offset = 0x4, fixed_abs, tag = 'smem constant byte address 0x4 - core index']
  #allocation1 [shape = 'u32[144,128]{1,0:T(1,128)}', space=vmem, size = 0x12000, scoped, tag = 'internal scratch']
  #allocation2 [shape = 'bf16[3200,256]{1,0:T(8,128)(2,1)}', space=vmem, size = 0x190000, scoped, tag = 'scratch operand']
  #allocation3 [shape = 'f32[1,3200]{1,0:T(1,128)}', space=vmem, size = 0x3200, scoped, tag = 'scratch operand']
  #allocation4 [shape = 's32[1]{0}', space=sflag, size = 0x4, scoped, tag = 'scratch operand']
  #allocation5 [shape = 's32[]', space=sflag, size = 0x4, offset = 0, fixed_abs, tag = 'sflag constant byte address 0x0 - dummy sync flag']
  %s0 = inlined_call_operand.vmem [shape: bf16[256,512], index: 0, kind: input, shape index: {}]
  %s1 = inlined_call_operand.vmem [shape: bf16[16,256], index: 1, kind: input, shape index: {}]
  %s2 = inlined_call_operand.vmem [shape: f32[16,1], index: 2, kind: input, shape index: {}]
  %s3 = inlined_call_operand.vmem [shape: bf16[32,256], index: 3, kind: input, shape index: {}]
  %s4 = inlined_call_operand.vmem [shape: f32[32,1], index: 4, kind: input, shape index: {}]
  %s5 = inlined_call_operand.vmem [shape: bf16[3200,256], index: 5, kind: input, shape index: {}]
  %s6 = inlined_call_operand.vmem [shape: f32[1,256], index: 6, kind: input, shape index: {}]
  %s7 = inlined_call_operand.vmem [shape: bf16[256,128], index: 7, kind: input, shape index: {}]
  %s8 = inlined_call_operand.vmem [shape: f32[1,128], index: 8, kind: input, shape index: {}]
  %s9 = inlined_call_operand.vmem [shape: f32[1,128], index: 9, kind: output, shape index: {}]
  %s10 = sld [smem:[#allocation0]]
  $region76: #{deep_q_net_forward.1} parent=0
    _
  %s12 = ssub.s32 1, %s10
  %s13 = scalar_select 0, %s12, %s10
  // Predicated region
  $region2: #{deep_q_net_forward.1} parent=0 // pred_check
    _
  $region3: #{deep_q_net_forward.1} parent=0 // pred_check_branch
    %15 = sbr.rel (0) target = $region5
  $region4: #{deep_q_net_forward.1} parent=0 // pred_region
    _
  $region5: #{deep_q_net_forward.1} parent=0 // pred_fallthru
    _
  // Predicated region
  $region6: #{deep_q_net_forward.1} parent=0 // pred_check
    _
  $region7: #{deep_q_net_forward.1} parent=0 // pred_check_branch
    %17 = sbr.rel (0) target = $region9
  $region8: #{deep_q_net_forward.1} parent=0 // pred_region
    _
  $region9: #{deep_q_net_forward.1} parent=0 // pred_fallthru
    _
  // Predicated region
  $region10: #{deep_q_net_forward.1} parent=0 // pred_check
    _
  $region11: #{deep_q_net_forward.1} parent=0 // pred_check_branch
    %19 = sbr.rel (0) target = $region13
  $region12: #{deep_q_net_forward.1} parent=0 // pred_region
    _
  $region13: #{deep_q_net_forward.1} parent=0 // pred_fallthru
    _
  // Predicated region
  $region14: #{deep_q_net_forward.1} parent=0 // pred_check
    _
  $region15: #{deep_q_net_forward.1} parent=0 // pred_check_branch
    %21 = sbr.rel (0) target = $region17
  $region16: #{deep_q_net_forward.1} parent=0 // pred_region
    _
  $region17: #{deep_q_net_forward.1} parent=0 // pred_fallthru
    _
  // Predicated region
  $region18: #{deep_q_net_forward.1} parent=0 // pred_check
    _
  $region19: #{deep_q_net_forward.1} parent=0 // pred_check_branch
    %23 = sbr.rel (0) target = $region21
  $region20: #{deep_q_net_forward.1} parent=0 // pred_region
    _
  $region21: #{deep_q_net_forward.1} parent=0 // pred_fallthru
    _
  // Predicated region
  $region22: #{deep_q_net_forward.1} parent=0 // pred_check
    _
  $region23: #{deep_q_net_forward.1} parent=0 // pred_check_branch
    %25 = sbr.rel (0) target = $region25
  $region24: #{deep_q_net_forward.1} parent=0 // pred_region
    _
  $region25: #{deep_q_net_forward.1} parent=0 // pred_fallthru
    _
  // Predicated region
  $region26: #{deep_q_net_forward.1} parent=0 // pred_check
    _
  $region27: #{deep_q_net_forward.1} parent=0 // pred_check_branch
    %27 = sbr.rel (0) target = $region29
  $region28: #{deep_q_net_forward.1} parent=0 // pred_region
    _
  $region29: #{deep_q_net_forward.1} parent=0 // pred_fallthru
    _
  // Predicated region
  $region30: #{deep_q_net_forward.1} parent=0 // pred_check
    _
  $region31: #{deep_q_net_forward.1} parent=0 // pred_check_branch
    %29 = sbr.rel (0) target = $region33
  $region32: #{deep_q_net_forward.1} parent=0 // pred_region
    _
  $region33: #{deep_q_net_forward.1} parent=0 // pred_fallthru
    _
  %p32 = scmp.lt.u32.totalorder 3200, 8
  %p33 = pneg %p32
  // Predicated region
  $region34: #{deep_q_net_forward.1} parent=0 // pred_check
    _
  $region35: #{deep_q_net_forward.1} parent=0 // pred_check_branch
    %35 = sbr.rel (%p32) target = $region37
  $region36: #{deep_q_net_forward.1} parent=0 // pred_region
    %s51 = sand.u32 3200, 7
    %p52 = scmp.eq.s32.totalorder %s51, 0
    // Predicated region
    $region49: #{deep_q_net_forward.1} parent=36 // pred_check
      %p53 = pneg %p52
    $region50: #{deep_q_net_forward.1} parent=36 // pred_check_branch
      %55 = sbr.rel (%p53) target = $region52
    $region51: #{deep_q_net_forward.1} parent=36 // pred_region
      loop: start=0, step=1, limit=1
      $region53: #{deep_q_net_forward.1} parent=51 // loop_pre_header
        _
      $region54: #{deep_q_net_forward.1} parent=51 // loop_header
        %s57 = sphi 0, %s61
        %p58 = scmp.ge.s32.totalorder %s57, 1
        %s62 = sphi %s5, %s5
        %s63 = sphi [#allocation2], [#allocation2]
      $region55: #{deep_q_net_forward.1} parent=51 // loop_header_branch
        %60 = sbr.rel (%p58) target = $region59
      $region56: #{deep_q_net_forward.1} parent=51 // loop_body
        %v64 = vld [vmem:[%s62] sm:$0xff]
        %65 = vst [vmem:[%s63] sm:$0xff] %v64
        %v66 = vld [vmem:[%s62 + $0x8] sm:$0xff]
        %67 = vst [vmem:[%s63 + $0x8] sm:$0xff] %v66
        %v68 = vld [vmem:[%s62 + $0x10] sm:$0xff]
        %69 = vst [vmem:[%s63 + $0x10] sm:$0xff] %v68
        %v70 = vld [vmem:[%s62 + $0x18] sm:$0xff]
        %71 = vst [vmem:[%s63 + $0x18] sm:$0xff] %v70
        %v72 = vld [vmem:[%s62 + $0x20] sm:$0xff]
        %73 = vst [vmem:[%s63 + $0x20] sm:$0xff] %v72
        %v74 = vld [vmem:[%s62 + $0x28] sm:$0xff]
        %75 = vst [vmem:[%s63 + $0x28] sm:$0xff] %v74
        %v76 = vld [vmem:[%s62 + $0x30] sm:$0xff]
        %77 = vst [vmem:[%s63 + $0x30] sm:$0xff] %v76
        %v78 = vld [vmem:[%s62 + $0x38] sm:$0xff]
        %79 = vst [vmem:[%s63 + $0x38] sm:$0xff] %v78
        %v80 = vld [vmem:[%s62 + $0x40] sm:$0xff]
        %81 = vst [vmem:[%s63 + $0x40] sm:$0xff] %v80
        %v82 = vld [vmem:[%s62 + $0x48] sm:$0xff]
        %83 = vst [vmem:[%s63 + $0x48] sm:$0xff] %v82
        %v84 = vld [vmem:[%s62 + $0x50] sm:$0xff]
        %85 = vst [vmem:[%s63 + $0x50] sm:$0xff] %v84
        %v86 = vld [vmem:[%s62 + $0x58] sm:$0xff]
        %87 = vst [vmem:[%s63 + $0x58] sm:$0xff] %v86
        %v88 = vld [vmem:[%s62 + $0x60] sm:$0xff]
        %89 = vst [vmem:[%s63 + $0x60] sm:$0xff] %v88
        %v90 = vld [vmem:[%s62 + $0x68] sm:$0xff]
        %91 = vst [vmem:[%s63 + $0x68] sm:$0xff] %v90
        %v92 = vld [vmem:[%s62 + $0x70] sm:$0xff]
        %93 = vst [vmem:[%s63 + $0x70] sm:$0xff] %v92
        %v94 = vld [vmem:[%s62 + $0x78] sm:$0xff]
        %95 = vst [vmem:[%s63 + $0x78] sm:$0xff] %v94
        %v96 = vld [vmem:[%s62 + $0x80] sm:$0xff]
        %97 = vst [vmem:[%s63 + $0x80] sm:$0xff] %v96
        %v98 = vld [vmem:[%s62 + $0x88] sm:$0xff]
        %99 = vst [vmem:[%s63 + $0x88] sm:$0xff] %v98
        %v100 = vld [vmem:[%s62 + $0x90] sm:$0xff]
        %101 = vst [vmem:[%s63 + $0x90] sm:$0xff] %v100
        %v102 = vld [vmem:[%s62 + $0x98] sm:$0xff]
        %103 = vst [vmem:[%s63 + $0x98] sm:$0xff] %v102
        %v104 = vld [vmem:[%s62 + $0xa0] sm:$0xff]
        %105 = vst [vmem:[%s63 + $0xa0] sm:$0xff] %v104
        %v106 = vld [vmem:[%s62 + $0xa8] sm:$0xff]
        %107 = vst [vmem:[%s63 + $0xa8] sm:$0xff] %v106
        %v108 = vld [vmem:[%s62 + $0xb0] sm:$0xff]
        %109 = vst [vmem:[%s63 + $0xb0] sm:$0xff] %v108
        %v110 = vld [vmem:[%s62 + $0xb8] sm:$0xff]
        %111 = vst [vmem:[%s63 + $0xb8] sm:$0xff] %v110
        %v112 = vld [vmem:[%s62 + $0xc0] sm:$0xff]
        %113 = vst [vmem:[%s63 + $0xc0] sm:$0xff] %v112
        %v114 = vld [vmem:[%s62 + $0xc8] sm:$0xff]
        %115 = vst [vmem:[%s63 + $0xc8] sm:$0xff] %v114
        %v116 = vld [vmem:[%s62 + $0xd0] sm:$0xff]
        %117 = vst [vmem:[%s63 + $0xd0] sm:$0xff] %v116
        %v118 = vld [vmem:[%s62 + $0xd8] sm:$0xff]
        %119 = vst [vmem:[%s63 + $0xd8] sm:$0xff] %v118
        %v120 = vld [vmem:[%s62 + $0xe0] sm:$0xff]
        %121 = vst [vmem:[%s63 + $0xe0] sm:$0xff] %v120
        %v122 = vld [vmem:[%s62 + $0xe8] sm:$0xff]
        %123 = vst [vmem:[%s63 + $0xe8] sm:$0xff] %v122
        %v124 = vld [vmem:[%s62 + $0xf0] sm:$0xff]
        %125 = vst [vmem:[%s63 + $0xf0] sm:$0xff] %v124
        %v126 = vld [vmem:[%s62 + $0xf8] sm:$0xff]
        %127 = vst [vmem:[%s63 + $0xf8] sm:$0xff] %v126
        %v128 = vld [vmem:[%s62 + $0x100] sm:$0xff]
        %129 = vst [vmem:[%s63 + $0x100] sm:$0xff] %v128
        %v130 = vld [vmem:[%s62 + $0x108] sm:$0xff]
        %131 = vst [vmem:[%s63 + $0x108] sm:$0xff] %v130
        %v132 = vld [vmem:[%s62 + $0x110] sm:$0xff]
        %133 = vst [vmem:[%s63 + $0x110] sm:$0xff] %v132
        %v134 = vld [vmem:[%s62 + $0x118] sm:$0xff]
        %135 = vst [vmem:[%s63 + $0x118] sm:$0xff] %v134
        %v136 = vld [vmem:[%s62 + $0x120] sm:$0xff]
        %137 = vst [vmem:[%s63 + $0x120] sm:$0xff] %v136
        %v138 = vld [vmem:[%s62 + $0x128] sm:$0xff]
        %139 = vst [vmem:[%s63 + $0x128] sm:$0xff] %v138
        %v140 = vld [vmem:[%s62 + $0x130] sm:$0xff]
        %141 = vst [vmem:[%s63 + $0x130] sm:$0xff] %v140
        %v142 = vld [vmem:[%s62 + $0x138] sm:$0xff]
        %143 = vst [vmem:[%s63 + $0x138] sm:$0xff] %v142
        %v144 = vld [vmem:[%s62 + $0x140] sm:$0xff]
        %145 = vst [vmem:[%s63 + $0x140] sm:$0xff] %v144
        %v146 = vld [vmem:[%s62 + $0x148] sm:$0xff]
        %147 = vst [vmem:[%s63 + $0x148] sm:$0xff] %v146
        %v148 = vld [vmem:[%s62 + $0x150] sm:$0xff]
        %149 = vst [vmem:[%s63 + $0x150] sm:$0xff] %v148
        %v150 = vld [vmem:[%s62 + $0x158] sm:$0xff]
        %151 = vst [vmem:[%s63 + $0x158] sm:$0xff] %v150
        %v152 = vld [vmem:[%s62 + $0x160] sm:$0xff]
        %153 = vst [vmem:[%s63 + $0x160] sm:$0xff] %v152
        %v154 = vld [vmem:[%s62 + $0x168] sm:$0xff]
        %155 = vst [vmem:[%s63 + $0x168] sm:$0xff] %v154
        %v156 = vld [vmem:[%s62 + $0x170] sm:$0xff]
        %157 = vst [vmem:[%s63 + $0x170] sm:$0xff] %v156
        %v158 = vld [vmem:[%s62 + $0x178] sm:$0xff]
        %159 = vst [vmem:[%s63 + $0x178] sm:$0xff] %v158
        %v160 = vld [vmem:[%s62 + $0x180] sm:$0xff]
        %161 = vst [vmem:[%s63 + $0x180] sm:$0xff] %v160
        %v162 = vld [vmem:[%s62 + $0x188] sm:$0xff]
        %163 = vst [vmem:[%s63 + $0x188] sm:$0xff] %v162
        %v164 = vld [vmem:[%s62 + $0x190] sm:$0xff]
        %165 = vst [vmem:[%s63 + $0x190] sm:$0xff] %v164
        %v166 = vld [vmem:[%s62 + $0x198] sm:$0xff]
        %167 = vst [vmem:[%s63 + $0x198] sm:$0xff] %v166
        %v168 = vld [vmem:[%s62 + $0x1a0] sm:$0xff]
        %169 = vst [vmem:[%s63 + $0x1a0] sm:$0xff] %v168
        %v170 = vld [vmem:[%s62 + $0x1a8] sm:$0xff]
        %171 = vst [vmem:[%s63 + $0x1a8] sm:$0xff] %v170
        %v172 = vld [vmem:[%s62 + $0x1b0] sm:$0xff]
        %173 = vst [vmem:[%s63 + $0x1b0] sm:$0xff] %v172
        %v174 = vld [vmem:[%s62 + $0x1b8] sm:$0xff]
        %175 = vst [vmem:[%s63 + $0x1b8] sm:$0xff] %v174
        %v176 = vld [vmem:[%s62 + $0x1c0] sm:$0xff]
        %177 = vst [vmem:[%s63 + $0x1c0] sm:$0xff] %v176
        %v178 = vld [vmem:[%s62 + $0x1c8] sm:$0xff]
        %179 = vst [vmem:[%s63 + $0x1c8] sm:$0xff] %v178
        %v180 = vld [vmem:[%s62 + $0x1d0] sm:$0xff]
        %181 = vst [vmem:[%s63 + $0x1d0] sm:$0xff] %v180
        %v182 = vld [vmem:[%s62 + $0x1d8] sm:$0xff]
        %183 = vst [vmem:[%s63 + $0x1d8] sm:$0xff] %v182
        %v184 = vld [vmem:[%s62 + $0x1e0] sm:$0xff]
        %185 = vst [vmem:[%s63 + $0x1e0] sm:$0xff] %v184
        %v186 = vld [vmem:[%s62 + $0x1e8] sm:$0xff]
        %187 = vst [vmem:[%s63 + $0x1e8] sm:$0xff] %v186
        %v188 = vld [vmem:[%s62 + $0x1f0] sm:$0xff]
        %189 = vst [vmem:[%s63 + $0x1f0] sm:$0xff] %v188
        %v190 = vld [vmem:[%s62 + $0x1f8] sm:$0xff]
        %191 = vst [vmem:[%s63 + $0x1f8] sm:$0xff] %v190
        %v192 = vld [vmem:[%s62 + $0x200] sm:$0xff]
        %193 = vst [vmem:[%s63 + $0x200] sm:$0xff] %v192
        %v194 = vld [vmem:[%s62 + $0x208] sm:$0xff]
        %195 = vst [vmem:[%s63 + $0x208] sm:$0xff] %v194
        %v196 = vld [vmem:[%s62 + $0x210] sm:$0xff]
        %197 = vst [vmem:[%s63 + $0x210] sm:$0xff] %v196
        %v198 = vld [vmem:[%s62 + $0x218] sm:$0xff]
        %199 = vst [vmem:[%s63 + $0x218] sm:$0xff] %v198
        %v200 = vld [vmem:[%s62 + $0x220] sm:$0xff]
        %201 = vst [vmem:[%s63 + $0x220] sm:$0xff] %v200
        %v202 = vld [vmem:[%s62 + $0x228] sm:$0xff]
        %203 = vst [vmem:[%s63 + $0x228] sm:$0xff] %v202
        %v204 = vld [vmem:[%s62 + $0x230] sm:$0xff]
        %205 = vst [vmem:[%s63 + $0x230] sm:$0xff] %v204
        %v206 = vld [vmem:[%s62 + $0x238] sm:$0xff]
        %207 = vst [vmem:[%s63 + $0x238] sm:$0xff] %v206
        %v208 = vld [vmem:[%s62 + $0x240] sm:$0xff]
        %209 = vst [vmem:[%s63 + $0x240] sm:$0xff] %v208
        %v210 = vld [vmem:[%s62 + $0x248] sm:$0xff]
        %211 = vst [vmem:[%s63 + $0x248] sm:$0xff] %v210
        %v212 = vld [vmem:[%s62 + $0x250] sm:$0xff]
        %213 = vst [vmem:[%s63 + $0x250] sm:$0xff] %v212
        %v214 = vld [vmem:[%s62 + $0x258] sm:$0xff]
        %215 = vst [vmem:[%s63 + $0x258] sm:$0xff] %v214
        %v216 = vld [vmem:[%s62 + $0x260] sm:$0xff]
        %217 = vst [vmem:[%s63 + $0x260] sm:$0xff] %v216
        %v218 = vld [vmem:[%s62 + $0x268] sm:$0xff]
        %219 = vst [vmem:[%s63 + $0x268] sm:$0xff] %v218
        %v220 = vld [vmem:[%s62 + $0x270] sm:$0xff]
        %221 = vst [vmem:[%s63 + $0x270] sm:$0xff] %v220
        %v222 = vld [vmem:[%s62 + $0x278] sm:$0xff]
        %223 = vst [vmem:[%s63 + $0x278] sm:$0xff] %v222
        %v224 = vld [vmem:[%s62 + $0x280] sm:$0xff]
        %225 = vst [vmem:[%s63 + $0x280] sm:$0xff] %v224
        %v226 = vld [vmem:[%s62 + $0x288] sm:$0xff]
        %227 = vst [vmem:[%s63 + $0x288] sm:$0xff] %v226
        %v228 = vld [vmem:[%s62 + $0x290] sm:$0xff]
        %229 = vst [vmem:[%s63 + $0x290] sm:$0xff] %v228
        %v230 = vld [vmem:[%s62 + $0x298] sm:$0xff]
        %231 = vst [vmem:[%s63 + $0x298] sm:$0xff] %v230
        %v232 = vld [vmem:[%s62 + $0x2a0] sm:$0xff]
        %233 = vst [vmem:[%s63 + $0x2a0] sm:$0xff] %v232
        %v234 = vld [vmem:[%s62 + $0x2a8] sm:$0xff]
        %235 = vst [vmem:[%s63 + $0x2a8] sm:$0xff] %v234
        %v236 = vld [vmem:[%s62 + $0x2b0] sm:$0xff]
        %237 = vst [vmem:[%s63 + $0x2b0] sm:$0xff] %v236
        %v238 = vld [vmem:[%s62 + $0x2b8] sm:$0xff]
        %239 = vst [vmem:[%s63 + $0x2b8] sm:$0xff] %v238
        %v240 = vld [vmem:[%s62 + $0x2c0] sm:$0xff]
        %241 = vst [vmem:[%s63 + $0x2c0] sm:$0xff] %v240
        %v242 = vld [vmem:[%s62 + $0x2c8] sm:$0xff]
        %243 = vst [vmem:[%s63 + $0x2c8] sm:$0xff] %v242
        %v244 = vld [vmem:[%s62 + $0x2d0] sm:$0xff]
        %245 = vst [vmem:[%s63 + $0x2d0] sm:$0xff] %v244
        %v246 = vld [vmem:[%s62 + $0x2d8] sm:$0xff]
        %247 = vst [vmem:[%s63 + $0x2d8] sm:$0xff] %v246
        %v248 = vld [vmem:[%s62 + $0x2e0] sm:$0xff]
        %249 = vst [vmem:[%s63 + $0x2e0] sm:$0xff] %v248
        %v250 = vld [vmem:[%s62 + $0x2e8] sm:$0xff]
        %251 = vst [vmem:[%s63 + $0x2e8] sm:$0xff] %v250
        %v252 = vld [vmem:[%s62 + $0x2f0] sm:$0xff]
        %253 = vst [vmem:[%s63 + $0x2f0] sm:$0xff] %v252
        %v254 = vld [vmem:[%s62 + $0x2f8] sm:$0xff]
        %255 = vst [vmem:[%s63 + $0x2f8] sm:$0xff] %v254
        %v256 = vld [vmem:[%s62 + $0x300] sm:$0xff]
        %257 = vst [vmem:[%s63 + $0x300] sm:$0xff] %v256
        %v258 = vld [vmem:[%s62 + $0x308] sm:$0xff]
        %259 = vst [vmem:[%s63 + $0x308] sm:$0xff] %v258
        %v260 = vld [vmem:[%s62 + $0x310] sm:$0xff]
        %261 = vst [vmem:[%s63 + $0x310] sm:$0xff] %v260
        %v262 = vld [vmem:[%s62 + $0x318] sm:$0xff]
        %263 = vst [vmem:[%s63 + $0x318] sm:$0xff] %v262
        %v264 = vld [vmem:[%s62 + $0x320] sm:$0xff]
        %265 = vst [vmem:[%s63 + $0x320] sm:$0xff] %v264
        %v266 = vld [vmem:[%s62 + $0x328] sm:$0xff]
        %267 = vst [vmem:[%s63 + $0x328] sm:$0xff] %v266
        %v268 = vld [vmem:[%s62 + $0x330] sm:$0xff]
        %269 = vst [vmem:[%s63 + $0x330] sm:$0xff] %v268
        %v270 = vld [vmem:[%s62 + $0x338] sm:$0xff]
        %271 = vst [vmem:[%s63 + $0x338] sm:$0xff] %v270
        %v272 = vld [vmem:[%s62 + $0x340] sm:$0xff]
        %273 = vst [vmem:[%s63 + $0x340] sm:$0xff] %v272
        %v274 = vld [vmem:[%s62 + $0x348] sm:$0xff]
        %275 = vst [vmem:[%s63 + $0x348] sm:$0xff] %v274
        %v276 = vld [vmem:[%s62 + $0x350] sm:$0xff]
        %277 = vst [vmem:[%s63 + $0x350] sm:$0xff] %v276
        %v278 = vld [vmem:[%s62 + $0x358] sm:$0xff]
        %279 = vst [vmem:[%s63 + $0x358] sm:$0xff] %v278
        %v280 = vld [vmem:[%s62 + $0x360] sm:$0xff]
        %281 = vst [vmem:[%s63 + $0x360] sm:$0xff] %v280
        %v282 = vld [vmem:[%s62 + $0x368] sm:$0xff]
        %283 = vst [vmem:[%s63 + $0x368] sm:$0xff] %v282
        %v284 = vld [vmem:[%s62 + $0x370] sm:$0xff]
        %285 = vst [vmem:[%s63 + $0x370] sm:$0xff] %v284
        %v286 = vld [vmem:[%s62 + $0x378] sm:$0xff]
        %287 = vst [vmem:[%s63 + $0x378] sm:$0xff] %v286
        %v288 = vld [vmem:[%s62 + $0x380] sm:$0xff]
        %289 = vst [vmem:[%s63 + $0x380] sm:$0xff] %v288
        %v290 = vld [vmem:[%s62 + $0x388] sm:$0xff]
        %291 = vst [vmem:[%s63 + $0x388] sm:$0xff] %v290
        %v292 = vld [vmem:[%s62 + $0x390] sm:$0xff]
        %293 = vst [vmem:[%s63 + $0x390] sm:$0xff] %v292
        %v294 = vld [vmem:[%s62 + $0x398] sm:$0xff]
        %295 = vst [vmem:[%s63 + $0x398] sm:$0xff] %v294
        %v296 = vld [vmem:[%s62 + $0x3a0] sm:$0xff]
        %297 = vst [vmem:[%s63 + $0x3a0] sm:$0xff] %v296
        %v298 = vld [vmem:[%s62 + $0x3a8] sm:$0xff]
        %299 = vst [vmem:[%s63 + $0x3a8] sm:$0xff] %v298
        %v300 = vld [vmem:[%s62 + $0x3b0] sm:$0xff]
        %301 = vst [vmem:[%s63 + $0x3b0] sm:$0xff] %v300
        %v302 = vld [vmem:[%s62 + $0x3b8] sm:$0xff]
        %303 = vst [vmem:[%s63 + $0x3b8] sm:$0xff] %v302
        %v304 = vld [vmem:[%s62 + $0x3c0] sm:$0xff]
        %305 = vst [vmem:[%s63 + $0x3c0] sm:$0xff] %v304
        %v306 = vld [vmem:[%s62 + $0x3c8] sm:$0xff]
        %307 = vst [vmem:[%s63 + $0x3c8] sm:$0xff] %v306
        %v308 = vld [vmem:[%s62 + $0x3d0] sm:$0xff]
        %309 = vst [vmem:[%s63 + $0x3d0] sm:$0xff] %v308
        %v310 = vld [vmem:[%s62 + $0x3d8] sm:$0xff]
        %311 = vst [vmem:[%s63 + $0x3d8] sm:$0xff] %v310
        %v312 = vld [vmem:[%s62 + $0x3e0] sm:$0xff]
        %313 = vst [vmem:[%s63 + $0x3e0] sm:$0xff] %v312
        %v314 = vld [vmem:[%s62 + $0x3e8] sm:$0xff]
        %315 = vst [vmem:[%s63 + $0x3e8] sm:$0xff] %v314
        %v316 = vld [vmem:[%s62 + $0x3f0] sm:$0xff]
        %317 = vst [vmem:[%s63 + $0x3f0] sm:$0xff] %v316
        %v318 = vld [vmem:[%s62 + $0x3f8] sm:$0xff]
        %319 = vst [vmem:[%s63 + $0x3f8] sm:$0xff] %v318
        %v320 = vld [vmem:[%s62 + $0x400] sm:$0xff]
        %321 = vst [vmem:[%s63 + $0x400] sm:$0xff] %v320
        %v322 = vld [vmem:[%s62 + $0x408] sm:$0xff]
        %323 = vst [vmem:[%s63 + $0x408] sm:$0xff] %v322
        %v324 = vld [vmem:[%s62 + $0x410] sm:$0xff]
        %325 = vst [vmem:[%s63 + $0x410] sm:$0xff] %v324
        %v326 = vld [vmem:[%s62 + $0x418] sm:$0xff]
        %327 = vst [vmem:[%s63 + $0x418] sm:$0xff] %v326
        %v328 = vld [vmem:[%s62 + $0x420] sm:$0xff]
        %329 = vst [vmem:[%s63 + $0x420] sm:$0xff] %v328
        %v330 = vld [vmem:[%s62 + $0x428] sm:$0xff]
        %331 = vst [vmem:[%s63 + $0x428] sm:$0xff] %v330
        %v332 = vld [vmem:[%s62 + $0x430] sm:$0xff]
        %333 = vst [vmem:[%s63 + $0x430] sm:$0xff] %v332
        %v334 = vld [vmem:[%s62 + $0x438] sm:$0xff]
        %335 = vst [vmem:[%s63 + $0x438] sm:$0xff] %v334
        %v336 = vld [vmem:[%s62 + $0x440] sm:$0xff]
        %337 = vst [vmem:[%s63 + $0x440] sm:$0xff] %v336
        %v338 = vld [vmem:[%s62 + $0x448] sm:$0xff]
        %339 = vst [vmem:[%s63 + $0x448] sm:$0xff] %v338
        %v340 = vld [vmem:[%s62 + $0x450] sm:$0xff]
        %341 = vst [vmem:[%s63 + $0x450] sm:$0xff] %v340
        %v342 = vld [vmem:[%s62 + $0x458] sm:$0xff]
        %343 = vst [vmem:[%s63 + $0x458] sm:$0xff] %v342
        %v344 = vld [vmem:[%s62 + $0x460] sm:$0xff]
        %345 = vst [vmem:[%s63 + $0x460] sm:$0xff] %v344
        %v346 = vld [vmem:[%s62 + $0x468] sm:$0xff]
        %347 = vst [vmem:[%s63 + $0x468] sm:$0xff] %v346
        %v348 = vld [vmem:[%s62 + $0x470] sm:$0xff]
        %349 = vst [vmem:[%s63 + $0x470] sm:$0xff] %v348
        %v350 = vld [vmem:[%s62 + $0x478] sm:$0xff]
        %351 = vst [vmem:[%s63 + $0x478] sm:$0xff] %v350
        %v352 = vld [vmem:[%s62 + $0x480] sm:$0xff]
        %353 = vst [vmem:[%s63 + $0x480] sm:$0xff] %v352
        %v354 = vld [vmem:[%s62 + $0x488] sm:$0xff]
        %355 = vst [vmem:[%s63 + $0x488] sm:$0xff] %v354
        %v356 = vld [vmem:[%s62 + $0x490] sm:$0xff]
        %357 = vst [vmem:[%s63 + $0x490] sm:$0xff] %v356
        %v358 = vld [vmem:[%s62 + $0x498] sm:$0xff]
        %359 = vst [vmem:[%s63 + $0x498] sm:$0xff] %v358
        %v360 = vld [vmem:[%s62 + $0x4a0] sm:$0xff]
        %361 = vst [vmem:[%s63 + $0x4a0] sm:$0xff] %v360
        %v362 = vld [vmem:[%s62 + $0x4a8] sm:$0xff]
        %363 = vst [vmem:[%s63 + $0x4a8] sm:$0xff] %v362
        %v364 = vld [vmem:[%s62 + $0x4b0] sm:$0xff]
        %365 = vst [vmem:[%s63 + $0x4b0] sm:$0xff] %v364
        %v366 = vld [vmem:[%s62 + $0x4b8] sm:$0xff]
        %367 = vst [vmem:[%s63 + $0x4b8] sm:$0xff] %v366
        %v368 = vld [vmem:[%s62 + $0x4c0] sm:$0xff]
        %369 = vst [vmem:[%s63 + $0x4c0] sm:$0xff] %v368
        %v370 = vld [vmem:[%s62 + $0x4c8] sm:$0xff]
        %371 = vst [vmem:[%s63 + $0x4c8] sm:$0xff] %v370
        %v372 = vld [vmem:[%s62 + $0x4d0] sm:$0xff]
        %373 = vst [vmem:[%s63 + $0x4d0] sm:$0xff] %v372
        %v374 = vld [vmem:[%s62 + $0x4d8] sm:$0xff]
        %375 = vst [vmem:[%s63 + $0x4d8] sm:$0xff] %v374
        %v376 = vld [vmem:[%s62 + $0x4e0] sm:$0xff]
        %377 = vst [vmem:[%s63 + $0x4e0] sm:$0xff] %v376
        %v378 = vld [vmem:[%s62 + $0x4e8] sm:$0xff]
        %379 = vst [vmem:[%s63 + $0x4e8] sm:$0xff] %v378
        %v380 = vld [vmem:[%s62 + $0x4f0] sm:$0xff]
        %381 = vst [vmem:[%s63 + $0x4f0] sm:$0xff] %v380
        %v382 = vld [vmem:[%s62 + $0x4f8] sm:$0xff]
        %383 = vst [vmem:[%s63 + $0x4f8] sm:$0xff] %v382
        %v384 = vld [vmem:[%s62 + $0x500] sm:$0xff]
        %385 = vst [vmem:[%s63 + $0x500] sm:$0xff] %v384
        %v386 = vld [vmem:[%s62 + $0x508] sm:$0xff]
        %387 = vst [vmem:[%s63 + $0x508] sm:$0xff] %v386
        %v388 = vld [vmem:[%s62 + $0x510] sm:$0xff]
        %389 = vst [vmem:[%s63 + $0x510] sm:$0xff] %v388
        %v390 = vld [vmem:[%s62 + $0x518] sm:$0xff]
        %391 = vst [vmem:[%s63 + $0x518] sm:$0xff] %v390
        %v392 = vld [vmem:[%s62 + $0x520] sm:$0xff]
        %393 = vst [vmem:[%s63 + $0x520] sm:$0xff] %v392
        %v394 = vld [vmem:[%s62 + $0x528] sm:$0xff]
        %395 = vst [vmem:[%s63 + $0x528] sm:$0xff] %v394
        %v396 = vld [vmem:[%s62 + $0x530] sm:$0xff]
        %397 = vst [vmem:[%s63 + $0x530] sm:$0xff] %v396
        %v398 = vld [vmem:[%s62 + $0x538] sm:$0xff]
        %399 = vst [vmem:[%s63 + $0x538] sm:$0xff] %v398
        %v400 = vld [vmem:[%s62 + $0x540] sm:$0xff]
        %401 = vst [vmem:[%s63 + $0x540] sm:$0xff] %v400
        %v402 = vld [vmem:[%s62 + $0x548] sm:$0xff]
        %403 = vst [vmem:[%s63 + $0x548] sm:$0xff] %v402
        %v404 = vld [vmem:[%s62 + $0x550] sm:$0xff]
        %405 = vst [vmem:[%s63 + $0x550] sm:$0xff] %v404
        %v406 = vld [vmem:[%s62 + $0x558] sm:$0xff]
        %407 = vst [vmem:[%s63 + $0x558] sm:$0xff] %v406
        %v408 = vld [vmem:[%s62 + $0x560] sm:$0xff]
        %409 = vst [vmem:[%s63 + $0x560] sm:$0xff] %v408
        %v410 = vld [vmem:[%s62 + $0x568] sm:$0xff]
        %411 = vst [vmem:[%s63 + $0x568] sm:$0xff] %v410
        %v412 = vld [vmem:[%s62 + $0x570] sm:$0xff]
        %413 = vst [vmem:[%s63 + $0x570] sm:$0xff] %v412
        %v414 = vld [vmem:[%s62 + $0x578] sm:$0xff]
        %415 = vst [vmem:[%s63 + $0x578] sm:$0xff] %v414
        %v416 = vld [vmem:[%s62 + $0x580] sm:$0xff]
        %417 = vst [vmem:[%s63 + $0x580] sm:$0xff] %v416
        %v418 = vld [vmem:[%s62 + $0x588] sm:$0xff]
        %419 = vst [vmem:[%s63 + $0x588] sm:$0xff] %v418
        %v420 = vld [vmem:[%s62 + $0x590] sm:$0xff]
        %421 = vst [vmem:[%s63 + $0x590] sm:$0xff] %v420
        %v422 = vld [vmem:[%s62 + $0x598] sm:$0xff]
        %423 = vst [vmem:[%s63 + $0x598] sm:$0xff] %v422
        %v424 = vld [vmem:[%s62 + $0x5a0] sm:$0xff]
        %425 = vst [vmem:[%s63 + $0x5a0] sm:$0xff] %v424
        %v426 = vld [vmem:[%s62 + $0x5a8] sm:$0xff]
        %427 = vst [vmem:[%s63 + $0x5a8] sm:$0xff] %v426
        %v428 = vld [vmem:[%s62 + $0x5b0] sm:$0xff]
        %429 = vst [vmem:[%s63 + $0x5b0] sm:$0xff] %v428
        %v430 = vld [vmem:[%s62 + $0x5b8] sm:$0xff]
        %431 = vst [vmem:[%s63 + $0x5b8] sm:$0xff] %v430
        %v432 = vld [vmem:[%s62 + $0x5c0] sm:$0xff]
        %433 = vst [vmem:[%s63 + $0x5c0] sm:$0xff] %v432
        %v434 = vld [vmem:[%s62 + $0x5c8] sm:$0xff]
        %435 = vst [vmem:[%s63 + $0x5c8] sm:$0xff] %v434
        %v436 = vld [vmem:[%s62 + $0x5d0] sm:$0xff]
        %437 = vst [vmem:[%s63 + $0x5d0] sm:$0xff] %v436
        %v438 = vld [vmem:[%s62 + $0x5d8] sm:$0xff]
        %439 = vst [vmem:[%s63 + $0x5d8] sm:$0xff] %v438
        %v440 = vld [vmem:[%s62 + $0x5e0] sm:$0xff]
        %441 = vst [vmem:[%s63 + $0x5e0] sm:$0xff] %v440
        %v442 = vld [vmem:[%s62 + $0x5e8] sm:$0xff]
        %443 = vst [vmem:[%s63 + $0x5e8] sm:$0xff] %v442
        %v444 = vld [vmem:[%s62 + $0x5f0] sm:$0xff]
        %445 = vst [vmem:[%s63 + $0x5f0] sm:$0xff] %v444
        %v446 = vld [vmem:[%s62 + $0x5f8] sm:$0xff]
        %447 = vst [vmem:[%s63 + $0x5f8] sm:$0xff] %v446
        %v448 = vld [vmem:[%s62 + $0x600] sm:$0xff]
        %449 = vst [vmem:[%s63 + $0x600] sm:$0xff] %v448
        %v450 = vld [vmem:[%s62 + $0x608] sm:$0xff]
        %451 = vst [vmem:[%s63 + $0x608] sm:$0xff] %v450
        %v452 = vld [vmem:[%s62 + $0x610] sm:$0xff]
        %453 = vst [vmem:[%s63 + $0x610] sm:$0xff] %v452
        %v454 = vld [vmem:[%s62 + $0x618] sm:$0xff]
        %455 = vst [vmem:[%s63 + $0x618] sm:$0xff] %v454
        %v456 = vld [vmem:[%s62 + $0x620] sm:$0xff]
        %457 = vst [vmem:[%s63 + $0x620] sm:$0xff] %v456
        %v458 = vld [vmem:[%s62 + $0x628] sm:$0xff]
        %459 = vst [vmem:[%s63 + $0x628] sm:$0xff] %v458
        %v460 = vld [vmem:[%s62 + $0x630] sm:$0xff]
        %461 = vst [vmem:[%s63 + $0x630] sm:$0xff] %v460
        %v462 = vld [vmem:[%s62 + $0x638] sm:$0xff]
        %463 = vst [vmem:[%s63 + $0x638] sm:$0xff] %v462
        %v464 = vld [vmem:[%s62 + $0x640] sm:$0xff]
        %465 = vst [vmem:[%s63 + $0x640] sm:$0xff] %v464
        %v466 = vld [vmem:[%s62 + $0x648] sm:$0xff]
        %467 = vst [vmem:[%s63 + $0x648] sm:$0xff] %v466
        %v468 = vld [vmem:[%s62 + $0x650] sm:$0xff]
        %469 = vst [vmem:[%s63 + $0x650] sm:$0xff] %v468
        %v470 = vld [vmem:[%s62 + $0x658] sm:$0xff]
        %471 = vst [vmem:[%s63 + $0x658] sm:$0xff] %v470
        %v472 = vld [vmem:[%s62 + $0x660] sm:$0xff]
        %473 = vst [vmem:[%s63 + $0x660] sm:$0xff] %v472
        %v474 = vld [vmem:[%s62 + $0x668] sm:$0xff]
        %475 = vst [vmem:[%s63 + $0x668] sm:$0xff] %v474
        %v476 = vld [vmem:[%s62 + $0x670] sm:$0xff]
        %477 = vst [vmem:[%s63 + $0x670] sm:$0xff] %v476
        %v478 = vld [vmem:[%s62 + $0x678] sm:$0xff]
        %479 = vst [vmem:[%s63 + $0x678] sm:$0xff] %v478
        %v480 = vld [vmem:[%s62 + $0x680] sm:$0xff]
        %481 = vst [vmem:[%s63 + $0x680] sm:$0xff] %v480
        %v482 = vld [vmem:[%s62 + $0x688] sm:$0xff]
        %483 = vst [vmem:[%s63 + $0x688] sm:$0xff] %v482
        %v484 = vld [vmem:[%s62 + $0x690] sm:$0xff]
        %485 = vst [vmem:[%s63 + $0x690] sm:$0xff] %v484
        %v486 = vld [vmem:[%s62 + $0x698] sm:$0xff]
        %487 = vst [vmem:[%s63 + $0x698] sm:$0xff] %v486
        %v488 = vld [vmem:[%s62 + $0x6a0] sm:$0xff]
        %489 = vst [vmem:[%s63 + $0x6a0] sm:$0xff] %v488
        %v490 = vld [vmem:[%s62 + $0x6a8] sm:$0xff]
        %491 = vst [vmem:[%s63 + $0x6a8] sm:$0xff] %v490
        %v492 = vld [vmem:[%s62 + $0x6b0] sm:$0xff]
        %493 = vst [vmem:[%s63 + $0x6b0] sm:$0xff] %v492
        %v494 = vld [vmem:[%s62 + $0x6b8] sm:$0xff]
        %495 = vst [vmem:[%s63 + $0x6b8] sm:$0xff] %v494
        %v496 = vld [vmem:[%s62 + $0x6c0] sm:$0xff]
        %497 = vst [vmem:[%s63 + $0x6c0] sm:$0xff] %v496
        %v498 = vld [vmem:[%s62 + $0x6c8] sm:$0xff]
        %499 = vst [vmem:[%s63 + $0x6c8] sm:$0xff] %v498
        %v500 = vld [vmem:[%s62 + $0x6d0] sm:$0xff]
        %501 = vst [vmem:[%s63 + $0x6d0] sm:$0xff] %v500
        %v502 = vld [vmem:[%s62 + $0x6d8] sm:$0xff]
        %503 = vst [vmem:[%s63 + $0x6d8] sm:$0xff] %v502
        %v504 = vld [vmem:[%s62 + $0x6e0] sm:$0xff]
        %505 = vst [vmem:[%s63 + $0x6e0] sm:$0xff] %v504
        %v506 = vld [vmem:[%s62 + $0x6e8] sm:$0xff]
        %507 = vst [vmem:[%s63 + $0x6e8] sm:$0xff] %v506
        %v508 = vld [vmem:[%s62 + $0x6f0] sm:$0xff]
        %509 = vst [vmem:[%s63 + $0x6f0] sm:$0xff] %v508
        %v510 = vld [vmem:[%s62 + $0x6f8] sm:$0xff]
        %511 = vst [vmem:[%s63 + $0x6f8] sm:$0xff] %v510
        %v512 = vld [vmem:[%s62 + $0x700] sm:$0xff]
        %513 = vst [vmem:[%s63 + $0x700] sm:$0xff] %v512
        %v514 = vld [vmem:[%s62 + $0x708] sm:$0xff]
        %515 = vst [vmem:[%s63 + $0x708] sm:$0xff] %v514
        %v516 = vld [vmem:[%s62 + $0x710] sm:$0xff]
        %517 = vst [vmem:[%s63 + $0x710] sm:$0xff] %v516
        %v518 = vld [vmem:[%s62 + $0x718] sm:$0xff]
        %519 = vst [vmem:[%s63 + $0x718] sm:$0xff] %v518
        %v520 = vld [vmem:[%s62 + $0x720] sm:$0xff]
        %521 = vst [vmem:[%s63 + $0x720] sm:$0xff] %v520
        %v522 = vld [vmem:[%s62 + $0x728] sm:$0xff]
        %523 = vst [vmem:[%s63 + $0x728] sm:$0xff] %v522
        %v524 = vld [vmem:[%s62 + $0x730] sm:$0xff]
        %525 = vst [vmem:[%s63 + $0x730] sm:$0xff] %v524
        %v526 = vld [vmem:[%s62 + $0x738] sm:$0xff]
        %527 = vst [vmem:[%s63 + $0x738] sm:$0xff] %v526
        %v528 = vld [vmem:[%s62 + $0x740] sm:$0xff]
        %529 = vst [vmem:[%s63 + $0x740] sm:$0xff] %v528
        %v530 = vld [vmem:[%s62 + $0x748] sm:$0xff]
        %531 = vst [vmem:[%s63 + $0x748] sm:$0xff] %v530
        %v532 = vld [vmem:[%s62 + $0x750] sm:$0xff]
        %533 = vst [vmem:[%s63 + $0x750] sm:$0xff] %v532
        %v534 = vld [vmem:[%s62 + $0x758] sm:$0xff]
        %535 = vst [vmem:[%s63 + $0x758] sm:$0xff] %v534
        %v536 = vld [vmem:[%s62 + $0x760] sm:$0xff]
        %537 = vst [vmem:[%s63 + $0x760] sm:$0xff] %v536
        %v538 = vld [vmem:[%s62 + $0x768] sm:$0xff]
        %539 = vst [vmem:[%s63 + $0x768] sm:$0xff] %v538
        %v540 = vld [vmem:[%s62 + $0x770] sm:$0xff]
        %541 = vst [vmem:[%s63 + $0x770] sm:$0xff] %v540
        %v542 = vld [vmem:[%s62 + $0x778] sm:$0xff]
        %543 = vst [vmem:[%s63 + $0x778] sm:$0xff] %v542
        %v544 = vld [vmem:[%s62 + $0x780] sm:$0xff]
        %545 = vst [vmem:[%s63 + $0x780] sm:$0xff] %v544
        %v546 = vld [vmem:[%s62 + $0x788] sm:$0xff]
        %547 = vst [vmem:[%s63 + $0x788] sm:$0xff] %v546
        %v548 = vld [vmem:[%s62 + $0x790] sm:$0xff]
        %549 = vst [vmem:[%s63 + $0x790] sm:$0xff] %v548
        %v550 = vld [vmem:[%s62 + $0x798] sm:$0xff]
        %551 = vst [vmem:[%s63 + $0x798] sm:$0xff] %v550
        %v552 = vld [vmem:[%s62 + $0x7a0] sm:$0xff]
        %553 = vst [vmem:[%s63 + $0x7a0] sm:$0xff] %v552
        %v554 = vld [vmem:[%s62 + $0x7a8] sm:$0xff]
        %555 = vst [vmem:[%s63 + $0x7a8] sm:$0xff] %v554
        %v556 = vld [vmem:[%s62 + $0x7b0] sm:$0xff]
        %557 = vst [vmem:[%s63 + $0x7b0] sm:$0xff] %v556
        %v558 = vld [vmem:[%s62 + $0x7b8] sm:$0xff]
        %559 = vst [vmem:[%s63 + $0x7b8] sm:$0xff] %v558
        %v560 = vld [vmem:[%s62 + $0x7c0] sm:$0xff]
        %561 = vst [vmem:[%s63 + $0x7c0] sm:$0xff] %v560
        %v562 = vld [vmem:[%s62 + $0x7c8] sm:$0xff]
        %563 = vst [vmem:[%s63 + $0x7c8] sm:$0xff] %v562
        %v564 = vld [vmem:[%s62 + $0x7d0] sm:$0xff]
        %565 = vst [vmem:[%s63 + $0x7d0] sm:$0xff] %v564
        %v566 = vld [vmem:[%s62 + $0x7d8] sm:$0xff]
        %567 = vst [vmem:[%s63 + $0x7d8] sm:$0xff] %v566
        %v568 = vld [vmem:[%s62 + $0x7e0] sm:$0xff]
        %569 = vst [vmem:[%s63 + $0x7e0] sm:$0xff] %v568
        %v570 = vld [vmem:[%s62 + $0x7e8] sm:$0xff]
        %571 = vst [vmem:[%s63 + $0x7e8] sm:$0xff] %v570
        %v572 = vld [vmem:[%s62 + $0x7f0] sm:$0xff]
        %573 = vst [vmem:[%s63 + $0x7f0] sm:$0xff] %v572
        %v574 = vld [vmem:[%s62 + $0x7f8] sm:$0xff]
        %575 = vst [vmem:[%s63 + $0x7f8] sm:$0xff] %v574
        %v576 = vld [vmem:[%s62 + $0x800] sm:$0xff]
        %577 = vst [vmem:[%s63 + $0x800] sm:$0xff] %v576
        %v578 = vld [vmem:[%s62 + $0x808] sm:$0xff]
        %579 = vst [vmem:[%s63 + $0x808] sm:$0xff] %v578
        %v580 = vld [vmem:[%s62 + $0x810] sm:$0xff]
        %581 = vst [vmem:[%s63 + $0x810] sm:$0xff] %v580
        %v582 = vld [vmem:[%s62 + $0x818] sm:$0xff]
        %583 = vst [vmem:[%s63 + $0x818] sm:$0xff] %v582
        %v584 = vld [vmem:[%s62 + $0x820] sm:$0xff]
        %585 = vst [vmem:[%s63 + $0x820] sm:$0xff] %v584
        %v586 = vld [vmem:[%s62 + $0x828] sm:$0xff]
        %587 = vst [vmem:[%s63 + $0x828] sm:$0xff] %v586
        %v588 = vld [vmem:[%s62 + $0x830] sm:$0xff]
        %589 = vst [vmem:[%s63 + $0x830] sm:$0xff] %v588
        %v590 = vld [vmem:[%s62 + $0x838] sm:$0xff]
        %591 = vst [vmem:[%s63 + $0x838] sm:$0xff] %v590
        %v592 = vld [vmem:[%s62 + $0x840] sm:$0xff]
        %593 = vst [vmem:[%s63 + $0x840] sm:$0xff] %v592
        %v594 = vld [vmem:[%s62 + $0x848] sm:$0xff]
        %595 = vst [vmem:[%s63 + $0x848] sm:$0xff] %v594
        %v596 = vld [vmem:[%s62 + $0x850] sm:$0xff]
        %597 = vst [vmem:[%s63 + $0x850] sm:$0xff] %v596
        %v598 = vld [vmem:[%s62 + $0x858] sm:$0xff]
        %599 = vst [vmem:[%s63 + $0x858] sm:$0xff] %v598
        %v600 = vld [vmem:[%s62 + $0x860] sm:$0xff]
        %601 = vst [vmem:[%s63 + $0x860] sm:$0xff] %v600
        %v602 = vld [vmem:[%s62 + $0x868] sm:$0xff]
        %603 = vst [vmem:[%s63 + $0x868] sm:$0xff] %v602
        %v604 = vld [vmem:[%s62 + $0x870] sm:$0xff]
        %605 = vst [vmem:[%s63 + $0x870] sm:$0xff] %v604
        %v606 = vld [vmem:[%s62 + $0x878] sm:$0xff]
        %607 = vst [vmem:[%s63 + $0x878] sm:$0xff] %v606
        %v608 = vld [vmem:[%s62 + $0x880] sm:$0xff]
        %609 = vst [vmem:[%s63 + $0x880] sm:$0xff] %v608
        %v610 = vld [vmem:[%s62 + $0x888] sm:$0xff]
        %611 = vst [vmem:[%s63 + $0x888] sm:$0xff] %v610
        %v612 = vld [vmem:[%s62 + $0x890] sm:$0xff]
        %613 = vst [vmem:[%s63 + $0x890] sm:$0xff] %v612
        %v614 = vld [vmem:[%s62 + $0x898] sm:$0xff]
        %615 = vst [vmem:[%s63 + $0x898] sm:$0xff] %v614
        %v616 = vld [vmem:[%s62 + $0x8a0] sm:$0xff]
        %617 = vst [vmem:[%s63 + $0x8a0] sm:$0xff] %v616
        %v618 = vld [vmem:[%s62 + $0x8a8] sm:$0xff]
        %619 = vst [vmem:[%s63 + $0x8a8] sm:$0xff] %v618
        %v620 = vld [vmem:[%s62 + $0x8b0] sm:$0xff]
        %621 = vst [vmem:[%s63 + $0x8b0] sm:$0xff] %v620
        %v622 = vld [vmem:[%s62 + $0x8b8] sm:$0xff]
        %623 = vst [vmem:[%s63 + $0x8b8] sm:$0xff] %v622
        %v624 = vld [vmem:[%s62 + $0x8c0] sm:$0xff]
        %625 = vst [vmem:[%s63 + $0x8c0] sm:$0xff] %v624
        %v626 = vld [vmem:[%s62 + $0x8c8] sm:$0xff]
        %627 = vst [vmem:[%s63 + $0x8c8] sm:$0xff] %v626
        %v628 = vld [vmem:[%s62 + $0x8d0] sm:$0xff]
        %629 = vst [vmem:[%s63 + $0x8d0] sm:$0xff] %v628
        %v630 = vld [vmem:[%s62 + $0x8d8] sm:$0xff]
        %631 = vst [vmem:[%s63 + $0x8d8] sm:$0xff] %v630
        %v632 = vld [vmem:[%s62 + $0x8e0] sm:$0xff]
        %633 = vst [vmem:[%s63 + $0x8e0] sm:$0xff] %v632
        %v634 = vld [vmem:[%s62 + $0x8e8] sm:$0xff]
        %635 = vst [vmem:[%s63 + $0x8e8] sm:$0xff] %v634
        %v636 = vld [vmem:[%s62 + $0x8f0] sm:$0xff]
        %637 = vst [vmem:[%s63 + $0x8f0] sm:$0xff] %v636
        %v638 = vld [vmem:[%s62 + $0x8f8] sm:$0xff]
        %639 = vst [vmem:[%s63 + $0x8f8] sm:$0xff] %v638
        %v640 = vld [vmem:[%s62 + $0x900] sm:$0xff]
        %641 = vst [vmem:[%s63 + $0x900] sm:$0xff] %v640
        %v642 = vld [vmem:[%s62 + $0x908] sm:$0xff]
        %643 = vst [vmem:[%s63 + $0x908] sm:$0xff] %v642
        %v644 = vld [vmem:[%s62 + $0x910] sm:$0xff]
        %645 = vst [vmem:[%s63 + $0x910] sm:$0xff] %v644
        %v646 = vld [vmem:[%s62 + $0x918] sm:$0xff]
        %647 = vst [vmem:[%s63 + $0x918] sm:$0xff] %v646
        %v648 = vld [vmem:[%s62 + $0x920] sm:$0xff]
        %649 = vst [vmem:[%s63 + $0x920] sm:$0xff] %v648
        %v650 = vld [vmem:[%s62 + $0x928] sm:$0xff]
        %651 = vst [vmem:[%s63 + $0x928] sm:$0xff] %v650
        %v652 = vld [vmem:[%s62 + $0x930] sm:$0xff]
        %653 = vst [vmem:[%s63 + $0x930] sm:$0xff] %v652
        %v654 = vld [vmem:[%s62 + $0x938] sm:$0xff]
        %655 = vst [vmem:[%s63 + $0x938] sm:$0xff] %v654
        %v656 = vld [vmem:[%s62 + $0x940] sm:$0xff]
        %657 = vst [vmem:[%s63 + $0x940] sm:$0xff] %v656
        %v658 = vld [vmem:[%s62 + $0x948] sm:$0xff]
        %659 = vst [vmem:[%s63 + $0x948] sm:$0xff] %v658
        %v660 = vld [vmem:[%s62 + $0x950] sm:$0xff]
        %661 = vst [vmem:[%s63 + $0x950] sm:$0xff] %v660
        %v662 = vld [vmem:[%s62 + $0x958] sm:$0xff]
        %663 = vst [vmem:[%s63 + $0x958] sm:$0xff] %v662
        %v664 = vld [vmem:[%s62 + $0x960] sm:$0xff]
        %665 = vst [vmem:[%s63 + $0x960] sm:$0xff] %v664
        %v666 = vld [vmem:[%s62 + $0x968] sm:$0xff]
        %667 = vst [vmem:[%s63 + $0x968] sm:$0xff] %v666
        %v668 = vld [vmem:[%s62 + $0x970] sm:$0xff]
        %669 = vst [vmem:[%s63 + $0x970] sm:$0xff] %v668
        %v670 = vld [vmem:[%s62 + $0x978] sm:$0xff]
        %671 = vst [vmem:[%s63 + $0x978] sm:$0xff] %v670
        %v672 = vld [vmem:[%s62 + $0x980] sm:$0xff]
        %673 = vst [vmem:[%s63 + $0x980] sm:$0xff] %v672
        %v674 = vld [vmem:[%s62 + $0x988] sm:$0xff]
        %675 = vst [vmem:[%s63 + $0x988] sm:$0xff] %v674
        %v676 = vld [vmem:[%s62 + $0x990] sm:$0xff]
        %677 = vst [vmem:[%s63 + $0x990] sm:$0xff] %v676
        %v678 = vld [vmem:[%s62 + $0x998] sm:$0xff]
        %679 = vst [vmem:[%s63 + $0x998] sm:$0xff] %v678
        %v680 = vld [vmem:[%s62 + $0x9a0] sm:$0xff]
        %681 = vst [vmem:[%s63 + $0x9a0] sm:$0xff] %v680
        %v682 = vld [vmem:[%s62 + $0x9a8] sm:$0xff]
        %683 = vst [vmem:[%s63 + $0x9a8] sm:$0xff] %v682
        %v684 = vld [vmem:[%s62 + $0x9b0] sm:$0xff]
        %685 = vst [vmem:[%s63 + $0x9b0] sm:$0xff] %v684
        %v686 = vld [vmem:[%s62 + $0x9b8] sm:$0xff]
        %687 = vst [vmem:[%s63 + $0x9b8] sm:$0xff] %v686
        %v688 = vld [vmem:[%s62 + $0x9c0] sm:$0xff]
        %689 = vst [vmem:[%s63 + $0x9c0] sm:$0xff] %v688
        %v690 = vld [vmem:[%s62 + $0x9c8] sm:$0xff]
        %691 = vst [vmem:[%s63 + $0x9c8] sm:$0xff] %v690
        %v692 = vld [vmem:[%s62 + $0x9d0] sm:$0xff]
        %693 = vst [vmem:[%s63 + $0x9d0] sm:$0xff] %v692
        %v694 = vld [vmem:[%s62 + $0x9d8] sm:$0xff]
        %695 = vst [vmem:[%s63 + $0x9d8] sm:$0xff] %v694
        %v696 = vld [vmem:[%s62 + $0x9e0] sm:$0xff]
        %697 = vst [vmem:[%s63 + $0x9e0] sm:$0xff] %v696
        %v698 = vld [vmem:[%s62 + $0x9e8] sm:$0xff]
        %699 = vst [vmem:[%s63 + $0x9e8] sm:$0xff] %v698
        %v700 = vld [vmem:[%s62 + $0x9f0] sm:$0xff]
        %701 = vst [vmem:[%s63 + $0x9f0] sm:$0xff] %v700
        %v702 = vld [vmem:[%s62 + $0x9f8] sm:$0xff]
        %703 = vst [vmem:[%s63 + $0x9f8] sm:$0xff] %v702
        %v704 = vld [vmem:[%s62 + $0xa00] sm:$0xff]
        %705 = vst [vmem:[%s63 + $0xa00] sm:$0xff] %v704
        %v706 = vld [vmem:[%s62 + $0xa08] sm:$0xff]
        %707 = vst [vmem:[%s63 + $0xa08] sm:$0xff] %v706
        %v708 = vld [vmem:[%s62 + $0xa10] sm:$0xff]
        %709 = vst [vmem:[%s63 + $0xa10] sm:$0xff] %v708
        %v710 = vld [vmem:[%s62 + $0xa18] sm:$0xff]
        %711 = vst [vmem:[%s63 + $0xa18] sm:$0xff] %v710
        %v712 = vld [vmem:[%s62 + $0xa20] sm:$0xff]
        %713 = vst [vmem:[%s63 + $0xa20] sm:$0xff] %v712
        %v714 = vld [vmem:[%s62 + $0xa28] sm:$0xff]
        %715 = vst [vmem:[%s63 + $0xa28] sm:$0xff] %v714
        %v716 = vld [vmem:[%s62 + $0xa30] sm:$0xff]
        %717 = vst [vmem:[%s63 + $0xa30] sm:$0xff] %v716
        %v718 = vld [vmem:[%s62 + $0xa38] sm:$0xff]
        %719 = vst [vmem:[%s63 + $0xa38] sm:$0xff] %v718
        %v720 = vld [vmem:[%s62 + $0xa40] sm:$0xff]
        %721 = vst [vmem:[%s63 + $0xa40] sm:$0xff] %v720
        %v722 = vld [vmem:[%s62 + $0xa48] sm:$0xff]
        %723 = vst [vmem:[%s63 + $0xa48] sm:$0xff] %v722
        %v724 = vld [vmem:[%s62 + $0xa50] sm:$0xff]
        %725 = vst [vmem:[%s63 + $0xa50] sm:$0xff] %v724
        %v726 = vld [vmem:[%s62 + $0xa58] sm:$0xff]
        %727 = vst [vmem:[%s63 + $0xa58] sm:$0xff] %v726
        %v728 = vld [vmem:[%s62 + $0xa60] sm:$0xff]
        %729 = vst [vmem:[%s63 + $0xa60] sm:$0xff] %v728
        %v730 = vld [vmem:[%s62 + $0xa68] sm:$0xff]
        %731 = vst [vmem:[%s63 + $0xa68] sm:$0xff] %v730
        %v732 = vld [vmem:[%s62 + $0xa70] sm:$0xff]
        %733 = vst [vmem:[%s63 + $0xa70] sm:$0xff] %v732
        %v734 = vld [vmem:[%s62 + $0xa78] sm:$0xff]
        %735 = vst [vmem:[%s63 + $0xa78] sm:$0xff] %v734
        %v736 = vld [vmem:[%s62 + $0xa80] sm:$0xff]
        %737 = vst [vmem:[%s63 + $0xa80] sm:$0xff] %v736
        %v738 = vld [vmem:[%s62 + $0xa88] sm:$0xff]
        %739 = vst [vmem:[%s63 + $0xa88] sm:$0xff] %v738
        %v740 = vld [vmem:[%s62 + $0xa90] sm:$0xff]
        %741 = vst [vmem:[%s63 + $0xa90] sm:$0xff] %v740
        %v742 = vld [vmem:[%s62 + $0xa98] sm:$0xff]
        %743 = vst [vmem:[%s63 + $0xa98] sm:$0xff] %v742
        %v744 = vld [vmem:[%s62 + $0xaa0] sm:$0xff]
        %745 = vst [vmem:[%s63 + $0xaa0] sm:$0xff] %v744
        %v746 = vld [vmem:[%s62 + $0xaa8] sm:$0xff]
        %747 = vst [vmem:[%s63 + $0xaa8] sm:$0xff] %v746
        %v748 = vld [vmem:[%s62 + $0xab0] sm:$0xff]
        %749 = vst [vmem:[%s63 + $0xab0] sm:$0xff] %v748
        %v750 = vld [vmem:[%s62 + $0xab8] sm:$0xff]
        %751 = vst [vmem:[%s63 + $0xab8] sm:$0xff] %v750
        %v752 = vld [vmem:[%s62 + $0xac0] sm:$0xff]
        %753 = vst [vmem:[%s63 + $0xac0] sm:$0xff] %v752
        %v754 = vld [vmem:[%s62 + $0xac8] sm:$0xff]
        %755 = vst [vmem:[%s63 + $0xac8] sm:$0xff] %v754
        %v756 = vld [vmem:[%s62 + $0xad0] sm:$0xff]
        %757 = vst [vmem:[%s63 + $0xad0] sm:$0xff] %v756
        %v758 = vld [vmem:[%s62 + $0xad8] sm:$0xff]
        %759 = vst [vmem:[%s63 + $0xad8] sm:$0xff] %v758
        %v760 = vld [vmem:[%s62 + $0xae0] sm:$0xff]
        %761 = vst [vmem:[%s63 + $0xae0] sm:$0xff] %v760
        %v762 = vld [vmem:[%s62 + $0xae8] sm:$0xff]
        %763 = vst [vmem:[%s63 + $0xae8] sm:$0xff] %v762
        %v764 = vld [vmem:[%s62 + $0xaf0] sm:$0xff]
        %765 = vst [vmem:[%s63 + $0xaf0] sm:$0xff] %v764
        %v766 = vld [vmem:[%s62 + $0xaf8] sm:$0xff]
        %767 = vst [vmem:[%s63 + $0xaf8] sm:$0xff] %v766
        %v768 = vld [vmem:[%s62 + $0xb00] sm:$0xff]
        %769 = vst [vmem:[%s63 + $0xb00] sm:$0xff] %v768
        %v770 = vld [vmem:[%s62 + $0xb08] sm:$0xff]
        %771 = vst [vmem:[%s63 + $0xb08] sm:$0xff] %v770
        %v772 = vld [vmem:[%s62 + $0xb10] sm:$0xff]
        %773 = vst [vmem:[%s63 + $0xb10] sm:$0xff] %v772
        %v774 = vld [vmem:[%s62 + $0xb18] sm:$0xff]
        %775 = vst [vmem:[%s63 + $0xb18] sm:$0xff] %v774
        %v776 = vld [vmem:[%s62 + $0xb20] sm:$0xff]
        %777 = vst [vmem:[%s63 + $0xb20] sm:$0xff] %v776
        %v778 = vld [vmem:[%s62 + $0xb28] sm:$0xff]
        %779 = vst [vmem:[%s63 + $0xb28] sm:$0xff] %v778
        %v780 = vld [vmem:[%s62 + $0xb30] sm:$0xff]
        %781 = vst [vmem:[%s63 + $0xb30] sm:$0xff] %v780
        %v782 = vld [vmem:[%s62 + $0xb38] sm:$0xff]
        %783 = vst [vmem:[%s63 + $0xb38] sm:$0xff] %v782
        %v784 = vld [vmem:[%s62 + $0xb40] sm:$0xff]
        %785 = vst [vmem:[%s63 + $0xb40] sm:$0xff] %v784
        %v786 = vld [vmem:[%s62 + $0xb48] sm:$0xff]
        %787 = vst [vmem:[%s63 + $0xb48] sm:$0xff] %v786
        %v788 = vld [vmem:[%s62 + $0xb50] sm:$0xff]
        %789 = vst [vmem:[%s63 + $0xb50] sm:$0xff] %v788
        %v790 = vld [vmem:[%s62 + $0xb58] sm:$0xff]
        %791 = vst [vmem:[%s63 + $0xb58] sm:$0xff] %v790
        %v792 = vld [vmem:[%s62 + $0xb60] sm:$0xff]
        %793 = vst [vmem:[%s63 + $0xb60] sm:$0xff] %v792
        %v794 = vld [vmem:[%s62 + $0xb68] sm:$0xff]
        %795 = vst [vmem:[%s63 + $0xb68] sm:$0xff] %v794
        %v796 = vld [vmem:[%s62 + $0xb70] sm:$0xff]
        %797 = vst [vmem:[%s63 + $0xb70] sm:$0xff] %v796
        %v798 = vld [vmem:[%s62 + $0xb78] sm:$0xff]
        %799 = vst [vmem:[%s63 + $0xb78] sm:$0xff] %v798
        %v800 = vld [vmem:[%s62 + $0xb80] sm:$0xff]
        %801 = vst [vmem:[%s63 + $0xb80] sm:$0xff] %v800
        %v802 = vld [vmem:[%s62 + $0xb88] sm:$0xff]
        %803 = vst [vmem:[%s63 + $0xb88] sm:$0xff] %v802
        %v804 = vld [vmem:[%s62 + $0xb90] sm:$0xff]
        %805 = vst [vmem:[%s63 + $0xb90] sm:$0xff] %v804
        %v806 = vld [vmem:[%s62 + $0xb98] sm:$0xff]
        %807 = vst [vmem:[%s63 + $0xb98] sm:$0xff] %v806
        %v808 = vld [vmem:[%s62 + $0xba0] sm:$0xff]
        %809 = vst [vmem:[%s63 + $0xba0] sm:$0xff] %v808
        %v810 = vld [vmem:[%s62 + $0xba8] sm:$0xff]
        %811 = vst [vmem:[%s63 + $0xba8] sm:$0xff] %v810
        %v812 = vld [vmem:[%s62 + $0xbb0] sm:$0xff]
        %813 = vst [vmem:[%s63 + $0xbb0] sm:$0xff] %v812
        %v814 = vld [vmem:[%s62 + $0xbb8] sm:$0xff]
        %815 = vst [vmem:[%s63 + $0xbb8] sm:$0xff] %v814
        %v816 = vld [vmem:[%s62 + $0xbc0] sm:$0xff]
        %817 = vst [vmem:[%s63 + $0xbc0] sm:$0xff] %v816
        %v818 = vld [vmem:[%s62 + $0xbc8] sm:$0xff]
        %819 = vst [vmem:[%s63 + $0xbc8] sm:$0xff] %v818
        %v820 = vld [vmem:[%s62 + $0xbd0] sm:$0xff]
        %821 = vst [vmem:[%s63 + $0xbd0] sm:$0xff] %v820
        %v822 = vld [vmem:[%s62 + $0xbd8] sm:$0xff]
        %823 = vst [vmem:[%s63 + $0xbd8] sm:$0xff] %v822
        %v824 = vld [vmem:[%s62 + $0xbe0] sm:$0xff]
        %825 = vst [vmem:[%s63 + $0xbe0] sm:$0xff] %v824
        %v826 = vld [vmem:[%s62 + $0xbe8] sm:$0xff]
        %827 = vst [vmem:[%s63 + $0xbe8] sm:$0xff] %v826
        %v828 = vld [vmem:[%s62 + $0xbf0] sm:$0xff]
        %829 = vst [vmem:[%s63 + $0xbf0] sm:$0xff] %v828
        %v830 = vld [vmem:[%s62 + $0xbf8] sm:$0xff]
        %831 = vst [vmem:[%s63 + $0xbf8] sm:$0xff] %v830
        %v832 = vld [vmem:[%s62 + $0xc00] sm:$0xff]
        %833 = vst [vmem:[%s63 + $0xc00] sm:$0xff] %v832
        %v834 = vld [vmem:[%s62 + $0xc08] sm:$0xff]
        %835 = vst [vmem:[%s63 + $0xc08] sm:$0xff] %v834
        %v836 = vld [vmem:[%s62 + $0xc10] sm:$0xff]
        %837 = vst [vmem:[%s63 + $0xc10] sm:$0xff] %v836
        %v838 = vld [vmem:[%s62 + $0xc18] sm:$0xff]
        %839 = vst [vmem:[%s63 + $0xc18] sm:$0xff] %v838
        %v840 = vld [vmem:[%s62 + $0xc20] sm:$0xff]
        %841 = vst [vmem:[%s63 + $0xc20] sm:$0xff] %v840
        %v842 = vld [vmem:[%s62 + $0xc28] sm:$0xff]
        %843 = vst [vmem:[%s63 + $0xc28] sm:$0xff] %v842
        %v844 = vld [vmem:[%s62 + $0xc30] sm:$0xff]
        %845 = vst [vmem:[%s63 + $0xc30] sm:$0xff] %v844
        %v846 = vld [vmem:[%s62 + $0xc38] sm:$0xff]
        %847 = vst [vmem:[%s63 + $0xc38] sm:$0xff] %v846
        %v848 = vld [vmem:[%s62 + $0xc40] sm:$0xff]
        %849 = vst [vmem:[%s63 + $0xc40] sm:$0xff] %v848
        %v850 = vld [vmem:[%s62 + $0xc48] sm:$0xff]
        %851 = vst [vmem:[%s63 + $0xc48] sm:$0xff] %v850
        %v852 = vld [vmem:[%s62 + $0xc50] sm:$0xff]
        %853 = vst [vmem:[%s63 + $0xc50] sm:$0xff] %v852
        %v854 = vld [vmem:[%s62 + $0xc58] sm:$0xff]
        %855 = vst [vmem:[%s63 + $0xc58] sm:$0xff] %v854
        %v856 = vld [vmem:[%s62 + $0xc60] sm:$0xff]
        %857 = vst [vmem:[%s63 + $0xc60] sm:$0xff] %v856
        %v858 = vld [vmem:[%s62 + $0xc68] sm:$0xff]
        %859 = vst [vmem:[%s63 + $0xc68] sm:$0xff] %v858
        %v860 = vld [vmem:[%s62 + $0xc70] sm:$0xff]
        %861 = vst [vmem:[%s63 + $0xc70] sm:$0xff] %v860
        %v862 = vld [vmem:[%s62 + $0xc78] sm:$0xff]
        %863 = vst [vmem:[%s63 + $0xc78] sm:$0xff] %v862
      $region57: #{deep_q_net_forward.1} parent=51 // loop_footer
        %s61 = sadd.s32 1, %s57
      $region58: #{deep_q_net_forward.1} parent=51 // loop_footer_branch
        %56 = sbr.rel target = $region54
      $region59: #{deep_q_net_forward.1} parent=51 // loop_exit
        _
    $region52: #{deep_q_net_forward.1} parent=36 // pred_fallthru
      _
    %p864 = pneg %p52
    // Predicated region
    $region60: #{deep_q_net_forward.1} parent=36 // pred_check
      _
    $region61: #{deep_q_net_forward.1} parent=36 // pred_check_branch
      %866 = sbr.rel (%p52) target = $region63
    $region62: #{deep_q_net_forward.1} parent=36 // pred_region
      %s867 = sand.u32 3200, 7
    $region63: #{deep_q_net_forward.1} parent=36 // pred_fallthru
      _
  $region37: #{deep_q_net_forward.1} parent=0 // pred_fallthru
    _
  // Predicated region
  $region38: #{deep_q_net_forward.1} parent=0 // pred_check
    %p36 = pneg %p32
  $region39: #{deep_q_net_forward.1} parent=0 // pred_check_branch
    %38 = sbr.rel (%p36) target = $region41
  $region40: #{deep_q_net_forward.1} parent=0 // pred_region
    %s39 = sshll.u32 1, 3200
    %s40 = ssub.s32 %s39, 1
    loop: start=0, step=1, limit=1
    $region42: #{deep_q_net_forward.1} parent=40 // loop_pre_header
      _
    $region43: #{deep_q_net_forward.1} parent=40 // loop_header
      %s42 = sphi 0, %s46
      %p43 = scmp.ge.s32.totalorder %s42, 1
      %s47 = sphi %s5, %s5
      %s48 = sphi [#allocation2], [#allocation2]
    $region44: #{deep_q_net_forward.1} parent=40 // loop_header_branch
      %45 = sbr.rel (%p43) target = $region48
    $region45: #{deep_q_net_forward.1} parent=40 // loop_body
      %v49 = vld [vmem:[%s47] sm:%s40]
      %50 = vst [vmem:[%s48] sm:%s40] %v49
    $region46: #{deep_q_net_forward.1} parent=40 // loop_footer
      %s46 = sadd.s32 1, %s42
    $region47: #{deep_q_net_forward.1} parent=40 // loop_footer_branch
      %41 = sbr.rel target = $region43
    $region48: #{deep_q_net_forward.1} parent=40 // loop_exit
      _
  $region41: #{deep_q_net_forward.1} parent=0 // pred_fallthru
    _
  // Predicated region
  $region64: #{deep_q_net_forward.1} parent=0 // pred_check
    _
  $region65: #{deep_q_net_forward.1} parent=0 // pred_check_branch
    %870 = sbr.rel (0) target = $region67
  $region66: #{deep_q_net_forward.1} parent=0 // pred_region
    %871 = vsyncadd [#allocation4], 51200
  $region67: #{deep_q_net_forward.1} parent=0 // pred_fallthru
    _
  %v872 = vld [vmem:[%s1] sm:$0xff]
  %v873 = vld [vmem:[%s1 + $0x8] sm:$0xff]
  %v874 = vld [vmem:[%s0] sm:$0xff]
  %v875 = vld [vmem:[%s0 + $0x8] sm:$0xff]
  %v876 = vld [vmem:[%s0 + $0x10] sm:$0xff]
  %v877 = vld [vmem:[%s0 + $0x18] sm:$0xff]
  %v878 = vld [vmem:[%s0 + $0x20] sm:$0xff]
  %v879 = vld [vmem:[%s0 + $0x28] sm:$0xff]
  %v880 = vld [vmem:[%s0 + $0x30] sm:$0xff]
  %v881 = vld [vmem:[%s0 + $0x38] sm:$0xff]
  %v882 = vld [vmem:[%s0 + $0x40] sm:$0xff]
  %v883 = vld [vmem:[%s0 + $0x48] sm:$0xff]
  %v884 = vld [vmem:[%s0 + $0x50] sm:$0xff]
  %v885 = vld [vmem:[%s0 + $0x58] sm:$0xff]
  %v886 = vld [vmem:[%s0 + $0x60] sm:$0xff]
  %v887 = vld [vmem:[%s0 + $0x68] sm:$0xff]
  %v888 = vld [vmem:[%s0 + $0x70] sm:$0xff]
  %v889 = vld [vmem:[%s0 + $0x78] sm:$0xff]
  %v890 = vld [vmem:[%s0 + $0x80] sm:$0xff]
  %v891 = vld [vmem:[%s0 + $0x88] sm:$0xff]
  %v892 = vld [vmem:[%s0 + $0x90] sm:$0xff]
  %v893 = vld [vmem:[%s0 + $0x98] sm:$0xff]
  %v894 = vld [vmem:[%s0 + $0xa0] sm:$0xff]
  %v895 = vld [vmem:[%s0 + $0xa8] sm:$0xff]
  %v896 = vld [vmem:[%s0 + $0xb0] sm:$0xff]
  %v897 = vld [vmem:[%s0 + $0xb8] sm:$0xff]
  %v898 = vld [vmem:[%s0 + $0xc0] sm:$0xff]
  %v899 = vld [vmem:[%s0 + $0xc8] sm:$0xff]
  %v900 = vld [vmem:[%s0 + $0xd0] sm:$0xff]
  %v901 = vld [vmem:[%s0 + $0xd8] sm:$0xff]
  %v902 = vld [vmem:[%s0 + $0xe0] sm:$0xff]
  %v903 = vld [vmem:[%s0 + $0xe8] sm:$0xff]
  %v904 = vld [vmem:[%s0 + $0xf0] sm:$0xff]
  %v905 = vld [vmem:[%s0 + $0xf8] sm:$0xff]
  %v906 = vld [vmem:[%s0 + $0x100] sm:$0xff]
  %v907 = vld [vmem:[%s0 + $0x108] sm:$0xff]
  %v908 = vld [vmem:[%s0 + $0x110] sm:$0xff]
  %v909 = vld [vmem:[%s0 + $0x118] sm:$0xff]
  %v910 = vld [vmem:[%s0 + $0x120] sm:$0xff]
  %v911 = vld [vmem:[%s0 + $0x128] sm:$0xff]
  %v912 = vld [vmem:[%s0 + $0x130] sm:$0xff]
  %v913 = vld [vmem:[%s0 + $0x138] sm:$0xff]
  %v914 = vld [vmem:[%s0 + $0x140] sm:$0xff]
  %v915 = vld [vmem:[%s0 + $0x148] sm:$0xff]
  %v916 = vld [vmem:[%s0 + $0x150] sm:$0xff]
  %v917 = vld [vmem:[%s0 + $0x158] sm:$0xff]
  %v918 = vld [vmem:[%s0 + $0x160] sm:$0xff]
  %v919 = vld [vmem:[%s0 + $0x168] sm:$0xff]
  %v920 = vld [vmem:[%s0 + $0x170] sm:$0xff]
  %v921 = vld [vmem:[%s0 + $0x178] sm:$0xff]
  %v922 = vld [vmem:[%s0 + $0x180] sm:$0xff]
  %v923 = vld [vmem:[%s0 + $0x188] sm:$0xff]
  %v924 = vld [vmem:[%s0 + $0x190] sm:$0xff]
  %v925 = vld [vmem:[%s0 + $0x198] sm:$0xff]
  %v926 = vld [vmem:[%s0 + $0x1a0] sm:$0xff]
  %v927 = vld [vmem:[%s0 + $0x1a8] sm:$0xff]
  %v928 = vld [vmem:[%s0 + $0x1b0] sm:$0xff]
  %v929 = vld [vmem:[%s0 + $0x1b8] sm:$0xff]
  %v930 = vld [vmem:[%s0 + $0x1c0] sm:$0xff]
  %v931 = vld [vmem:[%s0 + $0x1c8] sm:$0xff]
  %v932 = vld [vmem:[%s0 + $0x1d0] sm:$0xff]
  %v933 = vld [vmem:[%s0 + $0x1d8] sm:$0xff]
  %v934 = vld [vmem:[%s0 + $0x1e0] sm:$0xff]
  %v935 = vld [vmem:[%s0 + $0x1e8] sm:$0xff]
  %v936 = vld [vmem:[%s0 + $0x1f0] sm:$0xff]
  %v937 = vld [vmem:[%s0 + $0x1f8] sm:$0xff]
  %v938 = vld [vmem:[%s2] sm:$0xff]
  %v939 = vld [vmem:[%s2 + $0x8] sm:$0xff]
  %941 = vset.pattern.permute.xlu0 0
  %942 = vperm.xlu0 %941, %v938
  %v943 = vpop.permute.xlu0 %942
  %946 = vset.pattern.permute.xlu0 0
  %947 = vperm.xlu0 %946, %v939
  %v948 = vpop.permute.xlu0 %947
  %v952 = vunpack.c.l.b16 %v872
  %v953 = vunpack.c.h.b16 %v872
  %v954 = vunpack.c.l.b16 %v873
  %v955 = vunpack.c.h.b16 %v873
  %v956 = vpack.c.b16 %v954, %v952
  %v957 = vpack.c.b16 %v955, %v953
  %v1024 = vunpack.c.l.b16 %v874
  %v1025 = vunpack.c.h.b16 %v874
  %v1026 = vunpack.c.l.b16 %v875
  %v1027 = vunpack.c.h.b16 %v875
  %v1028 = vunpack.c.l.b16 %v876
  %v1029 = vunpack.c.h.b16 %v876
  %v1030 = vunpack.c.l.b16 %v877
  %v1031 = vunpack.c.h.b16 %v877
  %v1032 = vunpack.c.l.b16 %v878
  %v1033 = vunpack.c.h.b16 %v878
  %v1034 = vunpack.c.l.b16 %v879
  %v1035 = vunpack.c.h.b16 %v879
  %v1036 = vunpack.c.l.b16 %v880
  %v1037 = vunpack.c.h.b16 %v880
  %v1038 = vunpack.c.l.b16 %v881
  %v1039 = vunpack.c.h.b16 %v881
  %v1040 = vunpack.c.l.b16 %v882
  %v1041 = vunpack.c.h.b16 %v882
  %v1042 = vunpack.c.l.b16 %v883
  %v1043 = vunpack.c.h.b16 %v883
  %v1044 = vunpack.c.l.b16 %v884
  %v1045 = vunpack.c.h.b16 %v884
  %v1046 = vunpack.c.l.b16 %v885
  %v1047 = vunpack.c.h.b16 %v885
  %v1048 = vunpack.c.l.b16 %v886
  %v1049 = vunpack.c.h.b16 %v886
  %v1050 = vunpack.c.l.b16 %v887
  %v1051 = vunpack.c.h.b16 %v887
  %v1052 = vunpack.c.l.b16 %v888
  %v1053 = vunpack.c.h.b16 %v888
  %v1054 = vunpack.c.l.b16 %v889
  %v1055 = vunpack.c.h.b16 %v889
  %v1056 = vunpack.c.l.b16 %v890
  %v1057 = vunpack.c.h.b16 %v890
  %v1058 = vunpack.c.l.b16 %v891
  %v1059 = vunpack.c.h.b16 %v891
  %v1060 = vunpack.c.l.b16 %v892
  %v1061 = vunpack.c.h.b16 %v892
  %v1062 = vunpack.c.l.b16 %v893
  %v1063 = vunpack.c.h.b16 %v893
  %v1064 = vunpack.c.l.b16 %v894
  %v1065 = vunpack.c.h.b16 %v894
  %v1066 = vunpack.c.l.b16 %v895
  %v1067 = vunpack.c.h.b16 %v895
  %v1068 = vunpack.c.l.b16 %v896
  %v1069 = vunpack.c.h.b16 %v896
  %v1070 = vunpack.c.l.b16 %v897
  %v1071 = vunpack.c.h.b16 %v897
  %v1072 = vunpack.c.l.b16 %v898
  %v1073 = vunpack.c.h.b16 %v898
  %v1074 = vunpack.c.l.b16 %v899
  %v1075 = vunpack.c.h.b16 %v899
  %v1076 = vunpack.c.l.b16 %v900
  %v1077 = vunpack.c.h.b16 %v900
  %v1078 = vunpack.c.l.b16 %v901
  %v1079 = vunpack.c.h.b16 %v901
  %v1080 = vunpack.c.l.b16 %v902
  %v1081 = vunpack.c.h.b16 %v902
  %v1082 = vunpack.c.l.b16 %v903
  %v1083 = vunpack.c.h.b16 %v903
  %v1084 = vunpack.c.l.b16 %v904
  %v1085 = vunpack.c.h.b16 %v904
  %v1086 = vunpack.c.l.b16 %v905
  %v1087 = vunpack.c.h.b16 %v905
  %v1088 = vunpack.c.l.b16 %v906
  %v1089 = vunpack.c.h.b16 %v906
  %v1090 = vunpack.c.l.b16 %v907
  %v1091 = vunpack.c.h.b16 %v907
  %v1092 = vunpack.c.l.b16 %v908
  %v1093 = vunpack.c.h.b16 %v908
  %v1094 = vunpack.c.l.b16 %v909
  %v1095 = vunpack.c.h.b16 %v909
  %v1096 = vunpack.c.l.b16 %v910
  %v1097 = vunpack.c.h.b16 %v910
  %v1098 = vunpack.c.l.b16 %v911
  %v1099 = vunpack.c.h.b16 %v911
  %v1100 = vunpack.c.l.b16 %v912
  %v1101 = vunpack.c.h.b16 %v912
  %v1102 = vunpack.c.l.b16 %v913
  %v1103 = vunpack.c.h.b16 %v913
  %v1104 = vunpack.c.l.b16 %v914
  %v1105 = vunpack.c.h.b16 %v914
  %v1106 = vunpack.c.l.b16 %v915
  %v1107 = vunpack.c.h.b16 %v915
  %v1108 = vunpack.c.l.b16 %v916
  %v1109 = vunpack.c.h.b16 %v916
  %v1110 = vunpack.c.l.b16 %v917
  %v1111 = vunpack.c.h.b16 %v917
  %v1112 = vunpack.c.l.b16 %v918
  %v1113 = vunpack.c.h.b16 %v918
  %v1114 = vunpack.c.l.b16 %v919
  %v1115 = vunpack.c.h.b16 %v919
  %v1116 = vunpack.c.l.b16 %v920
  %v1117 = vunpack.c.h.b16 %v920
  %v1118 = vunpack.c.l.b16 %v921
  %v1119 = vunpack.c.h.b16 %v921
  %v1120 = vunpack.c.l.b16 %v922
  %v1121 = vunpack.c.h.b16 %v922
  %v1122 = vunpack.c.l.b16 %v923
  %v1123 = vunpack.c.h.b16 %v923
  %v1124 = vunpack.c.l.b16 %v924
  %v1125 = vunpack.c.h.b16 %v924
  %v1126 = vunpack.c.l.b16 %v925
  %v1127 = vunpack.c.h.b16 %v925
  %v1128 = vunpack.c.l.b16 %v926
  %v1129 = vunpack.c.h.b16 %v926
  %v1130 = vunpack.c.l.b16 %v927
  %v1131 = vunpack.c.h.b16 %v927
  %v1132 = vunpack.c.l.b16 %v928
  %v1133 = vunpack.c.h.b16 %v928
  %v1134 = vunpack.c.l.b16 %v929
  %v1135 = vunpack.c.h.b16 %v929
  %v1136 = vunpack.c.l.b16 %v930
  %v1137 = vunpack.c.h.b16 %v930
  %v1138 = vunpack.c.l.b16 %v931
  %v1139 = vunpack.c.h.b16 %v931
  %v1140 = vunpack.c.l.b16 %v932
  %v1141 = vunpack.c.h.b16 %v932
  %v1142 = vunpack.c.l.b16 %v933
  %v1143 = vunpack.c.h.b16 %v933
  %v1144 = vunpack.c.l.b16 %v934
  %v1145 = vunpack.c.h.b16 %v934
  %v1146 = vunpack.c.l.b16 %v935
  %v1147 = vunpack.c.h.b16 %v935
  %v1148 = vunpack.c.l.b16 %v936
  %v1149 = vunpack.c.h.b16 %v936
  %v1150 = vunpack.c.l.b16 %v937
  %v1151 = vunpack.c.h.b16 %v937
  %v1152 = vpack.c.b16 %v1028, %v1024
  %v1153 = vpack.c.b16 %v1029, %v1025
  %v1154 = vpack.c.b16 %v1030, %v1026
  %v1155 = vpack.c.b16 %v1031, %v1027
  %v1156 = vpack.c.b16 %v1036, %v1032
  %v1157 = vpack.c.b16 %v1037, %v1033
  %v1158 = vpack.c.b16 %v1038, %v1034
  %v1159 = vpack.c.b16 %v1039, %v1035
  %v1160 = vpack.c.b16 %v1044, %v1040
  %v1161 = vpack.c.b16 %v1045, %v1041
  %v1162 = vpack.c.b16 %v1046, %v1042
  %v1163 = vpack.c.b16 %v1047, %v1043
  %v1164 = vpack.c.b16 %v1052, %v1048
  %v1165 = vpack.c.b16 %v1053, %v1049
  %v1166 = vpack.c.b16 %v1054, %v1050
  %v1167 = vpack.c.b16 %v1055, %v1051
  %v1168 = vpack.c.b16 %v1060, %v1056
  %v1169 = vpack.c.b16 %v1061, %v1057
  %v1170 = vpack.c.b16 %v1062, %v1058
  %v1171 = vpack.c.b16 %v1063, %v1059
  %v1172 = vpack.c.b16 %v1068, %v1064
  %v1173 = vpack.c.b16 %v1069, %v1065
  %v1174 = vpack.c.b16 %v1070, %v1066
  %v1175 = vpack.c.b16 %v1071, %v1067
  %v1176 = vpack.c.b16 %v1076, %v1072
  %v1177 = vpack.c.b16 %v1077, %v1073
  %v1178 = vpack.c.b16 %v1078, %v1074
  %v1179 = vpack.c.b16 %v1079, %v1075
  %v1180 = vpack.c.b16 %v1084, %v1080
  %v1181 = vpack.c.b16 %v1085, %v1081
  %v1182 = vpack.c.b16 %v1086, %v1082
  %v1183 = vpack.c.b16 %v1087, %v1083
  %v1184 = vpack.c.b16 %v1092, %v1088
  %v1185 = vpack.c.b16 %v1093, %v1089
  %v1186 = vpack.c.b16 %v1094, %v1090
  %v1187 = vpack.c.b16 %v1095, %v1091
  %v1188 = vpack.c.b16 %v1100, %v1096
  %v1189 = vpack.c.b16 %v1101, %v1097
  %v1190 = vpack.c.b16 %v1102, %v1098
  %v1191 = vpack.c.b16 %v1103, %v1099
  %v1192 = vpack.c.b16 %v1108, %v1104
  %v1193 = vpack.c.b16 %v1109, %v1105
  %v1194 = vpack.c.b16 %v1110, %v1106
  %v1195 = vpack.c.b16 %v1111, %v1107
  %v1196 = vpack.c.b16 %v1116, %v1112
  %v1197 = vpack.c.b16 %v1117, %v1113
  %v1198 = vpack.c.b16 %v1118, %v1114
  %v1199 = vpack.c.b16 %v1119, %v1115
  %v1200 = vpack.c.b16 %v1124, %v1120
  %v1201 = vpack.c.b16 %v1125, %v1121
  %v1202 = vpack.c.b16 %v1126, %v1122
  %v1203 = vpack.c.b16 %v1127, %v1123
  %v1204 = vpack.c.b16 %v1132, %v1128
  %v1205 = vpack.c.b16 %v1133, %v1129
  %v1206 = vpack.c.b16 %v1134, %v1130
  %v1207 = vpack.c.b16 %v1135, %v1131
  %v1208 = vpack.c.b16 %v1140, %v1136
  %v1209 = vpack.c.b16 %v1141, %v1137
  %v1210 = vpack.c.b16 %v1142, %v1138
  %v1211 = vpack.c.b16 %v1143, %v1139
  %v1212 = vpack.c.b16 %v1148, %v1144
  %v1213 = vpack.c.b16 %v1149, %v1145
  %v1214 = vpack.c.b16 %v1150, %v1146
  %v1215 = vpack.c.b16 %v1151, %v1147
  %1280 = vmatprep.subr.bf16.mxu0 %v1181
  %1281 = vmatpush1.bf16.msra.mxu0 %v1180
  %1282 = vmatprep.subr.bf16.mxu0 %v1177
  %1283 = vmatpush1.bf16.msra.mxu0 %v1176
  %1284 = vmatprep.subr.bf16.mxu0 %v1173
  %1285 = vmatpush1.bf16.msra.mxu0 %v1172
  %1286 = vmatprep.subr.bf16.mxu0 %v1169
  %1287 = vmatpush1.bf16.msra.mxu0 %v1168
  %1288 = vmatprep.subr.bf16.mxu0 %v1165
  %1289 = vmatpush1.bf16.msra.mxu0 %v1164
  %1290 = vmatprep.subr.bf16.mxu0 %v1161
  %1291 = vmatpush1.bf16.msra.mxu0 %v1160
  %1292 = vmatprep.subr.bf16.mxu0 %v1157
  %1293 = vmatpush1.bf16.msra.mxu0 %v1156
  %1294 = vmatprep.subr.bf16.mxu0 %v1153
  %1295 = vmatpush1.bf16.msra.mxu0 %v1152
  %1296 = vmatprep.subr.bf16.mxu0 %v1213
  %1297 = vmatpush2.bf16.msra.mxu0 %v1212
  %1298 = vmatprep.subr.bf16.mxu0 %v1209
  %1299 = vmatpush2.bf16.msra.mxu0 %v1208
  %1300 = vmatprep.subr.bf16.mxu0 %v1205
  %1301 = vmatpush2.bf16.msra.mxu0 %v1204
  %1302 = vmatprep.subr.bf16.mxu0 %v1201
  %1303 = vmatpush2.bf16.msra.mxu0 %v1200
  %1304 = vmatprep.subr.bf16.mxu0 %v1197
  %1305 = vmatpush2.bf16.msra.mxu0 %v1196
  %1306 = vmatprep.subr.bf16.mxu0 %v1193
  %1307 = vmatpush2.bf16.msra.mxu0 %v1192
  %1308 = vmatprep.subr.bf16.mxu0 %v1189
  %1309 = vmatpush2.bf16.msra.mxu0 %v1188
  %1310 = vmatprep.subr.bf16.mxu0 %v1185
  %1311 = vmatpush2.bf16.msra.mxu0 %v1184
  %1312 = vmatprep.mubr.bf16.mxu0 %v957
  %1313 = vmatmul.mubr.bf16.gmra.mxu0 %v956
  %v1314 = vpop.f32.mrf.mxu0
  %v1315 = vadd.f32 %v943, %v1314
  %v1316 = vpop.f32.mrf.mxu0
  %v1317 = vadd.f32 %v943, %v1316
  %v1318 = vpop.f32.mrf.mxu0
  %v1319 = vadd.f32 %v948, %v1318
  %v1320 = vpop.f32.mrf.mxu0
  %v1321 = vadd.f32 %v948, %v1320
  %1322 = vdwg.mxu0
  %1323 = vmatprep.subr.bf16.mxu0 %v1183
  %1324 = vmatpush1.bf16.msra.mxu0 %v1182
  %1325 = vmatprep.subr.bf16.mxu0 %v1179
  %1326 = vmatpush1.bf16.msra.mxu0 %v1178
  %1327 = vmatprep.subr.bf16.mxu0 %v1175
  %1328 = vmatpush1.bf16.msra.mxu0 %v1174
  %1329 = vmatprep.subr.bf16.mxu0 %v1171
  %1330 = vmatpush1.bf16.msra.mxu0 %v1170
  %1331 = vmatprep.subr.bf16.mxu0 %v1167
  %1332 = vmatpush1.bf16.msra.mxu0 %v1166
  %1333 = vmatprep.subr.bf16.mxu0 %v1163
  %1334 = vmatpush1.bf16.msra.mxu0 %v1162
  %1335 = vmatprep.subr.bf16.mxu0 %v1159
  %1336 = vmatpush1.bf16.msra.mxu0 %v1158
  %1337 = vmatprep.subr.bf16.mxu0 %v1155
  %1338 = vmatpush1.bf16.msra.mxu0 %v1154
  %1339 = vmatprep.subr.bf16.mxu0 %v1215
  %1340 = vmatpush2.bf16.msra.mxu0 %v1214
  %1341 = vmatprep.subr.bf16.mxu0 %v1211
  %1342 = vmatpush2.bf16.msra.mxu0 %v1210
  %1343 = vmatprep.subr.bf16.mxu0 %v1207
  %1344 = vmatpush2.bf16.msra.mxu0 %v1206
  %1345 = vmatprep.subr.bf16.mxu0 %v1203
  %1346 = vmatpush2.bf16.msra.mxu0 %v1202
  %1347 = vmatprep.subr.bf16.mxu0 %v1199
  %1348 = vmatpush2.bf16.msra.mxu0 %v1198
  %1349 = vmatprep.subr.bf16.mxu0 %v1195
  %1350 = vmatpush2.bf16.msra.mxu0 %v1194
  %1351 = vmatprep.subr.bf16.mxu0 %v1191
  %1352 = vmatpush2.bf16.msra.mxu0 %v1190
  %1353 = vmatprep.subr.bf16.mxu0 %v1187
  %1354 = vmatpush2.bf16.msra.mxu0 %v1186
  %1355 = vmatprep.mubr.bf16.mxu0 %v957
  %1356 = vmatmul.mubr.bf16.gmra.mxu0 %v956
  %v1357 = vpop.f32.mrf.mxu0
  %v1358 = vadd.f32 %v943, %v1357
  %v1359 = vpop.f32.mrf.mxu0
  %v1360 = vadd.f32 %v943, %v1359
  %v1361 = vpop.f32.mrf.mxu0
  %v1362 = vadd.f32 %v948, %v1361
  %v1363 = vpop.f32.mrf.mxu0
  %v1364 = vadd.f32 %v948, %v1363
  %1365 = vdwg.mxu0
  %v1366 = vmax.f32 %v1315, 0.0
  %v1367 = vmax.f32 %v1317, 0.0
  %v1368 = vmax.f32 %v1358, 0.0
  %v1369 = vmax.f32 %v1360, 0.0
  %v1370 = vmax.f32 %v1319, 0.0
  %v1371 = vmax.f32 %v1321, 0.0
  %v1372 = vmax.f32 %v1362, 0.0
  %v1373 = vmax.f32 %v1364, 0.0
  %v1374 = vpack.c.bf16 %v1370, %v1366
  %v1375 = vpack.c.bf16 %v1371, %v1367
  %v1376 = vpack.c.bf16 %v1372, %v1368
  %v1377 = vpack.c.bf16 %v1373, %v1369
  %1379 = vrot.lane.b32.xlu0 %v1374, 127
  %v1380 = vpop.permute.xlu0 %1379
  %1382 = vrot.lane.b32.xlu0 %v1374, 118
  %v1383 = vpop.permute.xlu0 %1382
  %1385 = vrot.lane.b32.xlu0 %v1374, 117
  %v1386 = vpop.permute.xlu0 %1385
  %1389 = vrot.lane.b32.xlu0 %v1375, 127
  %v1390 = vpop.permute.xlu0 %1389
  %1392 = vrot.lane.b32.xlu0 %v1375, 118
  %v1393 = vpop.permute.xlu0 %1392
  %1395 = vrot.lane.b32.xlu0 %v1375, 117
  %v1396 = vpop.permute.xlu0 %1395
  %1399 = vrot.lane.b32.xlu0 %v1376, 127
  %v1400 = vpop.permute.xlu0 %1399
  %1402 = vrot.lane.b32.xlu0 %v1376, 118
  %v1403 = vpop.permute.xlu0 %1402
  %1405 = vrot.lane.b32.xlu0 %v1376, 117
  %v1406 = vpop.permute.xlu0 %1405
  %1409 = vrot.lane.b32.xlu0 %v1377, 127
  %v1410 = vpop.permute.xlu0 %1409
  %1412 = vrot.lane.b32.xlu0 %v1377, 118
  %v1413 = vpop.permute.xlu0 %1412
  %1415 = vrot.lane.b32.xlu0 %v1377, 117
  %v1416 = vpop.permute.xlu0 %1415
  %v1418 = vld [vmem:[%s3] sm:$0xff]
  %v1419 = vld [vmem:[%s3 + $0x8] sm:$0xff]
  %v1420 = vld [vmem:[%s3 + $0x10] sm:$0xff]
  %v1421 = vld [vmem:[%s3 + $0x18] sm:$0xff]
  %v1422 = vld [vmem:[%s4] sm:$0xff]
  %v1423 = vld [vmem:[%s4 + $0x8] sm:$0xff]
  %v1424 = vld [vmem:[%s4 + $0x10] sm:$0xff]
  %v1425 = vld [vmem:[%s4 + $0x18] sm:$0xff]
  %1427 = vset.pattern.permute.xlu0 0
  %1428 = vperm.xlu0 %1427, %v1422
  %v1429 = vpop.permute.xlu0 %1428
  %1432 = vset.pattern.permute.xlu0 0
  %1433 = vperm.xlu0 %1432, %v1423
  %v1434 = vpop.permute.xlu0 %1433
  %1437 = vset.pattern.permute.xlu0 0
  %1438 = vperm.xlu0 %1437, %v1424
  %v1439 = vpop.permute.xlu0 %1438
  %1442 = vset.pattern.permute.xlu0 0
  %1443 = vperm.xlu0 %1442, %v1425
  %v1444 = vpop.permute.xlu0 %1443
  %v1450 = vunpack.c.l.b16 %v1418
  %v1451 = vunpack.c.h.b16 %v1418
  %v1452 = vunpack.c.l.b16 %v1419
  %v1453 = vunpack.c.h.b16 %v1419
  %v1454 = vunpack.c.l.b16 %v1420
  %v1455 = vunpack.c.h.b16 %v1420
  %v1456 = vunpack.c.l.b16 %v1421
  %v1457 = vunpack.c.h.b16 %v1421
  %v1458 = vpack.c.b16 %v1452, %v1450
  %v1459 = vpack.c.b16 %v1453, %v1451
  %v1460 = vpack.c.b16 %v1456, %v1454
  %v1461 = vpack.c.b16 %v1457, %v1455
  %1466 = vmatprep.subr.bf16.mxu0 0
  %1467 = vmatpush1.bf16.msra.mxu0 %v1396
  %1468 = vmatprep.subr.bf16.mxu0 0
  %1469 = vmatpush1.bf16.msra.mxu0 %v1393
  %1470 = vmatprep.subr.bf16.mxu0 0
  %1471 = vmatpush1.bf16.msra.mxu0 %v1390
  %1472 = vmatprep.subr.bf16.mxu0 0
  %1473 = vmatpush1.bf16.msra.mxu0 %v1375
  %1474 = vmatprep.subr.bf16.mxu0 0
  %1475 = vmatpush1.bf16.msra.mxu0 %v1386
  %1476 = vmatprep.subr.bf16.mxu0 0
  %1477 = vmatpush1.bf16.msra.mxu0 %v1383
  %1478 = vmatprep.subr.bf16.mxu0 0
  %1479 = vmatpush1.bf16.msra.mxu0 %v1380
  %1480 = vmatprep.subr.bf16.mxu0 0
  %1481 = vmatpush1.bf16.msra.mxu0 %v1374
  %1482 = vmatprep.subr.bf16.mxu0 0
  %1483 = vmatpush2.bf16.msra.mxu0 %v1416
  %1484 = vmatprep.subr.bf16.mxu0 0
  %1485 = vmatpush2.bf16.msra.mxu0 %v1413
  %1486 = vmatprep.subr.bf16.mxu0 0
  %1487 = vmatpush2.bf16.msra.mxu0 %v1410
  %1488 = vmatprep.subr.bf16.mxu0 0
  %1489 = vmatpush2.bf16.msra.mxu0 %v1377
  %1490 = vmatprep.subr.bf16.mxu0 0
  %1491 = vmatpush2.bf16.msra.mxu0 %v1406
  %1492 = vmatprep.subr.bf16.mxu0 0
  %1493 = vmatpush2.bf16.msra.mxu0 %v1403
  %1494 = vmatprep.subr.bf16.mxu0 0
  %1495 = vmatpush2.bf16.msra.mxu0 %v1400
  %1496 = vmatprep.subr.bf16.mxu0 0
  %1497 = vmatpush2.bf16.msra.mxu0 %v1376
  %1498 = vmatprep.mubr.bf16.mxu0 %v1459
  %1499 = vmatmul.mubr.bf16.gmra.mxu0 %v1458
  %v1500 = vpop.f32.mrf.mxu0
  %v1501 = vadd.f32 %v1429, %v1500
  %v1502 = vpop.f32.mrf.mxu0
  %v1503 = vpop.f32.mrf.mxu0
  %v1504 = vadd.f32 %v1434, %v1503
  %v1505 = vpop.f32.mrf.mxu0
  %1506 = vmatprep.mubr.bf16.mxu0 %v1461
  %1507 = vmatmul.mubr.bf16.gmra.mxu0 %v1460
  %v1508 = vpop.f32.mrf.mxu0
  %v1509 = vadd.f32 %v1439, %v1508
  %v1510 = vpop.f32.mrf.mxu0
  %v1511 = vpop.f32.mrf.mxu0
  %v1512 = vadd.f32 %v1444, %v1511
  %v1513 = vpop.f32.mrf.mxu0
  %1514 = vdwg.mxu0
  %v1515 = vmax.f32 %v1501, 0.0
  %v1516 = vmax.f32 %v1504, 0.0
  %v1517 = vmax.f32 %v1509, 0.0
  %v1518 = vmax.f32 %v1512, 0.0
  %v1519 = vlaneseq
  %vm1520 = vcmp.ge.s32.totalorder %v1519, 0
  %vm1521 = vcmp.lt.s32.totalorder %v1519, 100
  %vm1522 = vmand %vm1520, %vm1521
  %1523 = vst.msk [vmem:[#allocation3] sm:$0x1] %vm1522, %v1515
  %v1526 = vunpack.c.l.s4 1966171168
  %v1527 = vunpack.c.0.s8 %v1526
  %v1528 = vlaneseq
  %v1529 = vshrl.u32 %v1528, 7
  %v1530 = vsub.s32 %v1527, %v1529
  %v1531 = vrot.slane %v1515, %v1530
  %v1532 = vcombine.high %v1531, %v1531
  %v1534 = vunpack.c.l.s4 1966171168
  %v1535 = vunpack.c.0.s8 %v1534
  %v1536 = vlaneseq
  %v1537 = vshrl.u32 %v1536, 7
  %v1538 = vsub.s32 %v1535, %v1537
  %v1539 = vrot.slane %v1531, %v1538
  %v1541 = vunpack.c.l.s4 1966171168
  %v1542 = vunpack.c.0.s8 %v1541
  %v1543 = vlaneseq
  %v1544 = vshrl.u32 %v1543, 7
  %v1545 = vsub.s32 %v1542, %v1544
  %v1546 = vrot.slane %v1532, %v1545
  %1547 = vrot.lane.b32.xlu0 %v1546, 100
  %v1548 = vpop.permute.xlu0 %1547
  %v1549 = vrot.slane %v1548, 7
  %vm1550 = vcmask 818176
  %v1551 = vsel %vm1550, %v1549, %v1548
  %vm1553 = vcmp.ge.s32.totalorder %v1519, 100
  %vm1554 = vcmp.lt.s32.totalorder %v1519, 200
  %vm1555 = vmand %vm1553, %vm1554
  %1556 = vst.msk [vmem:[#allocation3] sm:$0x3] %vm1555, %v1551
  %v1557 = vcombine.high %v1539, %v1539
  %1558 = vrot.lane.b32.xlu0 %v1557, 72
  %v1559 = vpop.permute.xlu0 %1558
  %v1560 = vrot.slane %v1559, 7
  %vm1561 = vcmask 588800
  %v1562 = vsel %vm1561, %v1560, %v1559
  %vm1564 = vcmp.ge.s32.totalorder %v1519, 72
  %vm1565 = vcmp.lt.s32.totalorder %v1519, 172
  %vm1566 = vmand %vm1564, %vm1565
  %1567 = vst.msk [vmem:[#allocation3 + $0x1] sm:$0x3] %vm1566, %v1562
  %v1568 = vcombine.high %v1546, %v1546
  %1569 = vrot.lane.b32.xlu0 %v1568, 44
  %v1570 = vpop.permute.xlu0 %1569
  %v1571 = vrot.slane %v1570, 7
  %vm1572 = vcmask 359424
  %v1573 = vsel %vm1572, %v1571, %v1570
  %vm1575 = vcmp.ge.s32.totalorder %v1519, 44
  %vm1576 = vcmp.lt.s32.totalorder %v1519, 144
  %vm1577 = vmand %vm1575, %vm1576
  %1578 = vst.msk [vmem:[#allocation3 + $0x2] sm:$0x3] %vm1577, %v1573
  %v1579 = vcombine.high %v1515, %v1515
  %v1581 = vunpack.c.l.s4 1966171168
  %v1582 = vunpack.c.0.s8 %v1581
  %v1583 = vlaneseq
  %v1584 = vshrl.u32 %v1583, 7
  %v1585 = vsub.s32 %v1582, %v1584
  %v1586 = vrot.slane %v1579, %v1585
  %v1588 = vunpack.c.l.s4 1966171168
  %v1589 = vunpack.c.0.s8 %v1588
  %v1590 = vlaneseq
  %v1591 = vshrl.u32 %v1590, 7
  %v1592 = vsub.s32 %v1589, %v1591
  %v1593 = vrot.slane %v1586, %v1592
  %1594 = vrot.lane.b32.xlu0 %v1593, 16
  %v1595 = vpop.permute.xlu0 %1594
  %vm1597 = vcmp.ge.s32.totalorder %v1519, 16
  %vm1598 = vcmp.lt.s32.totalorder %v1519, 116
  %vm1599 = vmand %vm1597, %vm1598
  %1600 = vst.msk [vmem:[#allocation3 + $0x3] sm:$0x1] %vm1599, %v1595
  %v1601 = vcombine.high %v1586, %v1586
  %v1603 = vunpack.c.l.s4 1966171168
  %v1604 = vunpack.c.0.s8 %v1603
  %v1605 = vlaneseq
  %v1606 = vshrl.u32 %v1605, 7
  %v1607 = vsub.s32 %v1604, %v1606
  %v1608 = vrot.slane %v1601, %v1607
  %1609 = vrot.lane.b32.xlu0 %v1608, 116
  %v1610 = vpop.permute.xlu0 %1609
  %v1611 = vrot.slane %v1610, 7
  %vm1612 = vcmask 949248
  %v1613 = vsel %vm1612, %v1611, %v1610
  %vm1615 = vcmp.ge.s32.totalorder %v1519, 116
  %vm1616 = vcmp.lt.s32.totalorder %v1519, 216
  %vm1617 = vmand %vm1615, %vm1616
  %1618 = vst.msk [vmem:[#allocation3 + $0x3] sm:$0x3] %vm1617, %v1613
  %v1619 = vcombine.high %v1593, %v1593
  %1620 = vrot.lane.b32.xlu0 %v1619, 88
  %v1621 = vpop.permute.xlu0 %1620
  %v1622 = vrot.slane %v1621, 7
  %vm1623 = vcmask 719872
  %v1624 = vsel %vm1623, %v1622, %v1621
  %vm1626 = vcmp.ge.s32.totalorder %v1519, 88
  %vm1627 = vcmp.lt.s32.totalorder %v1519, 188
  %vm1628 = vmand %vm1626, %vm1627
  %1629 = vst.msk [vmem:[#allocation3 + $0x4] sm:$0x3] %vm1628, %v1624
  %v1630 = vcombine.high %v1608, %v1608
  %1631 = vrot.lane.b32.xlu0 %v1630, 60
  %v1632 = vpop.permute.xlu0 %1631
  %v1633 = vrot.slane %v1632, 7
  %vm1634 = vcmask 490496
  %v1635 = vsel %vm1634, %v1633, %v1632
  %vm1637 = vcmp.ge.s32.totalorder %v1519, 60
  %vm1638 = vcmp.lt.s32.totalorder %v1519, 160
  %vm1639 = vmand %vm1637, %vm1638
  %1640 = vst.msk [vmem:[#allocation3 + $0x5] sm:$0x3] %vm1639, %v1635
  %v1643 = vunpack.c.l.s4 1966171168
  %v1644 = vunpack.c.0.s8 %v1643
  %v1645 = vlaneseq
  %v1646 = vshrl.u32 %v1645, 7
  %v1647 = vsub.s32 %v1644, %v1646
  %v1648 = vrot.slane %v1516, %v1647
  %v1650 = vunpack.c.l.s4 1966171168
  %v1651 = vunpack.c.0.s8 %v1650
  %v1652 = vlaneseq
  %v1653 = vshrl.u32 %v1652, 7
  %v1654 = vsub.s32 %v1651, %v1653
  %v1655 = vrot.slane %v1648, %v1654
  %1656 = vrot.lane.b32.xlu0 %v1655, 32
  %v1657 = vpop.permute.xlu0 %1656
  %v1658 = vrot.slane %v1657, 7
  %vm1659 = vcmask 261120
  %v1660 = vsel %vm1659, %v1658, %v1657
  %vm1662 = vcmp.ge.s32.totalorder %v1519, 32
  %vm1663 = vcmp.lt.s32.totalorder %v1519, 132
  %vm1664 = vmand %vm1662, %vm1663
  %1665 = vst.msk [vmem:[#allocation3 + $0x6] sm:$0x3] %vm1664, %v1660
  %v1666 = vcombine.high %v1648, %v1648
  %v1668 = vunpack.c.l.s4 1966171168
  %v1669 = vunpack.c.0.s8 %v1668
  %v1670 = vlaneseq
  %v1671 = vshrl.u32 %v1670, 7
  %v1672 = vsub.s32 %v1669, %v1671
  %v1673 = vrot.slane %v1666, %v1672
  %1674 = vrot.lane.b32.xlu0 %v1673, 4
  %v1675 = vpop.permute.xlu0 %1674
  %vm1677 = vcmp.ge.s32.totalorder %v1519, 4
  %vm1678 = vcmp.lt.s32.totalorder %v1519, 104
  %vm1679 = vmand %vm1677, %vm1678
  %1680 = vst.msk [vmem:[#allocation3 + $0x7] sm:$0x1] %vm1679, %v1675
  %v1681 = vcombine.high %v1655, %v1655
  %1682 = vrot.lane.b32.xlu0 %v1681, 104
  %v1683 = vpop.permute.xlu0 %1682
  %v1684 = vrot.slane %v1683, 7
  %vm1685 = vcmask 850944
  %v1686 = vsel %vm1685, %v1684, %v1683
  %vm1688 = vcmp.ge.s32.totalorder %v1519, 104
  %vm1689 = vcmp.lt.s32.totalorder %v1519, 204
  %vm1690 = vmand %vm1688, %vm1689
  %1691 = vst.msk [vmem:[#allocation3 + $0x7] sm:$0x3] %vm1690, %v1686
  %v1692 = vcombine.high %v1673, %v1673
  %1693 = vrot.lane.b32.xlu0 %v1692, 76
  %v1694 = vpop.permute.xlu0 %1693
  %v1695 = vrot.slane %v1694, 7
  %vm1696 = vcmask 621568
  %v1697 = vsel %vm1696, %v1695, %v1694
  %vm1699 = vcmp.ge.s32.totalorder %v1519, 76
  %vm1700 = vcmp.lt.s32.totalorder %v1519, 176
  %vm1701 = vmand %vm1699, %vm1700
  %1702 = vst.msk [vmem:[#allocation3 + $0x8] sm:$0x3] %vm1701, %v1697
  %v1703 = vcombine.high %v1516, %v1516
  %v1705 = vunpack.c.l.s4 1966171168
  %v1706 = vunpack.c.0.s8 %v1705
  %v1707 = vlaneseq
  %v1708 = vshrl.u32 %v1707, 7
  %v1709 = vsub.s32 %v1706, %v1708
  %v1710 = vrot.slane %v1703, %v1709
  %v1712 = vunpack.c.l.s4 1966171168
  %v1713 = vunpack.c.0.s8 %v1712
  %v1714 = vlaneseq
  %v1715 = vshrl.u32 %v1714, 7
  %v1716 = vsub.s32 %v1713, %v1715
  %v1717 = vrot.slane %v1710, %v1716
  %1718 = vrot.lane.b32.xlu0 %v1717, 48
  %v1719 = vpop.permute.xlu0 %1718
  %v1720 = vrot.slane %v1719, 7
  %vm1721 = vcmask 392192
  %v1722 = vsel %vm1721, %v1720, %v1719
  %vm1724 = vcmp.ge.s32.totalorder %v1519, 48
  %vm1725 = vcmp.lt.s32.totalorder %v1519, 148
  %vm1726 = vmand %vm1724, %vm1725
  %1727 = vst.msk [vmem:[#allocation3 + $0x9] sm:$0x3] %vm1726, %v1722
  %v1728 = vcombine.high %v1710, %v1710
  %v1730 = vunpack.c.l.s4 1966171168
  %v1731 = vunpack.c.0.s8 %v1730
  %v1732 = vlaneseq
  %v1733 = vshrl.u32 %v1732, 7
  %v1734 = vsub.s32 %v1731, %v1733
  %v1735 = vrot.slane %v1728, %v1734
  %1736 = vrot.lane.b32.xlu0 %v1735, 20
  %v1737 = vpop.permute.xlu0 %1736
  %vm1739 = vcmp.ge.s32.totalorder %v1519, 20
  %vm1740 = vcmp.lt.s32.totalorder %v1519, 120
  %vm1741 = vmand %vm1739, %vm1740
  %1742 = vst.msk [vmem:[#allocation3 + $0xa] sm:$0x1] %vm1741, %v1737
  %v1743 = vcombine.high %v1717, %v1717
  %1744 = vrot.lane.b32.xlu0 %v1743, 120
  %v1745 = vpop.permute.xlu0 %1744
  %v1746 = vrot.slane %v1745, 7
  %vm1747 = vcmask 982016
  %v1748 = vsel %vm1747, %v1746, %v1745
  %vm1750 = vcmp.ge.s32.totalorder %v1519, 120
  %vm1751 = vcmp.lt.s32.totalorder %v1519, 220
  %vm1752 = vmand %vm1750, %vm1751
  %1753 = vst.msk [vmem:[#allocation3 + $0xa] sm:$0x3] %vm1752, %v1748
  %v1754 = vcombine.high %v1735, %v1735
  %1755 = vrot.lane.b32.xlu0 %v1754, 92
  %v1756 = vpop.permute.xlu0 %1755
  %v1757 = vrot.slane %v1756, 7
  %vm1758 = vcmask 752640
  %v1759 = vsel %vm1758, %v1757, %v1756
  %vm1761 = vcmp.ge.s32.totalorder %v1519, 92
  %vm1762 = vcmp.lt.s32.totalorder %v1519, 192
  %vm1763 = vmand %vm1761, %vm1762
  %1764 = vst.msk [vmem:[#allocation3 + $0xb] sm:$0x3] %vm1763, %v1759
  %v1767 = vunpack.c.l.s4 1966171168
  %v1768 = vunpack.c.0.s8 %v1767
  %v1769 = vlaneseq
  %v1770 = vshrl.u32 %v1769, 7
  %v1771 = vsub.s32 %v1768, %v1770
  %v1772 = vrot.slane %v1517, %v1771
  %v1774 = vunpack.c.l.s4 1966171168
  %v1775 = vunpack.c.0.s8 %v1774
  %v1776 = vlaneseq
  %v1777 = vshrl.u32 %v1776, 7
  %v1778 = vsub.s32 %v1775, %v1777
  %v1779 = vrot.slane %v1772, %v1778
  %1780 = vrot.lane.b32.xlu0 %v1779, 64
  %v1781 = vpop.permute.xlu0 %1780
  %v1782 = vrot.slane %v1781, 7
  %vm1783 = vcmask 523264
  %v1784 = vsel %vm1783, %v1782, %v1781
  %vm1786 = vcmp.ge.s32.totalorder %v1519, 64
  %vm1787 = vcmp.lt.s32.totalorder %v1519, 164
  %vm1788 = vmand %vm1786, %vm1787
  %1789 = vst.msk [vmem:[#allocation3 + $0xc] sm:$0x3] %vm1788, %v1784
  %v1790 = vcombine.high %v1772, %v1772
  %v1792 = vunpack.c.l.s4 1966171168
  %v1793 = vunpack.c.0.s8 %v1792
  %v1794 = vlaneseq
  %v1795 = vshrl.u32 %v1794, 7
  %v1796 = vsub.s32 %v1793, %v1795
  %v1797 = vrot.slane %v1790, %v1796
  %1798 = vrot.lane.b32.xlu0 %v1797, 36
  %v1799 = vpop.permute.xlu0 %1798
  %v1800 = vrot.slane %v1799, 7
  %vm1801 = vcmask 293888
  %v1802 = vsel %vm1801, %v1800, %v1799
  %vm1804 = vcmp.ge.s32.totalorder %v1519, 36
  %vm1805 = vcmp.lt.s32.totalorder %v1519, 136
  %vm1806 = vmand %vm1804, %vm1805
  %1807 = vst.msk [vmem:[#allocation3 + $0xd] sm:$0x3] %vm1806, %v1802
  %v1808 = vcombine.high %v1779, %v1779
  %1809 = vrot.lane.b32.xlu0 %v1808, 8
  %v1810 = vpop.permute.xlu0 %1809
  %vm1812 = vcmp.ge.s32.totalorder %v1519, 8
  %vm1813 = vcmp.lt.s32.totalorder %v1519, 108
  %vm1814 = vmand %vm1812, %vm1813
  %1815 = vst.msk [vmem:[#allocation3 + $0xe] sm:$0x1] %vm1814, %v1810
  %v1816 = vcombine.high %v1797, %v1797
  %1817 = vrot.lane.b32.xlu0 %v1816, 108
  %v1818 = vpop.permute.xlu0 %1817
  %v1819 = vrot.slane %v1818, 7
  %vm1820 = vcmask 883712
  %v1821 = vsel %vm1820, %v1819, %v1818
  %vm1823 = vcmp.ge.s32.totalorder %v1519, 108
  %vm1824 = vcmp.lt.s32.totalorder %v1519, 208
  %vm1825 = vmand %vm1823, %vm1824
  %1826 = vst.msk [vmem:[#allocation3 + $0xe] sm:$0x3] %vm1825, %v1821
  %v1827 = vcombine.high %v1517, %v1517
  %v1829 = vunpack.c.l.s4 1966171168
  %v1830 = vunpack.c.0.s8 %v1829
  %v1831 = vlaneseq
  %v1832 = vshrl.u32 %v1831, 7
  %v1833 = vsub.s32 %v1830, %v1832
  %v1834 = vrot.slane %v1827, %v1833
  %v1836 = vunpack.c.l.s4 1966171168
  %v1837 = vunpack.c.0.s8 %v1836
  %v1838 = vlaneseq
  %v1839 = vshrl.u32 %v1838, 7
  %v1840 = vsub.s32 %v1837, %v1839
  %v1841 = vrot.slane %v1834, %v1840
  %1842 = vrot.lane.b32.xlu0 %v1841, 80
  %v1843 = vpop.permute.xlu0 %1842
  %v1844 = vrot.slane %v1843, 7
  %vm1845 = vcmask 654336
  %v1846 = vsel %vm1845, %v1844, %v1843
  %vm1848 = vcmp.ge.s32.totalorder %v1519, 80
  %vm1849 = vcmp.lt.s32.totalorder %v1519, 180
  %vm1850 = vmand %vm1848, %vm1849
  %1851 = vst.msk [vmem:[#allocation3 + $0xf] sm:$0x3] %vm1850, %v1846
  %v1852 = vcombine.high %v1834, %v1834
  %v1854 = vunpack.c.l.s4 1966171168
  %v1855 = vunpack.c.0.s8 %v1854
  %v1856 = vlaneseq
  %v1857 = vshrl.u32 %v1856, 7
  %v1858 = vsub.s32 %v1855, %v1857
  %v1859 = vrot.slane %v1852, %v1858
  %1860 = vrot.lane.b32.xlu0 %v1859, 52
  %v1861 = vpop.permute.xlu0 %1860
  %v1862 = vrot.slane %v1861, 7
  %vm1863 = vcmask 424960
  %v1864 = vsel %vm1863, %v1862, %v1861
  %vm1866 = vcmp.ge.s32.totalorder %v1519, 52
  %vm1867 = vcmp.lt.s32.totalorder %v1519, 152
  %vm1868 = vmand %vm1866, %vm1867
  %1869 = vst.msk [vmem:[#allocation3 + $0x10] sm:$0x3] %vm1868, %v1864
  %v1870 = vcombine.high %v1841, %v1841
  %1871 = vrot.lane.b32.xlu0 %v1870, 24
  %v1872 = vpop.permute.xlu0 %1871
  %vm1874 = vcmp.ge.s32.totalorder %v1519, 24
  %vm1875 = vcmp.lt.s32.totalorder %v1519, 124
  %vm1876 = vmand %vm1874, %vm1875
  %1877 = vst.msk [vmem:[#allocation3 + $0x11] sm:$0x1] %vm1876, %v1872
  %v1878 = vcombine.high %v1859, %v1859
  %1879 = vrot.lane.b32.xlu0 %v1878, 124
  %v1880 = vpop.permute.xlu0 %1879
  %v1881 = vrot.slane %v1880, 7
  %vm1882 = vcmask 1014784
  %v1883 = vsel %vm1882, %v1881, %v1880
  %vm1885 = vcmp.ge.s32.totalorder %v1519, 124
  %vm1886 = vcmp.lt.s32.totalorder %v1519, 224
  %vm1887 = vmand %vm1885, %vm1886
  %1888 = vst.msk [vmem:[#allocation3 + $0x11] sm:$0x3] %vm1887, %v1883
  %v1891 = vunpack.c.l.s4 1966171168
  %v1892 = vunpack.c.0.s8 %v1891
  %v1893 = vlaneseq
  %v1894 = vshrl.u32 %v1893, 7
  %v1895 = vsub.s32 %v1892, %v1894
  %v1896 = vrot.slane %v1518, %v1895
  %v1898 = vunpack.c.l.s4 1966171168
  %v1899 = vunpack.c.0.s8 %v1898
  %v1900 = vlaneseq
  %v1901 = vshrl.u32 %v1900, 7
  %v1902 = vsub.s32 %v1899, %v1901
  %v1903 = vrot.slane %v1896, %v1902
  %1904 = vrot.lane.b32.xlu0 %v1903, 96
  %v1905 = vpop.permute.xlu0 %1904
  %v1906 = vrot.slane %v1905, 7
  %vm1907 = vcmask 785408
  %v1908 = vsel %vm1907, %v1906, %v1905
  %vm1910 = vcmp.ge.s32.totalorder %v1519, 96
  %vm1911 = vcmp.lt.s32.totalorder %v1519, 196
  %vm1912 = vmand %vm1910, %vm1911
  %1913 = vst.msk [vmem:[#allocation3 + $0x12] sm:$0x3] %vm1912, %v1908
  %v1914 = vcombine.high %v1896, %v1896
  %v1916 = vunpack.c.l.s4 1966171168
  %v1917 = vunpack.c.0.s8 %v1916
  %v1918 = vlaneseq
  %v1919 = vshrl.u32 %v1918, 7
  %v1920 = vsub.s32 %v1917, %v1919
  %v1921 = vrot.slane %v1914, %v1920
  %1922 = vrot.lane.b32.xlu0 %v1921, 68
  %v1923 = vpop.permute.xlu0 %1922
  %v1924 = vrot.slane %v1923, 7
  %vm1925 = vcmask 556032
  %v1926 = vsel %vm1925, %v1924, %v1923
  %vm1928 = vcmp.ge.s32.totalorder %v1519, 68
  %vm1929 = vcmp.lt.s32.totalorder %v1519, 168
  %vm1930 = vmand %vm1928, %vm1929
  %1931 = vst.msk [vmem:[#allocation3 + $0x13] sm:$0x3] %vm1930, %v1926
  %v1932 = vcombine.high %v1903, %v1903
  %1933 = vrot.lane.b32.xlu0 %v1932, 40
  %v1934 = vpop.permute.xlu0 %1933
  %v1935 = vrot.slane %v1934, 7
  %vm1936 = vcmask 326656
  %v1937 = vsel %vm1936, %v1935, %v1934
  %vm1939 = vcmp.ge.s32.totalorder %v1519, 40
  %vm1940 = vcmp.lt.s32.totalorder %v1519, 140
  %vm1941 = vmand %vm1939, %vm1940
  %1942 = vst.msk [vmem:[#allocation3 + $0x14] sm:$0x3] %vm1941, %v1937
  %v1943 = vcombine.high %v1921, %v1921
  %1944 = vrot.lane.b32.xlu0 %v1943, 12
  %v1945 = vpop.permute.xlu0 %1944
  %vm1947 = vcmp.ge.s32.totalorder %v1519, 12
  %vm1948 = vcmp.lt.s32.totalorder %v1519, 112
  %vm1949 = vmand %vm1947, %vm1948
  %1950 = vst.msk [vmem:[#allocation3 + $0x15] sm:$0x1] %vm1949, %v1945
  %v1951 = vcombine.high %v1518, %v1518
  %v1953 = vunpack.c.l.s4 1966171168
  %v1954 = vunpack.c.0.s8 %v1953
  %v1955 = vlaneseq
  %v1956 = vshrl.u32 %v1955, 7
  %v1957 = vsub.s32 %v1954, %v1956
  %v1958 = vrot.slane %v1951, %v1957
  %v1960 = vunpack.c.l.s4 1966171168
  %v1961 = vunpack.c.0.s8 %v1960
  %v1962 = vlaneseq
  %v1963 = vshrl.u32 %v1962, 7
  %v1964 = vsub.s32 %v1961, %v1963
  %v1965 = vrot.slane %v1958, %v1964
  %1966 = vrot.lane.b32.xlu0 %v1965, 112
  %v1967 = vpop.permute.xlu0 %1966
  %v1968 = vrot.slane %v1967, 7
  %vm1969 = vcmask 916480
  %v1970 = vsel %vm1969, %v1968, %v1967
  %vm1972 = vcmp.ge.s32.totalorder %v1519, 112
  %vm1973 = vcmp.lt.s32.totalorder %v1519, 212
  %vm1974 = vmand %vm1972, %vm1973
  %1975 = vst.msk [vmem:[#allocation3 + $0x15] sm:$0x3] %vm1974, %v1970
  %v1976 = vcombine.high %v1958, %v1958
  %v1978 = vunpack.c.l.s4 1966171168
  %v1979 = vunpack.c.0.s8 %v1978
  %v1980 = vlaneseq
  %v1981 = vshrl.u32 %v1980, 7
  %v1982 = vsub.s32 %v1979, %v1981
  %v1983 = vrot.slane %v1976, %v1982
  %1984 = vrot.lane.b32.xlu0 %v1983, 84
  %v1985 = vpop.permute.xlu0 %1984
  %v1986 = vrot.slane %v1985, 7
  %vm1987 = vcmask 687104
  %v1988 = vsel %vm1987, %v1986, %v1985
  %vm1990 = vcmp.ge.s32.totalorder %v1519, 84
  %vm1991 = vcmp.lt.s32.totalorder %v1519, 184
  %vm1992 = vmand %vm1990, %vm1991
  %1993 = vst.msk [vmem:[#allocation3 + $0x16] sm:$0x3] %vm1992, %v1988
  %v1994 = vcombine.high %v1965, %v1965
  %1995 = vrot.lane.b32.xlu0 %v1994, 56
  %v1996 = vpop.permute.xlu0 %1995
  %v1997 = vrot.slane %v1996, 7
  %vm1998 = vcmask 457728
  %v1999 = vsel %vm1998, %v1997, %v1996
  %vm2001 = vcmp.ge.s32.totalorder %v1519, 56
  %vm2002 = vcmp.lt.s32.totalorder %v1519, 156
  %vm2003 = vmand %vm2001, %vm2002
  %2004 = vst.msk [vmem:[#allocation3 + $0x17] sm:$0x3] %vm2003, %v1999
  %v2005 = vcombine.high %v1983, %v1983
  %2006 = vrot.lane.b32.xlu0 %v2005, 28
  %v2007 = vpop.permute.xlu0 %2006
  %vm2009 = vcmp.ge.s32.totalorder %v1519, 28
  %vm2010 = vcmp.lt.s32.totalorder %v1519, 128
  %vm2011 = vmand %vm2009, %vm2010
  %2012 = vst.msk [vmem:[#allocation3 + $0x18] sm:$0x1] %vm2011, %v2007
  %s2013 = smul.u32 4, 400
  %s2014 = smul.u32 %s2013, 2
  %s2015 = sshll.u32 %s2014, 4
  %2016 = dma.done [#allocation4], %s2015
  %v2017 = vld [vmem:[#allocation3] sm:$0xff]
  %v2018 = vld [vmem:[#allocation3 + $0x8] sm:$0xff]
  %v2019 = vld [vmem:[#allocation3 + $0x10] sm:$0xff]
  %v2020 = vld [vmem:[#allocation3 + $0x18] sm:$0x1]
  %v2025 = vlaneseq
  %v2026 = vshrl.u32 %v2025, 7
  %v2027 = vsub.s32 0, %v2026
  %v2028 = vrot.slane %v2017, %v2027
  %v2029 = vlaneseq
  %v2030 = vshrl.u32 %v2029, 7
  %v2031 = vsub.s32 1, %v2030
  %v2032 = vrot.slane %v2017, %v2031
  %v2033 = vlaneseq
  %v2034 = vshrl.u32 %v2033, 7
  %v2035 = vsub.s32 2, %v2034
  %v2036 = vrot.slane %v2017, %v2035
  %v2037 = vlaneseq
  %v2038 = vshrl.u32 %v2037, 7
  %v2039 = vsub.s32 3, %v2038
  %v2040 = vrot.slane %v2017, %v2039
  %v2041 = vlaneseq
  %v2042 = vshrl.u32 %v2041, 7
  %v2043 = vsub.s32 4, %v2042
  %v2044 = vrot.slane %v2017, %v2043
  %v2045 = vlaneseq
  %v2046 = vshrl.u32 %v2045, 7
  %v2047 = vsub.s32 5, %v2046
  %v2048 = vrot.slane %v2017, %v2047
  %v2049 = vlaneseq
  %v2050 = vshrl.u32 %v2049, 7
  %v2051 = vsub.s32 6, %v2050
  %v2052 = vrot.slane %v2017, %v2051
  %v2053 = vlaneseq
  %v2054 = vshrl.u32 %v2053, 7
  %v2055 = vsub.s32 7, %v2054
  %v2056 = vrot.slane %v2017, %v2055
  %v2057 = vlaneseq
  %v2058 = vshrl.u32 %v2057, 7
  %v2059 = vsub.s32 0, %v2058
  %v2060 = vrot.slane %v2018, %v2059
  %v2061 = vlaneseq
  %v2062 = vshrl.u32 %v2061, 7
  %v2063 = vsub.s32 1, %v2062
  %v2064 = vrot.slane %v2018, %v2063
  %v2065 = vlaneseq
  %v2066 = vshrl.u32 %v2065, 7
  %v2067 = vsub.s32 2, %v2066
  %v2068 = vrot.slane %v2018, %v2067
  %v2069 = vlaneseq
  %v2070 = vshrl.u32 %v2069, 7
  %v2071 = vsub.s32 3, %v2070
  %v2072 = vrot.slane %v2018, %v2071
  %v2073 = vlaneseq
  %v2074 = vshrl.u32 %v2073, 7
  %v2075 = vsub.s32 4, %v2074
  %v2076 = vrot.slane %v2018, %v2075
  %v2077 = vlaneseq
  %v2078 = vshrl.u32 %v2077, 7
  %v2079 = vsub.s32 5, %v2078
  %v2080 = vrot.slane %v2018, %v2079
  %v2081 = vlaneseq
  %v2082 = vshrl.u32 %v2081, 7
  %v2083 = vsub.s32 6, %v2082
  %v2084 = vrot.slane %v2018, %v2083
  %v2085 = vlaneseq
  %v2086 = vshrl.u32 %v2085, 7
  %v2087 = vsub.s32 7, %v2086
  %v2088 = vrot.slane %v2018, %v2087
  %v2089 = vlaneseq
  %v2090 = vshrl.u32 %v2089, 7
  %v2091 = vsub.s32 0, %v2090
  %v2092 = vrot.slane %v2019, %v2091
  %v2093 = vlaneseq
  %v2094 = vshrl.u32 %v2093, 7
  %v2095 = vsub.s32 1, %v2094
  %v2096 = vrot.slane %v2019, %v2095
  %v2097 = vlaneseq
  %v2098 = vshrl.u32 %v2097, 7
  %v2099 = vsub.s32 2, %v2098
  %v2100 = vrot.slane %v2019, %v2099
  %v2101 = vlaneseq
  %v2102 = vshrl.u32 %v2101, 7
  %v2103 = vsub.s32 3, %v2102
  %v2104 = vrot.slane %v2019, %v2103
  %v2105 = vlaneseq
  %v2106 = vshrl.u32 %v2105, 7
  %v2107 = vsub.s32 4, %v2106
  %v2108 = vrot.slane %v2019, %v2107
  %v2109 = vlaneseq
  %v2110 = vshrl.u32 %v2109, 7
  %v2111 = vsub.s32 5, %v2110
  %v2112 = vrot.slane %v2019, %v2111
  %v2113 = vlaneseq
  %v2114 = vshrl.u32 %v2113, 7
  %v2115 = vsub.s32 6, %v2114
  %v2116 = vrot.slane %v2019, %v2115
  %v2117 = vlaneseq
  %v2118 = vshrl.u32 %v2117, 7
  %v2119 = vsub.s32 7, %v2118
  %v2120 = vrot.slane %v2019, %v2119
  %v2121 = vlaneseq
  %v2122 = vshrl.u32 %v2121, 7
  %v2123 = vsub.s32 0, %v2122
  %v2124 = vrot.slane %v2020, %v2123
  %v2150 = vpack.c.bf16 %v2028, %v2028
  %v2151 = vpack.c.bf16 %v2032, %v2032
  %v2152 = vpack.c.bf16 %v2036, %v2036
  %v2153 = vpack.c.bf16 %v2040, %v2040
  %v2154 = vpack.c.bf16 %v2044, %v2044
  %v2155 = vpack.c.bf16 %v2048, %v2048
  %v2156 = vpack.c.bf16 %v2052, %v2052
  %v2157 = vpack.c.bf16 %v2056, %v2056
  %v2158 = vpack.c.bf16 %v2060, %v2060
  %v2159 = vpack.c.bf16 %v2064, %v2064
  %v2160 = vpack.c.bf16 %v2068, %v2068
  %v2161 = vpack.c.bf16 %v2072, %v2072
  %v2162 = vpack.c.bf16 %v2076, %v2076
  %v2163 = vpack.c.bf16 %v2080, %v2080
  %v2164 = vpack.c.bf16 %v2084, %v2084
  %v2165 = vpack.c.bf16 %v2088, %v2088
  %v2166 = vpack.c.bf16 %v2092, %v2092
  %v2167 = vpack.c.bf16 %v2096, %v2096
  %v2168 = vpack.c.bf16 %v2100, %v2100
  %v2169 = vpack.c.bf16 %v2104, %v2104
  %v2170 = vpack.c.bf16 %v2108, %v2108
  %v2171 = vpack.c.bf16 %v2112, %v2112
  %v2172 = vpack.c.bf16 %v2116, %v2116
  %v2173 = vpack.c.bf16 %v2120, %v2120
  %v2174 = vpack.c.bf16 %v2124, %v2124
  %v2175 = vld [vmem:[#allocation2] sm:$0xff]
  %v2176 = vld [vmem:[#allocation2 + $0x8] sm:$0xff]
  %v2177 = vld [vmem:[#allocation2 + $0x10] sm:$0xff]
  %v2178 = vld [vmem:[#allocation2 + $0x18] sm:$0xff]
  %v2179 = vld [vmem:[#allocation2 + $0x20] sm:$0xff]
  %v2180 = vld [vmem:[#allocation2 + $0x28] sm:$0xff]
  %v2181 = vld [vmem:[#allocation2 + $0x30] sm:$0xff]
  %v2182 = vld [vmem:[#allocation2 + $0x38] sm:$0xff]
  %v2183 = vld [vmem:[#allocation2 + $0x40] sm:$0xff]
  %v2184 = vld [vmem:[#allocation2 + $0x48] sm:$0xff]
  %v2185 = vld [vmem:[#allocation2 + $0x50] sm:$0xff]
  %v2186 = vld [vmem:[#allocation2 + $0x58] sm:$0xff]
  %v2187 = vld [vmem:[#allocation2 + $0x60] sm:$0xff]
  %v2188 = vld [vmem:[#allocation2 + $0x68] sm:$0xff]
  %v2189 = vld [vmem:[#allocation2 + $0x70] sm:$0xff]
  %v2190 = vld [vmem:[#allocation2 + $0x78] sm:$0xff]
  %v2191 = vld [vmem:[#allocation2 + $0x80] sm:$0xff]
  %v2192 = vld [vmem:[#allocation2 + $0x88] sm:$0xff]
  %v2193 = vld [vmem:[#allocation2 + $0x90] sm:$0xff]
  %v2194 = vld [vmem:[#allocation2 + $0x98] sm:$0xff]
  %v2195 = vld [vmem:[#allocation2 + $0xa0] sm:$0xff]
  %v2196 = vld [vmem:[#allocation2 + $0xa8] sm:$0xff]
  %v2197 = vld [vmem:[#allocation2 + $0xb0] sm:$0xff]
  %v2198 = vld [vmem:[#allocation2 + $0xb8] sm:$0xff]
  %v2199 = vld [vmem:[#allocation2 + $0xc0] sm:$0xff]
  %v2200 = vld [vmem:[#allocation2 + $0xc8] sm:$0xff]
  %v2201 = vld [vmem:[#allocation2 + $0xd0] sm:$0xff]
  %v2202 = vld [vmem:[#allocation2 + $0xd8] sm:$0xff]
  %v2203 = vld [vmem:[#allocation2 + $0xe0] sm:$0xff]
  %v2204 = vld [vmem:[#allocation2 + $0xe8] sm:$0xff]
  %v2205 = vld [vmem:[#allocation2 + $0xf0] sm:$0xff]
  %v2206 = vld [vmem:[#allocation2 + $0xf8] sm:$0xff]
  %v2207 = vld [vmem:[#allocation2 + $0x100] sm:$0xff]
  %v2208 = vld [vmem:[#allocation2 + $0x108] sm:$0xff]
  %v2209 = vld [vmem:[#allocation2 + $0x110] sm:$0xff]
  %v2210 = vld [vmem:[#allocation2 + $0x118] sm:$0xff]
  %v2211 = vld [vmem:[#allocation2 + $0x120] sm:$0xff]
  %v2212 = vld [vmem:[#allocation2 + $0x128] sm:$0xff]
  %v2213 = vld [vmem:[#allocation2 + $0x130] sm:$0xff]
  %v2214 = vld [vmem:[#allocation2 + $0x138] sm:$0xff]
  %v2215 = vld [vmem:[#allocation2 + $0x140] sm:$0xff]
  %v2216 = vld [vmem:[#allocation2 + $0x148] sm:$0xff]
  %v2217 = vld [vmem:[#allocation2 + $0x150] sm:$0xff]
  %v2218 = vld [vmem:[#allocation2 + $0x158] sm:$0xff]
  %v2219 = vld [vmem:[#allocation2 + $0x160] sm:$0xff]
  %v2220 = vld [vmem:[#allocation2 + $0x168] sm:$0xff]
  %v2221 = vld [vmem:[#allocation2 + $0x170] sm:$0xff]
  %v2222 = vld [vmem:[#allocation2 + $0x178] sm:$0xff]
  %v2223 = vld [vmem:[#allocation2 + $0x180] sm:$0xff]
  %v2224 = vld [vmem:[#allocation2 + $0x188] sm:$0xff]
  %v2225 = vld [vmem:[#allocation2 + $0x190] sm:$0xff]
  %v2226 = vld [vmem:[#allocation2 + $0x198] sm:$0xff]
  %v2227 = vld [vmem:[#allocation2 + $0x1a0] sm:$0xff]
  %v2228 = vld [vmem:[#allocation2 + $0x1a8] sm:$0xff]
  %v2229 = vld [vmem:[#allocation2 + $0x1b0] sm:$0xff]
  %v2230 = vld [vmem:[#allocation2 + $0x1b8] sm:$0xff]
  %v2231 = vld [vmem:[#allocation2 + $0x1c0] sm:$0xff]
  %v2232 = vld [vmem:[#allocation2 + $0x1c8] sm:$0xff]
  %v2233 = vld [vmem:[#allocation2 + $0x1d0] sm:$0xff]
  %v2234 = vld [vmem:[#allocation2 + $0x1d8] sm:$0xff]
  %v2235 = vld [vmem:[#allocation2 + $0x1e0] sm:$0xff]
  %v2236 = vld [vmem:[#allocation2 + $0x1e8] sm:$0xff]
  %v2237 = vld [vmem:[#allocation2 + $0x1f0] sm:$0xff]
  %v2238 = vld [vmem:[#allocation2 + $0x1f8] sm:$0xff]
  %v2239 = vld [vmem:[#allocation2 + $0x200] sm:$0xff]
  %v2240 = vld [vmem:[#allocation2 + $0x208] sm:$0xff]
  %v2241 = vld [vmem:[#allocation2 + $0x210] sm:$0xff]
  %v2242 = vld [vmem:[#allocation2 + $0x218] sm:$0xff]
  %v2243 = vld [vmem:[#allocation2 + $0x220] sm:$0xff]
  %v2244 = vld [vmem:[#allocation2 + $0x228] sm:$0xff]
  %v2245 = vld [vmem:[#allocation2 + $0x230] sm:$0xff]
  %v2246 = vld [vmem:[#allocation2 + $0x238] sm:$0xff]
  %v2247 = vld [vmem:[#allocation2 + $0x240] sm:$0xff]
  %v2248 = vld [vmem:[#allocation2 + $0x248] sm:$0xff]
  %v2249 = vld [vmem:[#allocation2 + $0x250] sm:$0xff]
  %v2250 = vld [vmem:[#allocation2 + $0x258] sm:$0xff]
  %v2251 = vld [vmem:[#allocation2 + $0x260] sm:$0xff]
  %v2252 = vld [vmem:[#allocation2 + $0x268] sm:$0xff]
  %v2253 = vld [vmem:[#allocation2 + $0x270] sm:$0xff]
  %v2254 = vld [vmem:[#allocation2 + $0x278] sm:$0xff]
  %v2255 = vld [vmem:[#allocation2 + $0x280] sm:$0xff]
  %v2256 = vld [vmem:[#allocation2 + $0x288] sm:$0xff]
  %v2257 = vld [vmem:[#allocation2 + $0x290] sm:$0xff]
  %v2258 = vld [vmem:[#allocation2 + $0x298] sm:$0xff]
  %v2259 = vld [vmem:[#allocation2 + $0x2a0] sm:$0xff]
  %v2260 = vld [vmem:[#allocation2 + $0x2a8] sm:$0xff]
  %v2261 = vld [vmem:[#allocation2 + $0x2b0] sm:$0xff]
  %v2262 = vld [vmem:[#allocation2 + $0x2b8] sm:$0xff]
  %v2263 = vld [vmem:[#allocation2 + $0x2c0] sm:$0xff]
  %v2264 = vld [vmem:[#allocation2 + $0x2c8] sm:$0xff]
  %v2265 = vld [vmem:[#allocation2 + $0x2d0] sm:$0xff]
  %v2266 = vld [vmem:[#allocation2 + $0x2d8] sm:$0xff]
  %v2267 = vld [vmem:[#allocation2 + $0x2e0] sm:$0xff]
  %v2268 = vld [vmem:[#allocation2 + $0x2e8] sm:$0xff]
  %v2269 = vld [vmem:[#allocation2 + $0x2f0] sm:$0xff]
  %v2270 = vld [vmem:[#allocation2 + $0x2f8] sm:$0xff]
  %v2271 = vld [vmem:[#allocation2 + $0x300] sm:$0xff]
  %v2272 = vld [vmem:[#allocation2 + $0x308] sm:$0xff]
  %v2273 = vld [vmem:[#allocation2 + $0x310] sm:$0xff]
  %v2274 = vld [vmem:[#allocation2 + $0x318] sm:$0xff]
  %v2275 = vld [vmem:[#allocation2 + $0x320] sm:$0xff]
  %v2276 = vld [vmem:[#allocation2 + $0x328] sm:$0xff]
  %v2277 = vld [vmem:[#allocation2 + $0x330] sm:$0xff]
  %v2278 = vld [vmem:[#allocation2 + $0x338] sm:$0xff]
  %v2279 = vld [vmem:[#allocation2 + $0x340] sm:$0xff]
  %v2280 = vld [vmem:[#allocation2 + $0x348] sm:$0xff]
  %v2281 = vld [vmem:[#allocation2 + $0x350] sm:$0xff]
  %v2282 = vld [vmem:[#allocation2 + $0x358] sm:$0xff]
  %v2283 = vld [vmem:[#allocation2 + $0x360] sm:$0xff]
  %v2284 = vld [vmem:[#allocation2 + $0x368] sm:$0xff]
  %v2285 = vld [vmem:[#allocation2 + $0x370] sm:$0xff]
  %v2286 = vld [vmem:[#allocation2 + $0x378] sm:$0xff]
  %v2287 = vld [vmem:[#allocation2 + $0x380] sm:$0xff]
  %v2288 = vld [vmem:[#allocation2 + $0x388] sm:$0xff]
  %v2289 = vld [vmem:[#allocation2 + $0x390] sm:$0xff]
  %v2290 = vld [vmem:[#allocation2 + $0x398] sm:$0xff]
  %v2291 = vld [vmem:[#allocation2 + $0x3a0] sm:$0xff]
  %v2292 = vld [vmem:[#allocation2 + $0x3a8] sm:$0xff]
  %v2293 = vld [vmem:[#allocation2 + $0x3b0] sm:$0xff]
  %v2294 = vld [vmem:[#allocation2 + $0x3b8] sm:$0xff]
  %v2295 = vld [vmem:[#allocation2 + $0x3c0] sm:$0xff]
  %v2296 = vld [vmem:[#allocation2 + $0x3c8] sm:$0xff]
  %v2297 = vld [vmem:[#allocation2 + $0x3d0] sm:$0xff]
  %v2298 = vld [vmem:[#allocation2 + $0x3d8] sm:$0xff]
  %v2299 = vld [vmem:[#allocation2 + $0x3e0] sm:$0xff]
  %v2300 = vld [vmem:[#allocation2 + $0x3e8] sm:$0xff]
  %v2301 = vld [vmem:[#allocation2 + $0x3f0] sm:$0xff]
  %v2302 = vld [vmem:[#allocation2 + $0x3f8] sm:$0xff]
  %v2303 = vld [vmem:[#allocation2 + $0x400] sm:$0xff]
  %v2304 = vld [vmem:[#allocation2 + $0x408] sm:$0xff]
  %v2305 = vld [vmem:[#allocation2 + $0x410] sm:$0xff]
  %v2306 = vld [vmem:[#allocation2 + $0x418] sm:$0xff]
  %v2307 = vld [vmem:[#allocation2 + $0x420] sm:$0xff]
  %v2308 = vld [vmem:[#allocation2 + $0x428] sm:$0xff]
  %v2309 = vld [vmem:[#allocation2 + $0x430] sm:$0xff]
  %v2310 = vld [vmem:[#allocation2 + $0x438] sm:$0xff]
  %v2311 = vld [vmem:[#allocation2 + $0x440] sm:$0xff]
  %v2312 = vld [vmem:[#allocation2 + $0x448] sm:$0xff]
  %v2313 = vld [vmem:[#allocation2 + $0x450] sm:$0xff]
  %v2314 = vld [vmem:[#allocation2 + $0x458] sm:$0xff]
  %v2315 = vld [vmem:[#allocation2 + $0x460] sm:$0xff]
  %v2316 = vld [vmem:[#allocation2 + $0x468] sm:$0xff]
  %v2317 = vld [vmem:[#allocation2 + $0x470] sm:$0xff]
  %v2318 = vld [vmem:[#allocation2 + $0x478] sm:$0xff]
  %v2319 = vld [vmem:[#allocation2 + $0x480] sm:$0xff]
  %v2320 = vld [vmem:[#allocation2 + $0x488] sm:$0xff]
  %v2321 = vld [vmem:[#allocation2 + $0x490] sm:$0xff]
  %v2322 = vld [vmem:[#allocation2 + $0x498] sm:$0xff]
  %v2323 = vld [vmem:[#allocation2 + $0x4a0] sm:$0xff]
  %v2324 = vld [vmem:[#allocation2 + $0x4a8] sm:$0xff]
  %v2325 = vld [vmem:[#allocation2 + $0x4b0] sm:$0xff]
  %v2326 = vld [vmem:[#allocation2 + $0x4b8] sm:$0xff]
  %v2327 = vld [vmem:[#allocation2 + $0x4c0] sm:$0xff]
  %v2328 = vld [vmem:[#allocation2 + $0x4c8] sm:$0xff]
  %v2329 = vld [vmem:[#allocation2 + $0x4d0] sm:$0xff]
  %v2330 = vld [vmem:[#allocation2 + $0x4d8] sm:$0xff]
  %v2331 = vld [vmem:[#allocation2 + $0x4e0] sm:$0xff]
  %v2332 = vld [vmem:[#allocation2 + $0x4e8] sm:$0xff]
  %v2333 = vld [vmem:[#allocation2 + $0x4f0] sm:$0xff]
  %v2334 = vld [vmem:[#allocation2 + $0x4f8] sm:$0xff]
  %v2335 = vld [vmem:[#allocation2 + $0x500] sm:$0xff]
  %v2336 = vld [vmem:[#allocation2 + $0x508] sm:$0xff]
  %v2337 = vld [vmem:[#allocation2 + $0x510] sm:$0xff]
  %v2338 = vld [vmem:[#allocation2 + $0x518] sm:$0xff]
  %v2339 = vld [vmem:[#allocation2 + $0x520] sm:$0xff]
  %v2340 = vld [vmem:[#allocation2 + $0x528] sm:$0xff]
  %v2341 = vld [vmem:[#allocation2 + $0x530] sm:$0xff]
  %v2342 = vld [vmem:[#allocation2 + $0x538] sm:$0xff]
  %v2343 = vld [vmem:[#allocation2 + $0x540] sm:$0xff]
  %v2344 = vld [vmem:[#allocation2 + $0x548] sm:$0xff]
  %v2345 = vld [vmem:[#allocation2 + $0x550] sm:$0xff]
  %v2346 = vld [vmem:[#allocation2 + $0x558] sm:$0xff]
  %v2347 = vld [vmem:[#allocation2 + $0x560] sm:$0xff]
  %v2348 = vld [vmem:[#allocation2 + $0x568] sm:$0xff]
  %v2349 = vld [vmem:[#allocation2 + $0x570] sm:$0xff]
  %v2350 = vld [vmem:[#allocation2 + $0x578] sm:$0xff]
  %v2351 = vld [vmem:[#allocation2 + $0x580] sm:$0xff]
  %v2352 = vld [vmem:[#allocation2 + $0x588] sm:$0xff]
  %v2353 = vld [vmem:[#allocation2 + $0x590] sm:$0xff]
  %v2354 = vld [vmem:[#allocation2 + $0x598] sm:$0xff]
  %v2355 = vld [vmem:[#allocation2 + $0x5a0] sm:$0xff]
  %v2356 = vld [vmem:[#allocation2 + $0x5a8] sm:$0xff]
  %v2357 = vld [vmem:[#allocation2 + $0x5b0] sm:$0xff]
  %v2358 = vld [vmem:[#allocation2 + $0x5b8] sm:$0xff]
  %v2359 = vld [vmem:[#allocation2 + $0x5c0] sm:$0xff]
  %v2360 = vld [vmem:[#allocation2 + $0x5c8] sm:$0xff]
  %v2361 = vld [vmem:[#allocation2 + $0x5d0] sm:$0xff]
  %v2362 = vld [vmem:[#allocation2 + $0x5d8] sm:$0xff]
  %v2363 = vld [vmem:[#allocation2 + $0x5e0] sm:$0xff]
  %v2364 = vld [vmem:[#allocation2 + $0x5e8] sm:$0xff]
  %v2365 = vld [vmem:[#allocation2 + $0x5f0] sm:$0xff]
  %v2366 = vld [vmem:[#allocation2 + $0x5f8] sm:$0xff]
  %v2367 = vld [vmem:[#allocation2 + $0x600] sm:$0xff]
  %v2368 = vld [vmem:[#allocation2 + $0x608] sm:$0xff]
  %v2369 = vld [vmem:[#allocation2 + $0x610] sm:$0xff]
  %v2370 = vld [vmem:[#allocation2 + $0x618] sm:$0xff]
  %v2371 = vld [vmem:[#allocation2 + $0x620] sm:$0xff]
  %v2372 = vld [vmem:[#allocation2 + $0x628] sm:$0xff]
  %v2373 = vld [vmem:[#allocation2 + $0x630] sm:$0xff]
  %v2374 = vld [vmem:[#allocation2 + $0x638] sm:$0xff]
  %v2375 = vld [vmem:[#allocation2 + $0x640] sm:$0xff]
  %v2376 = vld [vmem:[#allocation2 + $0x648] sm:$0xff]
  %v2377 = vld [vmem:[#allocation2 + $0x650] sm:$0xff]
  %v2378 = vld [vmem:[#allocation2 + $0x658] sm:$0xff]
  %v2379 = vld [vmem:[#allocation2 + $0x660] sm:$0xff]
  %v2380 = vld [vmem:[#allocation2 + $0x668] sm:$0xff]
  %v2381 = vld [vmem:[#allocation2 + $0x670] sm:$0xff]
  %v2382 = vld [vmem:[#allocation2 + $0x678] sm:$0xff]
  %v2383 = vld [vmem:[#allocation2 + $0x680] sm:$0xff]
  %v2384 = vld [vmem:[#allocation2 + $0x688] sm:$0xff]
  %v2385 = vld [vmem:[#allocation2 + $0x690] sm:$0xff]
  %v2386 = vld [vmem:[#allocation2 + $0x698] sm:$0xff]
  %v2387 = vld [vmem:[#allocation2 + $0x6a0] sm:$0xff]
  %v2388 = vld [vmem:[#allocation2 + $0x6a8] sm:$0xff]
  %v2389 = vld [vmem:[#allocation2 + $0x6b0] sm:$0xff]
  %v2390 = vld [vmem:[#allocation2 + $0x6b8] sm:$0xff]
  %v2391 = vld [vmem:[#allocation2 + $0x6c0] sm:$0xff]
  %v2392 = vld [vmem:[#allocation2 + $0x6c8] sm:$0xff]
  %v2393 = vld [vmem:[#allocation2 + $0x6d0] sm:$0xff]
  %v2394 = vld [vmem:[#allocation2 + $0x6d8] sm:$0xff]
  %v2395 = vld [vmem:[#allocation2 + $0x6e0] sm:$0xff]
  %v2396 = vld [vmem:[#allocation2 + $0x6e8] sm:$0xff]
  %v2397 = vld [vmem:[#allocation2 + $0x6f0] sm:$0xff]
  %v2398 = vld [vmem:[#allocation2 + $0x6f8] sm:$0xff]
  %v2399 = vld [vmem:[#allocation2 + $0x700] sm:$0xff]
  %v2400 = vld [vmem:[#allocation2 + $0x708] sm:$0xff]
  %v2401 = vld [vmem:[#allocation2 + $0x710] sm:$0xff]
  %v2402 = vld [vmem:[#allocation2 + $0x718] sm:$0xff]
  %v2403 = vld [vmem:[#allocation2 + $0x720] sm:$0xff]
  %v2404 = vld [vmem:[#allocation2 + $0x728] sm:$0xff]
  %v2405 = vld [vmem:[#allocation2 + $0x730] sm:$0xff]
  %v2406 = vld [vmem:[#allocation2 + $0x738] sm:$0xff]
  %v2407 = vld [vmem:[#allocation2 + $0x740] sm:$0xff]
  %v2408 = vld [vmem:[#allocation2 + $0x748] sm:$0xff]
  %v2409 = vld [vmem:[#allocation2 + $0x750] sm:$0xff]
  %v2410 = vld [vmem:[#allocation2 + $0x758] sm:$0xff]
  %v2411 = vld [vmem:[#allocation2 + $0x760] sm:$0xff]
  %v2412 = vld [vmem:[#allocation2 + $0x768] sm:$0xff]
  %v2413 = vld [vmem:[#allocation2 + $0x770] sm:$0xff]
  %v2414 = vld [vmem:[#allocation2 + $0x778] sm:$0xff]
  %v2415 = vld [vmem:[#allocation2 + $0x780] sm:$0xff]
  %v2416 = vld [vmem:[#allocation2 + $0x788] sm:$0xff]
  %v2417 = vld [vmem:[#allocation2 + $0x790] sm:$0xff]
  %v2418 = vld [vmem:[#allocation2 + $0x798] sm:$0xff]
  %v2419 = vld [vmem:[#allocation2 + $0x7a0] sm:$0xff]
  %v2420 = vld [vmem:[#allocation2 + $0x7a8] sm:$0xff]
  %v2421 = vld [vmem:[#allocation2 + $0x7b0] sm:$0xff]
  %v2422 = vld [vmem:[#allocation2 + $0x7b8] sm:$0xff]
  %v2423 = vld [vmem:[#allocation2 + $0x7c0] sm:$0xff]
  %v2424 = vld [vmem:[#allocation2 + $0x7c8] sm:$0xff]
  %v2425 = vld [vmem:[#allocation2 + $0x7d0] sm:$0xff]
  %v2426 = vld [vmem:[#allocation2 + $0x7d8] sm:$0xff]
  %v2427 = vld [vmem:[#allocation2 + $0x7e0] sm:$0xff]
  %v2428 = vld [vmem:[#allocation2 + $0x7e8] sm:$0xff]
  %v2429 = vld [vmem:[#allocation2 + $0x7f0] sm:$0xff]
  %v2430 = vld [vmem:[#allocation2 + $0x7f8] sm:$0xff]
  %v2431 = vld [vmem:[#allocation2 + $0x800] sm:$0xff]
  %v2432 = vld [vmem:[#allocation2 + $0x808] sm:$0xff]
  %v2433 = vld [vmem:[#allocation2 + $0x810] sm:$0xff]
  %v2434 = vld [vmem:[#allocation2 + $0x818] sm:$0xff]
  %v2435 = vld [vmem:[#allocation2 + $0x820] sm:$0xff]
  %v2436 = vld [vmem:[#allocation2 + $0x828] sm:$0xff]
  %v2437 = vld [vmem:[#allocation2 + $0x830] sm:$0xff]
  %v2438 = vld [vmem:[#allocation2 + $0x838] sm:$0xff]
  %v2439 = vld [vmem:[#allocation2 + $0x840] sm:$0xff]
  %v2440 = vld [vmem:[#allocation2 + $0x848] sm:$0xff]
  %v2441 = vld [vmem:[#allocation2 + $0x850] sm:$0xff]
  %v2442 = vld [vmem:[#allocation2 + $0x858] sm:$0xff]
  %v2443 = vld [vmem:[#allocation2 + $0x860] sm:$0xff]
  %v2444 = vld [vmem:[#allocation2 + $0x868] sm:$0xff]
  %v2445 = vld [vmem:[#allocation2 + $0x870] sm:$0xff]
  %v2446 = vld [vmem:[#allocation2 + $0x878] sm:$0xff]
  %v2447 = vld [vmem:[#allocation2 + $0x880] sm:$0xff]
  %v2448 = vld [vmem:[#allocation2 + $0x888] sm:$0xff]
  %v2449 = vld [vmem:[#allocation2 + $0x890] sm:$0xff]
  %v2450 = vld [vmem:[#allocation2 + $0x898] sm:$0xff]
  %v2451 = vld [vmem:[#allocation2 + $0x8a0] sm:$0xff]
  %v2452 = vld [vmem:[#allocation2 + $0x8a8] sm:$0xff]
  %v2453 = vld [vmem:[#allocation2 + $0x8b0] sm:$0xff]
  %v2454 = vld [vmem:[#allocation2 + $0x8b8] sm:$0xff]
  %v2455 = vld [vmem:[#allocation2 + $0x8c0] sm:$0xff]
  %v2456 = vld [vmem:[#allocation2 + $0x8c8] sm:$0xff]
  %v2457 = vld [vmem:[#allocation2 + $0x8d0] sm:$0xff]
  %v2458 = vld [vmem:[#allocation2 + $0x8d8] sm:$0xff]
  %v2459 = vld [vmem:[#allocation2 + $0x8e0] sm:$0xff]
  %v2460 = vld [vmem:[#allocation2 + $0x8e8] sm:$0xff]
  %v2461 = vld [vmem:[#allocation2 + $0x8f0] sm:$0xff]
  %v2462 = vld [vmem:[#allocation2 + $0x8f8] sm:$0xff]
  %v2463 = vld [vmem:[#allocation2 + $0x900] sm:$0xff]
  %v2464 = vld [vmem:[#allocation2 + $0x908] sm:$0xff]
  %v2465 = vld [vmem:[#allocation2 + $0x910] sm:$0xff]
  %v2466 = vld [vmem:[#allocation2 + $0x918] sm:$0xff]
  %v2467 = vld [vmem:[#allocation2 + $0x920] sm:$0xff]
  %v2468 = vld [vmem:[#allocation2 + $0x928] sm:$0xff]
  %v2469 = vld [vmem:[#allocation2 + $0x930] sm:$0xff]
  %v2470 = vld [vmem:[#allocation2 + $0x938] sm:$0xff]
  %v2471 = vld [vmem:[#allocation2 + $0x940] sm:$0xff]
  %v2472 = vld [vmem:[#allocation2 + $0x948] sm:$0xff]
  %v2473 = vld [vmem:[#allocation2 + $0x950] sm:$0xff]
  %v2474 = vld [vmem:[#allocation2 + $0x958] sm:$0xff]
  %v2475 = vld [vmem:[#allocation2 + $0x960] sm:$0xff]
  %v2476 = vld [vmem:[#allocation2 + $0x968] sm:$0xff]
  %v2477 = vld [vmem:[#allocation2 + $0x970] sm:$0xff]
  %v2478 = vld [vmem:[#allocation2 + $0x978] sm:$0xff]
  %v2479 = vld [vmem:[#allocation2 + $0x980] sm:$0xff]
  %v2480 = vld [vmem:[#allocation2 + $0x988] sm:$0xff]
  %v2481 = vld [vmem:[#allocation2 + $0x990] sm:$0xff]
  %v2482 = vld [vmem:[#allocation2 + $0x998] sm:$0xff]
  %v2483 = vld [vmem:[#allocation2 + $0x9a0] sm:$0xff]
  %v2484 = vld [vmem:[#allocation2 + $0x9a8] sm:$0xff]
  %v2485 = vld [vmem:[#allocation2 + $0x9b0] sm:$0xff]
  %v2486 = vld [vmem:[#allocation2 + $0x9b8] sm:$0xff]
  %v2487 = vld [vmem:[#allocation2 + $0x9c0] sm:$0xff]
  %v2488 = vld [vmem:[#allocation2 + $0x9c8] sm:$0xff]
  %v2489 = vld [vmem:[#allocation2 + $0x9d0] sm:$0xff]
  %v2490 = vld [vmem:[#allocation2 + $0x9d8] sm:$0xff]
  %v2491 = vld [vmem:[#allocation2 + $0x9e0] sm:$0xff]
  %v2492 = vld [vmem:[#allocation2 + $0x9e8] sm:$0xff]
  %v2493 = vld [vmem:[#allocation2 + $0x9f0] sm:$0xff]
  %v2494 = vld [vmem:[#allocation2 + $0x9f8] sm:$0xff]
  %v2495 = vld [vmem:[#allocation2 + $0xa00] sm:$0xff]
  %v2496 = vld [vmem:[#allocation2 + $0xa08] sm:$0xff]
  %v2497 = vld [vmem:[#allocation2 + $0xa10] sm:$0xff]
  %v2498 = vld [vmem:[#allocation2 + $0xa18] sm:$0xff]
  %v2499 = vld [vmem:[#allocation2 + $0xa20] sm:$0xff]
  %v2500 = vld [vmem:[#allocation2 + $0xa28] sm:$0xff]
  %v2501 = vld [vmem:[#allocation2 + $0xa30] sm:$0xff]
  %v2502 = vld [vmem:[#allocation2 + $0xa38] sm:$0xff]
  %v2503 = vld [vmem:[#allocation2 + $0xa40] sm:$0xff]
  %v2504 = vld [vmem:[#allocation2 + $0xa48] sm:$0xff]
  %v2505 = vld [vmem:[#allocation2 + $0xa50] sm:$0xff]
  %v2506 = vld [vmem:[#allocation2 + $0xa58] sm:$0xff]
  %v2507 = vld [vmem:[#allocation2 + $0xa60] sm:$0xff]
  %v2508 = vld [vmem:[#allocation2 + $0xa68] sm:$0xff]
  %v2509 = vld [vmem:[#allocation2 + $0xa70] sm:$0xff]
  %v2510 = vld [vmem:[#allocation2 + $0xa78] sm:$0xff]
  %v2511 = vld [vmem:[#allocation2 + $0xa80] sm:$0xff]
  %v2512 = vld [vmem:[#allocation2 + $0xa88] sm:$0xff]
  %v2513 = vld [vmem:[#allocation2 + $0xa90] sm:$0xff]
  %v2514 = vld [vmem:[#allocation2 + $0xa98] sm:$0xff]
  %v2515 = vld [vmem:[#allocation2 + $0xaa0] sm:$0xff]
  %v2516 = vld [vmem:[#allocation2 + $0xaa8] sm:$0xff]
  %v2517 = vld [vmem:[#allocation2 + $0xab0] sm:$0xff]
  %v2518 = vld [vmem:[#allocation2 + $0xab8] sm:$0xff]
  %v2519 = vld [vmem:[#allocation2 + $0xac0] sm:$0xff]
  %v2520 = vld [vmem:[#allocation2 + $0xac8] sm:$0xff]
  %v2521 = vld [vmem:[#allocation2 + $0xad0] sm:$0xff]
  %v2522 = vld [vmem:[#allocation2 + $0xad8] sm:$0xff]
  %v2523 = vld [vmem:[#allocation2 + $0xae0] sm:$0xff]
  %v2524 = vld [vmem:[#allocation2 + $0xae8] sm:$0xff]
  %v2525 = vld [vmem:[#allocation2 + $0xaf0] sm:$0xff]
  %v2526 = vld [vmem:[#allocation2 + $0xaf8] sm:$0xff]
  %v2527 = vld [vmem:[#allocation2 + $0xb00] sm:$0xff]
  %v2528 = vld [vmem:[#allocation2 + $0xb08] sm:$0xff]
  %v2529 = vld [vmem:[#allocation2 + $0xb10] sm:$0xff]
  %v2530 = vld [vmem:[#allocation2 + $0xb18] sm:$0xff]
  %v2531 = vld [vmem:[#allocation2 + $0xb20] sm:$0xff]
  %v2532 = vld [vmem:[#allocation2 + $0xb28] sm:$0xff]
  %v2533 = vld [vmem:[#allocation2 + $0xb30] sm:$0xff]
  %v2534 = vld [vmem:[#allocation2 + $0xb38] sm:$0xff]
  %v2535 = vld [vmem:[#allocation2 + $0xb40] sm:$0xff]
  %v2536 = vld [vmem:[#allocation2 + $0xb48] sm:$0xff]
  %v2537 = vld [vmem:[#allocation2 + $0xb50] sm:$0xff]
  %v2538 = vld [vmem:[#allocation2 + $0xb58] sm:$0xff]
  %v2539 = vld [vmem:[#allocation2 + $0xb60] sm:$0xff]
  %v2540 = vld [vmem:[#allocation2 + $0xb68] sm:$0xff]
  %v2541 = vld [vmem:[#allocation2 + $0xb70] sm:$0xff]
  %v2542 = vld [vmem:[#allocation2 + $0xb78] sm:$0xff]
  %v2543 = vld [vmem:[#allocation2 + $0xb80] sm:$0xff]
  %v2544 = vld [vmem:[#allocation2 + $0xb88] sm:$0xff]
  %v2545 = vld [vmem:[#allocation2 + $0xb90] sm:$0xff]
  %v2546 = vld [vmem:[#allocation2 + $0xb98] sm:$0xff]
  %v2547 = vld [vmem:[#allocation2 + $0xba0] sm:$0xff]
  %v2548 = vld [vmem:[#allocation2 + $0xba8] sm:$0xff]
  %v2549 = vld [vmem:[#allocation2 + $0xbb0] sm:$0xff]
  %v2550 = vld [vmem:[#allocation2 + $0xbb8] sm:$0xff]
  %v2551 = vld [vmem:[#allocation2 + $0xbc0] sm:$0xff]
  %v2552 = vld [vmem:[#allocation2 + $0xbc8] sm:$0xff]
  %v2553 = vld [vmem:[#allocation2 + $0xbd0] sm:$0xff]
  %v2554 = vld [vmem:[#allocation2 + $0xbd8] sm:$0xff]
  %v2555 = vld [vmem:[#allocation2 + $0xbe0] sm:$0xff]
  %v2556 = vld [vmem:[#allocation2 + $0xbe8] sm:$0xff]
  %v2557 = vld [vmem:[#allocation2 + $0xbf0] sm:$0xff]
  %v2558 = vld [vmem:[#allocation2 + $0xbf8] sm:$0xff]
  %v2559 = vld [vmem:[#allocation2 + $0xc00] sm:$0xff]
  %v2560 = vld [vmem:[#allocation2 + $0xc08] sm:$0xff]
  %v2561 = vld [vmem:[#allocation2 + $0xc10] sm:$0xff]
  %v2562 = vld [vmem:[#allocation2 + $0xc18] sm:$0xff]
  %v2563 = vld [vmem:[#allocation2 + $0xc20] sm:$0xff]
  %v2564 = vld [vmem:[#allocation2 + $0xc28] sm:$0xff]
  %v2565 = vld [vmem:[#allocation2 + $0xc30] sm:$0xff]
  %v2566 = vld [vmem:[#allocation2 + $0xc38] sm:$0xff]
  %v2567 = vld [vmem:[#allocation2 + $0xc40] sm:$0xff]
  %v2568 = vld [vmem:[#allocation2 + $0xc48] sm:$0xff]
  %v2569 = vld [vmem:[#allocation2 + $0xc50] sm:$0xff]
  %v2570 = vld [vmem:[#allocation2 + $0xc58] sm:$0xff]
  %v2571 = vld [vmem:[#allocation2 + $0xc60] sm:$0xff]
  %v2572 = vld [vmem:[#allocation2 + $0xc68] sm:$0xff]
  %v2573 = vld [vmem:[#allocation2 + $0xc70] sm:$0xff]
  %v2574 = vld [vmem:[#allocation2 + $0xc78] sm:$0xff]
  %v2575 = vld [vmem:[%s6] sm:$0x3]
  %v2976 = vunpack.c.l.b16 %v2175
  %v2977 = vunpack.c.h.b16 %v2175
  %v2978 = vunpack.c.l.b16 %v2176
  %v2979 = vunpack.c.h.b16 %v2176
  %v2980 = vunpack.c.l.b16 %v2177
  %v2981 = vunpack.c.h.b16 %v2177
  %v2982 = vunpack.c.l.b16 %v2178
  %v2983 = vunpack.c.h.b16 %v2178
  %v2984 = vunpack.c.l.b16 %v2179
  %v2985 = vunpack.c.h.b16 %v2179
  %v2986 = vunpack.c.l.b16 %v2180
  %v2987 = vunpack.c.h.b16 %v2180
  %v2988 = vunpack.c.l.b16 %v2181
  %v2989 = vunpack.c.h.b16 %v2181
  %v2990 = vunpack.c.l.b16 %v2182
  %v2991 = vunpack.c.h.b16 %v2182
  %v2992 = vunpack.c.l.b16 %v2183
  %v2993 = vunpack.c.h.b16 %v2183
  %v2994 = vunpack.c.l.b16 %v2184
  %v2995 = vunpack.c.h.b16 %v2184
  %v2996 = vunpack.c.l.b16 %v2185
  %v2997 = vunpack.c.h.b16 %v2185
  %v2998 = vunpack.c.l.b16 %v2186
  %v2999 = vunpack.c.h.b16 %v2186
  %v3000 = vunpack.c.l.b16 %v2187
  %v3001 = vunpack.c.h.b16 %v2187
  %v3002 = vunpack.c.l.b16 %v2188
  %v3003 = vunpack.c.h.b16 %v2188
  %v3004 = vunpack.c.l.b16 %v2189
  %v3005 = vunpack.c.h.b16 %v2189
  %v3006 = vunpack.c.l.b16 %v2190
  %v3007 = vunpack.c.h.b16 %v2190
  %v3008 = vunpack.c.l.b16 %v2191
  %v3009 = vunpack.c.h.b16 %v2191
  %v3010 = vunpack.c.l.b16 %v2192
  %v3011 = vunpack.c.h.b16 %v2192
  %v3012 = vunpack.c.l.b16 %v2193
  %v3013 = vunpack.c.h.b16 %v2193
  %v3014 = vunpack.c.l.b16 %v2194
  %v3015 = vunpack.c.h.b16 %v2194
  %v3016 = vunpack.c.l.b16 %v2195
  %v3017 = vunpack.c.h.b16 %v2195
  %v3018 = vunpack.c.l.b16 %v2196
  %v3019 = vunpack.c.h.b16 %v2196
  %v3020 = vunpack.c.l.b16 %v2197
  %v3021 = vunpack.c.h.b16 %v2197
  %v3022 = vunpack.c.l.b16 %v2198
  %v3023 = vunpack.c.h.b16 %v2198
  %v3024 = vunpack.c.l.b16 %v2199
  %v3025 = vunpack.c.h.b16 %v2199
  %v3026 = vunpack.c.l.b16 %v2200
  %v3027 = vunpack.c.h.b16 %v2200
  %v3028 = vunpack.c.l.b16 %v2201
  %v3029 = vunpack.c.h.b16 %v2201
  %v3030 = vunpack.c.l.b16 %v2202
  %v3031 = vunpack.c.h.b16 %v2202
  %v3032 = vunpack.c.l.b16 %v2203
  %v3033 = vunpack.c.h.b16 %v2203
  %v3034 = vunpack.c.l.b16 %v2204
  %v3035 = vunpack.c.h.b16 %v2204
  %v3036 = vunpack.c.l.b16 %v2205
  %v3037 = vunpack.c.h.b16 %v2205
  %v3038 = vunpack.c.l.b16 %v2206
  %v3039 = vunpack.c.h.b16 %v2206
  %v3040 = vunpack.c.l.b16 %v2207
  %v3041 = vunpack.c.h.b16 %v2207
  %v3042 = vunpack.c.l.b16 %v2208
  %v3043 = vunpack.c.h.b16 %v2208
  %v3044 = vunpack.c.l.b16 %v2209
  %v3045 = vunpack.c.h.b16 %v2209
  %v3046 = vunpack.c.l.b16 %v2210
  %v3047 = vunpack.c.h.b16 %v2210
  %v3048 = vunpack.c.l.b16 %v2211
  %v3049 = vunpack.c.h.b16 %v2211
  %v3050 = vunpack.c.l.b16 %v2212
  %v3051 = vunpack.c.h.b16 %v2212
  %v3052 = vunpack.c.l.b16 %v2213
  %v3053 = vunpack.c.h.b16 %v2213
  %v3054 = vunpack.c.l.b16 %v2214
  %v3055 = vunpack.c.h.b16 %v2214
  %v3056 = vunpack.c.l.b16 %v2215
  %v3057 = vunpack.c.h.b16 %v2215
  %v3058 = vunpack.c.l.b16 %v2216
  %v3059 = vunpack.c.h.b16 %v2216
  %v3060 = vunpack.c.l.b16 %v2217
  %v3061 = vunpack.c.h.b16 %v2217
  %v3062 = vunpack.c.l.b16 %v2218
  %v3063 = vunpack.c.h.b16 %v2218
  %v3064 = vunpack.c.l.b16 %v2219
  %v3065 = vunpack.c.h.b16 %v2219
  %v3066 = vunpack.c.l.b16 %v2220
  %v3067 = vunpack.c.h.b16 %v2220
  %v3068 = vunpack.c.l.b16 %v2221
  %v3069 = vunpack.c.h.b16 %v2221
  %v3070 = vunpack.c.l.b16 %v2222
  %v3071 = vunpack.c.h.b16 %v2222
  %v3072 = vunpack.c.l.b16 %v2223
  %v3073 = vunpack.c.h.b16 %v2223
  %v3074 = vunpack.c.l.b16 %v2224
  %v3075 = vunpack.c.h.b16 %v2224
  %v3076 = vunpack.c.l.b16 %v2225
  %v3077 = vunpack.c.h.b16 %v2225
  %v3078 = vunpack.c.l.b16 %v2226
  %v3079 = vunpack.c.h.b16 %v2226
  %v3080 = vunpack.c.l.b16 %v2227
  %v3081 = vunpack.c.h.b16 %v2227
  %v3082 = vunpack.c.l.b16 %v2228
  %v3083 = vunpack.c.h.b16 %v2228
  %v3084 = vunpack.c.l.b16 %v2229
  %v3085 = vunpack.c.h.b16 %v2229
  %v3086 = vunpack.c.l.b16 %v2230
  %v3087 = vunpack.c.h.b16 %v2230
  %v3088 = vunpack.c.l.b16 %v2231
  %v3089 = vunpack.c.h.b16 %v2231
  %v3090 = vunpack.c.l.b16 %v2232
  %v3091 = vunpack.c.h.b16 %v2232
  %v3092 = vunpack.c.l.b16 %v2233
  %v3093 = vunpack.c.h.b16 %v2233
  %v3094 = vunpack.c.l.b16 %v2234
  %v3095 = vunpack.c.h.b16 %v2234
  %v3096 = vunpack.c.l.b16 %v2235
  %v3097 = vunpack.c.h.b16 %v2235
  %v3098 = vunpack.c.l.b16 %v2236
  %v3099 = vunpack.c.h.b16 %v2236
  %v3100 = vunpack.c.l.b16 %v2237
  %v3101 = vunpack.c.h.b16 %v2237
  %v3102 = vunpack.c.l.b16 %v2238
  %v3103 = vunpack.c.h.b16 %v2238
  %v3104 = vunpack.c.l.b16 %v2239
  %v3105 = vunpack.c.h.b16 %v2239
  %v3106 = vunpack.c.l.b16 %v2240
  %v3107 = vunpack.c.h.b16 %v2240
  %v3108 = vunpack.c.l.b16 %v2241
  %v3109 = vunpack.c.h.b16 %v2241
  %v3110 = vunpack.c.l.b16 %v2242
  %v3111 = vunpack.c.h.b16 %v2242
  %v3112 = vunpack.c.l.b16 %v2243
  %v3113 = vunpack.c.h.b16 %v2243
  %v3114 = vunpack.c.l.b16 %v2244
  %v3115 = vunpack.c.h.b16 %v2244
  %v3116 = vunpack.c.l.b16 %v2245
  %v3117 = vunpack.c.h.b16 %v2245
  %v3118 = vunpack.c.l.b16 %v2246
  %v3119 = vunpack.c.h.b16 %v2246
  %v3120 = vunpack.c.l.b16 %v2247
  %v3121 = vunpack.c.h.b16 %v2247
  %v3122 = vunpack.c.l.b16 %v2248
  %v3123 = vunpack.c.h.b16 %v2248
  %v3124 = vunpack.c.l.b16 %v2249
  %v3125 = vunpack.c.h.b16 %v2249
  %v3126 = vunpack.c.l.b16 %v2250
  %v3127 = vunpack.c.h.b16 %v2250
  %v3128 = vunpack.c.l.b16 %v2251
  %v3129 = vunpack.c.h.b16 %v2251
  %v3130 = vunpack.c.l.b16 %v2252
  %v3131 = vunpack.c.h.b16 %v2252
  %v3132 = vunpack.c.l.b16 %v2253
  %v3133 = vunpack.c.h.b16 %v2253
  %v3134 = vunpack.c.l.b16 %v2254
  %v3135 = vunpack.c.h.b16 %v2254
  %v3136 = vunpack.c.l.b16 %v2255
  %v3137 = vunpack.c.h.b16 %v2255
  %v3138 = vunpack.c.l.b16 %v2256
  %v3139 = vunpack.c.h.b16 %v2256
  %v3140 = vunpack.c.l.b16 %v2257
  %v3141 = vunpack.c.h.b16 %v2257
  %v3142 = vunpack.c.l.b16 %v2258
  %v3143 = vunpack.c.h.b16 %v2258
  %v3144 = vunpack.c.l.b16 %v2259
  %v3145 = vunpack.c.h.b16 %v2259
  %v3146 = vunpack.c.l.b16 %v2260
  %v3147 = vunpack.c.h.b16 %v2260
  %v3148 = vunpack.c.l.b16 %v2261
  %v3149 = vunpack.c.h.b16 %v2261
  %v3150 = vunpack.c.l.b16 %v2262
  %v3151 = vunpack.c.h.b16 %v2262
  %v3152 = vunpack.c.l.b16 %v2263
  %v3153 = vunpack.c.h.b16 %v2263
  %v3154 = vunpack.c.l.b16 %v2264
  %v3155 = vunpack.c.h.b16 %v2264
  %v3156 = vunpack.c.l.b16 %v2265
  %v3157 = vunpack.c.h.b16 %v2265
  %v3158 = vunpack.c.l.b16 %v2266
  %v3159 = vunpack.c.h.b16 %v2266
  %v3160 = vunpack.c.l.b16 %v2267
  %v3161 = vunpack.c.h.b16 %v2267
  %v3162 = vunpack.c.l.b16 %v2268
  %v3163 = vunpack.c.h.b16 %v2268
  %v3164 = vunpack.c.l.b16 %v2269
  %v3165 = vunpack.c.h.b16 %v2269
  %v3166 = vunpack.c.l.b16 %v2270
  %v3167 = vunpack.c.h.b16 %v2270
  %v3168 = vunpack.c.l.b16 %v2271
  %v3169 = vunpack.c.h.b16 %v2271
  %v3170 = vunpack.c.l.b16 %v2272
  %v3171 = vunpack.c.h.b16 %v2272
  %v3172 = vunpack.c.l.b16 %v2273
  %v3173 = vunpack.c.h.b16 %v2273
  %v3174 = vunpack.c.l.b16 %v2274
  %v3175 = vunpack.c.h.b16 %v2274
  %v3176 = vunpack.c.l.b16 %v2275
  %v3177 = vunpack.c.h.b16 %v2275
  %v3178 = vunpack.c.l.b16 %v2276
  %v3179 = vunpack.c.h.b16 %v2276
  %v3180 = vunpack.c.l.b16 %v2277
  %v3181 = vunpack.c.h.b16 %v2277
  %v3182 = vunpack.c.l.b16 %v2278
  %v3183 = vunpack.c.h.b16 %v2278
  %v3184 = vunpack.c.l.b16 %v2279
  %v3185 = vunpack.c.h.b16 %v2279
  %v3186 = vunpack.c.l.b16 %v2280
  %v3187 = vunpack.c.h.b16 %v2280
  %v3188 = vunpack.c.l.b16 %v2281
  %v3189 = vunpack.c.h.b16 %v2281
  %v3190 = vunpack.c.l.b16 %v2282
  %v3191 = vunpack.c.h.b16 %v2282
  %v3192 = vunpack.c.l.b16 %v2283
  %v3193 = vunpack.c.h.b16 %v2283
  %v3194 = vunpack.c.l.b16 %v2284
  %v3195 = vunpack.c.h.b16 %v2284
  %v3196 = vunpack.c.l.b16 %v2285
  %v3197 = vunpack.c.h.b16 %v2285
  %v3198 = vunpack.c.l.b16 %v2286
  %v3199 = vunpack.c.h.b16 %v2286
  %v3200 = vunpack.c.l.b16 %v2287
  %v3201 = vunpack.c.h.b16 %v2287
  %v3202 = vunpack.c.l.b16 %v2288
  %v3203 = vunpack.c.h.b16 %v2288
  %v3204 = vunpack.c.l.b16 %v2289
  %v3205 = vunpack.c.h.b16 %v2289
  %v3206 = vunpack.c.l.b16 %v2290
  %v3207 = vunpack.c.h.b16 %v2290
  %v3208 = vunpack.c.l.b16 %v2291
  %v3209 = vunpack.c.h.b16 %v2291
  %v3210 = vunpack.c.l.b16 %v2292
  %v3211 = vunpack.c.h.b16 %v2292
  %v3212 = vunpack.c.l.b16 %v2293
  %v3213 = vunpack.c.h.b16 %v2293
  %v3214 = vunpack.c.l.b16 %v2294
  %v3215 = vunpack.c.h.b16 %v2294
  %v3216 = vunpack.c.l.b16 %v2295
  %v3217 = vunpack.c.h.b16 %v2295
  %v3218 = vunpack.c.l.b16 %v2296
  %v3219 = vunpack.c.h.b16 %v2296
  %v3220 = vunpack.c.l.b16 %v2297
  %v3221 = vunpack.c.h.b16 %v2297
  %v3222 = vunpack.c.l.b16 %v2298
  %v3223 = vunpack.c.h.b16 %v2298
  %v3224 = vunpack.c.l.b16 %v2299
  %v3225 = vunpack.c.h.b16 %v2299
  %v3226 = vunpack.c.l.b16 %v2300
  %v3227 = vunpack.c.h.b16 %v2300
  %v3228 = vunpack.c.l.b16 %v2301
  %v3229 = vunpack.c.h.b16 %v2301
  %v3230 = vunpack.c.l.b16 %v2302
  %v3231 = vunpack.c.h.b16 %v2302
  %v3232 = vunpack.c.l.b16 %v2303
  %v3233 = vunpack.c.h.b16 %v2303
  %v3234 = vunpack.c.l.b16 %v2304
  %v3235 = vunpack.c.h.b16 %v2304
  %v3236 = vunpack.c.l.b16 %v2305
  %v3237 = vunpack.c.h.b16 %v2305
  %v3238 = vunpack.c.l.b16 %v2306
  %v3239 = vunpack.c.h.b16 %v2306
  %v3240 = vunpack.c.l.b16 %v2307
  %v3241 = vunpack.c.h.b16 %v2307
  %v3242 = vunpack.c.l.b16 %v2308
  %v3243 = vunpack.c.h.b16 %v2308
  %v3244 = vunpack.c.l.b16 %v2309
  %v3245 = vunpack.c.h.b16 %v2309
  %v3246 = vunpack.c.l.b16 %v2310
  %v3247 = vunpack.c.h.b16 %v2310
  %v3248 = vunpack.c.l.b16 %v2311
  %v3249 = vunpack.c.h.b16 %v2311
  %v3250 = vunpack.c.l.b16 %v2312
  %v3251 = vunpack.c.h.b16 %v2312
  %v3252 = vunpack.c.l.b16 %v2313
  %v3253 = vunpack.c.h.b16 %v2313
  %v3254 = vunpack.c.l.b16 %v2314
  %v3255 = vunpack.c.h.b16 %v2314
  %v3256 = vunpack.c.l.b16 %v2315
  %v3257 = vunpack.c.h.b16 %v2315
  %v3258 = vunpack.c.l.b16 %v2316
  %v3259 = vunpack.c.h.b16 %v2316
  %v3260 = vunpack.c.l.b16 %v2317
  %v3261 = vunpack.c.h.b16 %v2317
  %v3262 = vunpack.c.l.b16 %v2318
  %v3263 = vunpack.c.h.b16 %v2318
  %v3264 = vunpack.c.l.b16 %v2319
  %v3265 = vunpack.c.h.b16 %v2319
  %v3266 = vunpack.c.l.b16 %v2320
  %v3267 = vunpack.c.h.b16 %v2320
  %v3268 = vunpack.c.l.b16 %v2321
  %v3269 = vunpack.c.h.b16 %v2321
  %v3270 = vunpack.c.l.b16 %v2322
  %v3271 = vunpack.c.h.b16 %v2322
  %v3272 = vunpack.c.l.b16 %v2323
  %v3273 = vunpack.c.h.b16 %v2323
  %v3274 = vunpack.c.l.b16 %v2324
  %v3275 = vunpack.c.h.b16 %v2324
  %v3276 = vunpack.c.l.b16 %v2325
  %v3277 = vunpack.c.h.b16 %v2325
  %v3278 = vunpack.c.l.b16 %v2326
  %v3279 = vunpack.c.h.b16 %v2326
  %v3280 = vunpack.c.l.b16 %v2327
  %v3281 = vunpack.c.h.b16 %v2327
  %v3282 = vunpack.c.l.b16 %v2328
  %v3283 = vunpack.c.h.b16 %v2328
  %v3284 = vunpack.c.l.b16 %v2329
  %v3285 = vunpack.c.h.b16 %v2329
  %v3286 = vunpack.c.l.b16 %v2330
  %v3287 = vunpack.c.h.b16 %v2330
  %v3288 = vunpack.c.l.b16 %v2331
  %v3289 = vunpack.c.h.b16 %v2331
  %v3290 = vunpack.c.l.b16 %v2332
  %v3291 = vunpack.c.h.b16 %v2332
  %v3292 = vunpack.c.l.b16 %v2333
  %v3293 = vunpack.c.h.b16 %v2333
  %v3294 = vunpack.c.l.b16 %v2334
  %v3295 = vunpack.c.h.b16 %v2334
  %v3296 = vunpack.c.l.b16 %v2335
  %v3297 = vunpack.c.h.b16 %v2335
  %v3298 = vunpack.c.l.b16 %v2336
  %v3299 = vunpack.c.h.b16 %v2336
  %v3300 = vunpack.c.l.b16 %v2337
  %v3301 = vunpack.c.h.b16 %v2337
  %v3302 = vunpack.c.l.b16 %v2338
  %v3303 = vunpack.c.h.b16 %v2338
  %v3304 = vunpack.c.l.b16 %v2339
  %v3305 = vunpack.c.h.b16 %v2339
  %v3306 = vunpack.c.l.b16 %v2340
  %v3307 = vunpack.c.h.b16 %v2340
  %v3308 = vunpack.c.l.b16 %v2341
  %v3309 = vunpack.c.h.b16 %v2341
  %v3310 = vunpack.c.l.b16 %v2342
  %v3311 = vunpack.c.h.b16 %v2342
  %v3312 = vunpack.c.l.b16 %v2343
  %v3313 = vunpack.c.h.b16 %v2343
  %v3314 = vunpack.c.l.b16 %v2344
  %v3315 = vunpack.c.h.b16 %v2344
  %v3316 = vunpack.c.l.b16 %v2345
  %v3317 = vunpack.c.h.b16 %v2345
  %v3318 = vunpack.c.l.b16 %v2346
  %v3319 = vunpack.c.h.b16 %v2346
  %v3320 = vunpack.c.l.b16 %v2347
  %v3321 = vunpack.c.h.b16 %v2347
  %v3322 = vunpack.c.l.b16 %v2348
  %v3323 = vunpack.c.h.b16 %v2348
  %v3324 = vunpack.c.l.b16 %v2349
  %v3325 = vunpack.c.h.b16 %v2349
  %v3326 = vunpack.c.l.b16 %v2350
  %v3327 = vunpack.c.h.b16 %v2350
  %v3328 = vunpack.c.l.b16 %v2351
  %v3329 = vunpack.c.h.b16 %v2351
  %v3330 = vunpack.c.l.b16 %v2352
  %v3331 = vunpack.c.h.b16 %v2352
  %v3332 = vunpack.c.l.b16 %v2353
  %v3333 = vunpack.c.h.b16 %v2353
  %v3334 = vunpack.c.l.b16 %v2354
  %v3335 = vunpack.c.h.b16 %v2354
  %v3336 = vunpack.c.l.b16 %v2355
  %v3337 = vunpack.c.h.b16 %v2355
  %v3338 = vunpack.c.l.b16 %v2356
  %v3339 = vunpack.c.h.b16 %v2356
  %v3340 = vunpack.c.l.b16 %v2357
  %v3341 = vunpack.c.h.b16 %v2357
  %v3342 = vunpack.c.l.b16 %v2358
  %v3343 = vunpack.c.h.b16 %v2358
  %v3344 = vunpack.c.l.b16 %v2359
  %v3345 = vunpack.c.h.b16 %v2359
  %v3346 = vunpack.c.l.b16 %v2360
  %v3347 = vunpack.c.h.b16 %v2360
  %v3348 = vunpack.c.l.b16 %v2361
  %v3349 = vunpack.c.h.b16 %v2361
  %v3350 = vunpack.c.l.b16 %v2362
  %v3351 = vunpack.c.h.b16 %v2362
  %v3352 = vunpack.c.l.b16 %v2363
  %v3353 = vunpack.c.h.b16 %v2363
  %v3354 = vunpack.c.l.b16 %v2364
  %v3355 = vunpack.c.h.b16 %v2364
  %v3356 = vunpack.c.l.b16 %v2365
  %v3357 = vunpack.c.h.b16 %v2365
  %v3358 = vunpack.c.l.b16 %v2366
  %v3359 = vunpack.c.h.b16 %v2366
  %v3360 = vunpack.c.l.b16 %v2367
  %v3361 = vunpack.c.h.b16 %v2367
  %v3362 = vunpack.c.l.b16 %v2368
  %v3363 = vunpack.c.h.b16 %v2368
  %v3364 = vunpack.c.l.b16 %v2369
  %v3365 = vunpack.c.h.b16 %v2369
  %v3366 = vunpack.c.l.b16 %v2370
  %v3367 = vunpack.c.h.b16 %v2370
  %v3368 = vunpack.c.l.b16 %v2371
  %v3369 = vunpack.c.h.b16 %v2371
  %v3370 = vunpack.c.l.b16 %v2372
  %v3371 = vunpack.c.h.b16 %v2372
  %v3372 = vunpack.c.l.b16 %v2373
  %v3373 = vunpack.c.h.b16 %v2373
  %v3374 = vunpack.c.l.b16 %v2374
  %v3375 = vunpack.c.h.b16 %v2374
  %v3376 = vunpack.c.l.b16 %v2375
  %v3377 = vunpack.c.h.b16 %v2375
  %v3378 = vunpack.c.l.b16 %v2376
  %v3379 = vunpack.c.h.b16 %v2376
  %v3380 = vunpack.c.l.b16 %v2377
  %v3381 = vunpack.c.h.b16 %v2377
  %v3382 = vunpack.c.l.b16 %v2378
  %v3383 = vunpack.c.h.b16 %v2378
  %v3384 = vunpack.c.l.b16 %v2379
  %v3385 = vunpack.c.h.b16 %v2379
  %v3386 = vunpack.c.l.b16 %v2380
  %v3387 = vunpack.c.h.b16 %v2380
  %v3388 = vunpack.c.l.b16 %v2381
  %v3389 = vunpack.c.h.b16 %v2381
  %v3390 = vunpack.c.l.b16 %v2382
  %v3391 = vunpack.c.h.b16 %v2382
  %v3392 = vunpack.c.l.b16 %v2383
  %v3393 = vunpack.c.h.b16 %v2383
  %v3394 = vunpack.c.l.b16 %v2384
  %v3395 = vunpack.c.h.b16 %v2384
  %v3396 = vunpack.c.l.b16 %v2385
  %v3397 = vunpack.c.h.b16 %v2385
  %v3398 = vunpack.c.l.b16 %v2386
  %v3399 = vunpack.c.h.b16 %v2386
  %v3400 = vunpack.c.l.b16 %v2387
  %v3401 = vunpack.c.h.b16 %v2387
  %v3402 = vunpack.c.l.b16 %v2388
  %v3403 = vunpack.c.h.b16 %v2388
  %v3404 = vunpack.c.l.b16 %v2389
  %v3405 = vunpack.c.h.b16 %v2389
  %v3406 = vunpack.c.l.b16 %v2390
  %v3407 = vunpack.c.h.b16 %v2390
  %v3408 = vunpack.c.l.b16 %v2391
  %v3409 = vunpack.c.h.b16 %v2391
  %v3410 = vunpack.c.l.b16 %v2392
  %v3411 = vunpack.c.h.b16 %v2392
  %v3412 = vunpack.c.l.b16 %v2393
  %v3413 = vunpack.c.h.b16 %v2393
  %v3414 = vunpack.c.l.b16 %v2394
  %v3415 = vunpack.c.h.b16 %v2394
  %v3416 = vunpack.c.l.b16 %v2395
  %v3417 = vunpack.c.h.b16 %v2395
  %v3418 = vunpack.c.l.b16 %v2396
  %v3419 = vunpack.c.h.b16 %v2396
  %v3420 = vunpack.c.l.b16 %v2397
  %v3421 = vunpack.c.h.b16 %v2397
  %v3422 = vunpack.c.l.b16 %v2398
  %v3423 = vunpack.c.h.b16 %v2398
  %v3424 = vunpack.c.l.b16 %v2399
  %v3425 = vunpack.c.h.b16 %v2399
  %v3426 = vunpack.c.l.b16 %v2400
  %v3427 = vunpack.c.h.b16 %v2400
  %v3428 = vunpack.c.l.b16 %v2401
  %v3429 = vunpack.c.h.b16 %v2401
  %v3430 = vunpack.c.l.b16 %v2402
  %v3431 = vunpack.c.h.b16 %v2402
  %v3432 = vunpack.c.l.b16 %v2403
  %v3433 = vunpack.c.h.b16 %v2403
  %v3434 = vunpack.c.l.b16 %v2404
  %v3435 = vunpack.c.h.b16 %v2404
  %v3436 = vunpack.c.l.b16 %v2405
  %v3437 = vunpack.c.h.b16 %v2405
  %v3438 = vunpack.c.l.b16 %v2406
  %v3439 = vunpack.c.h.b16 %v2406
  %v3440 = vunpack.c.l.b16 %v2407
  %v3441 = vunpack.c.h.b16 %v2407
  %v3442 = vunpack.c.l.b16 %v2408
  %v3443 = vunpack.c.h.b16 %v2408
  %v3444 = vunpack.c.l.b16 %v2409
  %v3445 = vunpack.c.h.b16 %v2409
  %v3446 = vunpack.c.l.b16 %v2410
  %v3447 = vunpack.c.h.b16 %v2410
  %v3448 = vunpack.c.l.b16 %v2411
  %v3449 = vunpack.c.h.b16 %v2411
  %v3450 = vunpack.c.l.b16 %v2412
  %v3451 = vunpack.c.h.b16 %v2412
  %v3452 = vunpack.c.l.b16 %v2413
  %v3453 = vunpack.c.h.b16 %v2413
  %v3454 = vunpack.c.l.b16 %v2414
  %v3455 = vunpack.c.h.b16 %v2414
  %v3456 = vunpack.c.l.b16 %v2415
  %v3457 = vunpack.c.h.b16 %v2415
  %v3458 = vunpack.c.l.b16 %v2416
  %v3459 = vunpack.c.h.b16 %v2416
  %v3460 = vunpack.c.l.b16 %v2417
  %v3461 = vunpack.c.h.b16 %v2417
  %v3462 = vunpack.c.l.b16 %v2418
  %v3463 = vunpack.c.h.b16 %v2418
  %v3464 = vunpack.c.l.b16 %v2419
  %v3465 = vunpack.c.h.b16 %v2419
  %v3466 = vunpack.c.l.b16 %v2420
  %v3467 = vunpack.c.h.b16 %v2420
  %v3468 = vunpack.c.l.b16 %v2421
  %v3469 = vunpack.c.h.b16 %v2421
  %v3470 = vunpack.c.l.b16 %v2422
  %v3471 = vunpack.c.h.b16 %v2422
  %v3472 = vunpack.c.l.b16 %v2423
  %v3473 = vunpack.c.h.b16 %v2423
  %v3474 = vunpack.c.l.b16 %v2424
  %v3475 = vunpack.c.h.b16 %v2424
  %v3476 = vunpack.c.l.b16 %v2425
  %v3477 = vunpack.c.h.b16 %v2425
  %v3478 = vunpack.c.l.b16 %v2426
  %v3479 = vunpack.c.h.b16 %v2426
  %v3480 = vunpack.c.l.b16 %v2427
  %v3481 = vunpack.c.h.b16 %v2427
  %v3482 = vunpack.c.l.b16 %v2428
  %v3483 = vunpack.c.h.b16 %v2428
  %v3484 = vunpack.c.l.b16 %v2429
  %v3485 = vunpack.c.h.b16 %v2429
  %v3486 = vunpack.c.l.b16 %v2430
  %v3487 = vunpack.c.h.b16 %v2430
  %v3488 = vunpack.c.l.b16 %v2431
  %v3489 = vunpack.c.h.b16 %v2431
  %v3490 = vunpack.c.l.b16 %v2432
  %v3491 = vunpack.c.h.b16 %v2432
  %v3492 = vunpack.c.l.b16 %v2433
  %v3493 = vunpack.c.h.b16 %v2433
  %v3494 = vunpack.c.l.b16 %v2434
  %v3495 = vunpack.c.h.b16 %v2434
  %v3496 = vunpack.c.l.b16 %v2435
  %v3497 = vunpack.c.h.b16 %v2435
  %v3498 = vunpack.c.l.b16 %v2436
  %v3499 = vunpack.c.h.b16 %v2436
  %v3500 = vunpack.c.l.b16 %v2437
  %v3501 = vunpack.c.h.b16 %v2437
  %v3502 = vunpack.c.l.b16 %v2438
  %v3503 = vunpack.c.h.b16 %v2438
  %v3504 = vunpack.c.l.b16 %v2439
  %v3505 = vunpack.c.h.b16 %v2439
  %v3506 = vunpack.c.l.b16 %v2440
  %v3507 = vunpack.c.h.b16 %v2440
  %v3508 = vunpack.c.l.b16 %v2441
  %v3509 = vunpack.c.h.b16 %v2441
  %v3510 = vunpack.c.l.b16 %v2442
  %v3511 = vunpack.c.h.b16 %v2442
  %v3512 = vunpack.c.l.b16 %v2443
  %v3513 = vunpack.c.h.b16 %v2443
  %v3514 = vunpack.c.l.b16 %v2444
  %v3515 = vunpack.c.h.b16 %v2444
  %v3516 = vunpack.c.l.b16 %v2445
  %v3517 = vunpack.c.h.b16 %v2445
  %v3518 = vunpack.c.l.b16 %v2446
  %v3519 = vunpack.c.h.b16 %v2446
  %v3520 = vunpack.c.l.b16 %v2447
  %v3521 = vunpack.c.h.b16 %v2447
  %v3522 = vunpack.c.l.b16 %v2448
  %v3523 = vunpack.c.h.b16 %v2448
  %v3524 = vunpack.c.l.b16 %v2449
  %v3525 = vunpack.c.h.b16 %v2449
  %v3526 = vunpack.c.l.b16 %v2450
  %v3527 = vunpack.c.h.b16 %v2450
  %v3528 = vunpack.c.l.b16 %v2451
  %v3529 = vunpack.c.h.b16 %v2451
  %v3530 = vunpack.c.l.b16 %v2452
  %v3531 = vunpack.c.h.b16 %v2452
  %v3532 = vunpack.c.l.b16 %v2453
  %v3533 = vunpack.c.h.b16 %v2453
  %v3534 = vunpack.c.l.b16 %v2454
  %v3535 = vunpack.c.h.b16 %v2454
  %v3536 = vunpack.c.l.b16 %v2455
  %v3537 = vunpack.c.h.b16 %v2455
  %v3538 = vunpack.c.l.b16 %v2456
  %v3539 = vunpack.c.h.b16 %v2456
  %v3540 = vunpack.c.l.b16 %v2457
  %v3541 = vunpack.c.h.b16 %v2457
  %v3542 = vunpack.c.l.b16 %v2458
  %v3543 = vunpack.c.h.b16 %v2458
  %v3544 = vunpack.c.l.b16 %v2459
  %v3545 = vunpack.c.h.b16 %v2459
  %v3546 = vunpack.c.l.b16 %v2460
  %v3547 = vunpack.c.h.b16 %v2460
  %v3548 = vunpack.c.l.b16 %v2461
  %v3549 = vunpack.c.h.b16 %v2461
  %v3550 = vunpack.c.l.b16 %v2462
  %v3551 = vunpack.c.h.b16 %v2462
  %v3552 = vunpack.c.l.b16 %v2463
  %v3553 = vunpack.c.h.b16 %v2463
  %v3554 = vunpack.c.l.b16 %v2464
  %v3555 = vunpack.c.h.b16 %v2464
  %v3556 = vunpack.c.l.b16 %v2465
  %v3557 = vunpack.c.h.b16 %v2465
  %v3558 = vunpack.c.l.b16 %v2466
  %v3559 = vunpack.c.h.b16 %v2466
  %v3560 = vunpack.c.l.b16 %v2467
  %v3561 = vunpack.c.h.b16 %v2467
  %v3562 = vunpack.c.l.b16 %v2468
  %v3563 = vunpack.c.h.b16 %v2468
  %v3564 = vunpack.c.l.b16 %v2469
  %v3565 = vunpack.c.h.b16 %v2469
  %v3566 = vunpack.c.l.b16 %v2470
  %v3567 = vunpack.c.h.b16 %v2470
  %v3568 = vunpack.c.l.b16 %v2471
  %v3569 = vunpack.c.h.b16 %v2471
  %v3570 = vunpack.c.l.b16 %v2472
  %v3571 = vunpack.c.h.b16 %v2472
  %v3572 = vunpack.c.l.b16 %v2473
  %v3573 = vunpack.c.h.b16 %v2473
  %v3574 = vunpack.c.l.b16 %v2474
  %v3575 = vunpack.c.h.b16 %v2474
  %v3576 = vunpack.c.l.b16 %v2475
  %v3577 = vunpack.c.h.b16 %v2475
  %v3578 = vunpack.c.l.b16 %v2476
  %v3579 = vunpack.c.h.b16 %v2476
  %v3580 = vunpack.c.l.b16 %v2477
  %v3581 = vunpack.c.h.b16 %v2477
  %v3582 = vunpack.c.l.b16 %v2478
  %v3583 = vunpack.c.h.b16 %v2478
  %v3584 = vunpack.c.l.b16 %v2479
  %v3585 = vunpack.c.h.b16 %v2479
  %v3586 = vunpack.c.l.b16 %v2480
  %v3587 = vunpack.c.h.b16 %v2480
  %v3588 = vunpack.c.l.b16 %v2481
  %v3589 = vunpack.c.h.b16 %v2481
  %v3590 = vunpack.c.l.b16 %v2482
  %v3591 = vunpack.c.h.b16 %v2482
  %v3592 = vunpack.c.l.b16 %v2483
  %v3593 = vunpack.c.h.b16 %v2483
  %v3594 = vunpack.c.l.b16 %v2484
  %v3595 = vunpack.c.h.b16 %v2484
  %v3596 = vunpack.c.l.b16 %v2485
  %v3597 = vunpack.c.h.b16 %v2485
  %v3598 = vunpack.c.l.b16 %v2486
  %v3599 = vunpack.c.h.b16 %v2486
  %v3600 = vunpack.c.l.b16 %v2487
  %v3601 = vunpack.c.h.b16 %v2487
  %v3602 = vunpack.c.l.b16 %v2488
  %v3603 = vunpack.c.h.b16 %v2488
  %v3604 = vunpack.c.l.b16 %v2489
  %v3605 = vunpack.c.h.b16 %v2489
  %v3606 = vunpack.c.l.b16 %v2490
  %v3607 = vunpack.c.h.b16 %v2490
  %v3608 = vunpack.c.l.b16 %v2491
  %v3609 = vunpack.c.h.b16 %v2491
  %v3610 = vunpack.c.l.b16 %v2492
  %v3611 = vunpack.c.h.b16 %v2492
  %v3612 = vunpack.c.l.b16 %v2493
  %v3613 = vunpack.c.h.b16 %v2493
  %v3614 = vunpack.c.l.b16 %v2494
  %v3615 = vunpack.c.h.b16 %v2494
  %v3616 = vunpack.c.l.b16 %v2495
  %v3617 = vunpack.c.h.b16 %v2495
  %v3618 = vunpack.c.l.b16 %v2496
  %v3619 = vunpack.c.h.b16 %v2496
  %v3620 = vunpack.c.l.b16 %v2497
  %v3621 = vunpack.c.h.b16 %v2497
  %v3622 = vunpack.c.l.b16 %v2498
  %v3623 = vunpack.c.h.b16 %v2498
  %v3624 = vunpack.c.l.b16 %v2499
  %v3625 = vunpack.c.h.b16 %v2499
  %v3626 = vunpack.c.l.b16 %v2500
  %v3627 = vunpack.c.h.b16 %v2500
  %v3628 = vunpack.c.l.b16 %v2501
  %v3629 = vunpack.c.h.b16 %v2501
  %v3630 = vunpack.c.l.b16 %v2502
  %v3631 = vunpack.c.h.b16 %v2502
  %v3632 = vunpack.c.l.b16 %v2503
  %v3633 = vunpack.c.h.b16 %v2503
  %v3634 = vunpack.c.l.b16 %v2504
  %v3635 = vunpack.c.h.b16 %v2504
  %v3636 = vunpack.c.l.b16 %v2505
  %v3637 = vunpack.c.h.b16 %v2505
  %v3638 = vunpack.c.l.b16 %v2506
  %v3639 = vunpack.c.h.b16 %v2506
  %v3640 = vunpack.c.l.b16 %v2507
  %v3641 = vunpack.c.h.b16 %v2507
  %v3642 = vunpack.c.l.b16 %v2508
  %v3643 = vunpack.c.h.b16 %v2508
  %v3644 = vunpack.c.l.b16 %v2509
  %v3645 = vunpack.c.h.b16 %v2509
  %v3646 = vunpack.c.l.b16 %v2510
  %v3647 = vunpack.c.h.b16 %v2510
  %v3648 = vunpack.c.l.b16 %v2511
  %v3649 = vunpack.c.h.b16 %v2511
  %v3650 = vunpack.c.l.b16 %v2512
  %v3651 = vunpack.c.h.b16 %v2512
  %v3652 = vunpack.c.l.b16 %v2513
  %v3653 = vunpack.c.h.b16 %v2513
  %v3654 = vunpack.c.l.b16 %v2514
  %v3655 = vunpack.c.h.b16 %v2514
  %v3656 = vunpack.c.l.b16 %v2515
  %v3657 = vunpack.c.h.b16 %v2515
  %v3658 = vunpack.c.l.b16 %v2516
  %v3659 = vunpack.c.h.b16 %v2516
  %v3660 = vunpack.c.l.b16 %v2517
  %v3661 = vunpack.c.h.b16 %v2517
  %v3662 = vunpack.c.l.b16 %v2518
  %v3663 = vunpack.c.h.b16 %v2518
  %v3664 = vunpack.c.l.b16 %v2519
  %v3665 = vunpack.c.h.b16 %v2519
  %v3666 = vunpack.c.l.b16 %v2520
  %v3667 = vunpack.c.h.b16 %v2520
  %v3668 = vunpack.c.l.b16 %v2521
  %v3669 = vunpack.c.h.b16 %v2521
  %v3670 = vunpack.c.l.b16 %v2522
  %v3671 = vunpack.c.h.b16 %v2522
  %v3672 = vunpack.c.l.b16 %v2523
  %v3673 = vunpack.c.h.b16 %v2523
  %v3674 = vunpack.c.l.b16 %v2524
  %v3675 = vunpack.c.h.b16 %v2524
  %v3676 = vunpack.c.l.b16 %v2525
  %v3677 = vunpack.c.h.b16 %v2525
  %v3678 = vunpack.c.l.b16 %v2526
  %v3679 = vunpack.c.h.b16 %v2526
  %v3680 = vunpack.c.l.b16 %v2527
  %v3681 = vunpack.c.h.b16 %v2527
  %v3682 = vunpack.c.l.b16 %v2528
  %v3683 = vunpack.c.h.b16 %v2528
  %v3684 = vunpack.c.l.b16 %v2529
  %v3685 = vunpack.c.h.b16 %v2529
  %v3686 = vunpack.c.l.b16 %v2530
  %v3687 = vunpack.c.h.b16 %v2530
  %v3688 = vunpack.c.l.b16 %v2531
  %v3689 = vunpack.c.h.b16 %v2531
  %v3690 = vunpack.c.l.b16 %v2532
  %v3691 = vunpack.c.h.b16 %v2532
  %v3692 = vunpack.c.l.b16 %v2533
  %v3693 = vunpack.c.h.b16 %v2533
  %v3694 = vunpack.c.l.b16 %v2534
  %v3695 = vunpack.c.h.b16 %v2534
  %v3696 = vunpack.c.l.b16 %v2535
  %v3697 = vunpack.c.h.b16 %v2535
  %v3698 = vunpack.c.l.b16 %v2536
  %v3699 = vunpack.c.h.b16 %v2536
  %v3700 = vunpack.c.l.b16 %v2537
  %v3701 = vunpack.c.h.b16 %v2537
  %v3702 = vunpack.c.l.b16 %v2538
  %v3703 = vunpack.c.h.b16 %v2538
  %v3704 = vunpack.c.l.b16 %v2539
  %v3705 = vunpack.c.h.b16 %v2539
  %v3706 = vunpack.c.l.b16 %v2540
  %v3707 = vunpack.c.h.b16 %v2540
  %v3708 = vunpack.c.l.b16 %v2541
  %v3709 = vunpack.c.h.b16 %v2541
  %v3710 = vunpack.c.l.b16 %v2542
  %v3711 = vunpack.c.h.b16 %v2542
  %v3712 = vunpack.c.l.b16 %v2543
  %v3713 = vunpack.c.h.b16 %v2543
  %v3714 = vunpack.c.l.b16 %v2544
  %v3715 = vunpack.c.h.b16 %v2544
  %v3716 = vunpack.c.l.b16 %v2545
  %v3717 = vunpack.c.h.b16 %v2545
  %v3718 = vunpack.c.l.b16 %v2546
  %v3719 = vunpack.c.h.b16 %v2546
  %v3720 = vunpack.c.l.b16 %v2547
  %v3721 = vunpack.c.h.b16 %v2547
  %v3722 = vunpack.c.l.b16 %v2548
  %v3723 = vunpack.c.h.b16 %v2548
  %v3724 = vunpack.c.l.b16 %v2549
  %v3725 = vunpack.c.h.b16 %v2549
  %v3726 = vunpack.c.l.b16 %v2550
  %v3727 = vunpack.c.h.b16 %v2550
  %v3728 = vunpack.c.l.b16 %v2551
  %v3729 = vunpack.c.h.b16 %v2551
  %v3730 = vunpack.c.l.b16 %v2552
  %v3731 = vunpack.c.h.b16 %v2552
  %v3732 = vunpack.c.l.b16 %v2553
  %v3733 = vunpack.c.h.b16 %v2553
  %v3734 = vunpack.c.l.b16 %v2554
  %v3735 = vunpack.c.h.b16 %v2554
  %v3736 = vunpack.c.l.b16 %v2555
  %v3737 = vunpack.c.h.b16 %v2555
  %v3738 = vunpack.c.l.b16 %v2556
  %v3739 = vunpack.c.h.b16 %v2556
  %v3740 = vunpack.c.l.b16 %v2557
  %v3741 = vunpack.c.h.b16 %v2557
  %v3742 = vunpack.c.l.b16 %v2558
  %v3743 = vunpack.c.h.b16 %v2558
  %v3744 = vunpack.c.l.b16 %v2559
  %v3745 = vunpack.c.h.b16 %v2559
  %v3746 = vunpack.c.l.b16 %v2560
  %v3747 = vunpack.c.h.b16 %v2560
  %v3748 = vunpack.c.l.b16 %v2561
  %v3749 = vunpack.c.h.b16 %v2561
  %v3750 = vunpack.c.l.b16 %v2562
  %v3751 = vunpack.c.h.b16 %v2562
  %v3752 = vunpack.c.l.b16 %v2563
  %v3753 = vunpack.c.h.b16 %v2563
  %v3754 = vunpack.c.l.b16 %v2564
  %v3755 = vunpack.c.h.b16 %v2564
  %v3756 = vunpack.c.l.b16 %v2565
  %v3757 = vunpack.c.h.b16 %v2565
  %v3758 = vunpack.c.l.b16 %v2566
  %v3759 = vunpack.c.h.b16 %v2566
  %v3760 = vunpack.c.l.b16 %v2567
  %v3761 = vunpack.c.h.b16 %v2567
  %v3762 = vunpack.c.l.b16 %v2568
  %v3763 = vunpack.c.h.b16 %v2568
  %v3764 = vunpack.c.l.b16 %v2569
  %v3765 = vunpack.c.h.b16 %v2569
  %v3766 = vunpack.c.l.b16 %v2570
  %v3767 = vunpack.c.h.b16 %v2570
  %v3768 = vunpack.c.l.b16 %v2571
  %v3769 = vunpack.c.h.b16 %v2571
  %v3770 = vunpack.c.l.b16 %v2572
  %v3771 = vunpack.c.h.b16 %v2572
  %v3772 = vunpack.c.l.b16 %v2573
  %v3773 = vunpack.c.h.b16 %v2573
  %v3774 = vunpack.c.l.b16 %v2574
  %v3775 = vunpack.c.h.b16 %v2574
  %v3776 = vpack.c.b16 %v2978, %v2976
  %v3777 = vpack.c.b16 %v2979, %v2977
  %v3778 = vpack.c.b16 %v2982, %v2980
  %v3779 = vpack.c.b16 %v2983, %v2981
  %v3780 = vpack.c.b16 %v2986, %v2984
  %v3781 = vpack.c.b16 %v2987, %v2985
  %v3782 = vpack.c.b16 %v2990, %v2988
  %v3783 = vpack.c.b16 %v2991, %v2989
  %v3784 = vpack.c.b16 %v2994, %v2992
  %v3785 = vpack.c.b16 %v2995, %v2993
  %v3786 = vpack.c.b16 %v2998, %v2996
  %v3787 = vpack.c.b16 %v2999, %v2997
  %v3788 = vpack.c.b16 %v3002, %v3000
  %v3789 = vpack.c.b16 %v3003, %v3001
  %v3790 = vpack.c.b16 %v3006, %v3004
  %v3791 = vpack.c.b16 %v3007, %v3005
  %v3792 = vpack.c.b16 %v3010, %v3008
  %v3793 = vpack.c.b16 %v3011, %v3009
  %v3794 = vpack.c.b16 %v3014, %v3012
  %v3795 = vpack.c.b16 %v3015, %v3013
  %v3796 = vpack.c.b16 %v3018, %v3016
  %v3797 = vpack.c.b16 %v3019, %v3017
  %v3798 = vpack.c.b16 %v3022, %v3020
  %v3799 = vpack.c.b16 %v3023, %v3021
  %v3800 = vpack.c.b16 %v3026, %v3024
  %v3801 = vpack.c.b16 %v3027, %v3025
  %v3802 = vpack.c.b16 %v3030, %v3028
  %v3803 = vpack.c.b16 %v3031, %v3029
  %v3804 = vpack.c.b16 %v3034, %v3032
  %v3805 = vpack.c.b16 %v3035, %v3033
  %v3806 = vpack.c.b16 %v3038, %v3036
  %v3807 = vpack.c.b16 %v3039, %v3037
  %v3808 = vpack.c.b16 %v3042, %v3040
  %v3809 = vpack.c.b16 %v3043, %v3041
  %v3810 = vpack.c.b16 %v3046, %v3044
  %v3811 = vpack.c.b16 %v3047, %v3045
  %v3812 = vpack.c.b16 %v3050, %v3048
  %v3813 = vpack.c.b16 %v3051, %v3049
  %v3814 = vpack.c.b16 %v3054, %v3052
  %v3815 = vpack.c.b16 %v3055, %v3053
  %v3816 = vpack.c.b16 %v3058, %v3056
  %v3817 = vpack.c.b16 %v3059, %v3057
  %v3818 = vpack.c.b16 %v3062, %v3060
  %v3819 = vpack.c.b16 %v3063, %v3061
  %v3820 = vpack.c.b16 %v3066, %v3064
  %v3821 = vpack.c.b16 %v3067, %v3065
  %v3822 = vpack.c.b16 %v3070, %v3068
  %v3823 = vpack.c.b16 %v3071, %v3069
  %v3824 = vpack.c.b16 %v3074, %v3072
  %v3825 = vpack.c.b16 %v3075, %v3073
  %v3826 = vpack.c.b16 %v3078, %v3076
  %v3827 = vpack.c.b16 %v3079, %v3077
  %v3828 = vpack.c.b16 %v3082, %v3080
  %v3829 = vpack.c.b16 %v3083, %v3081
  %v3830 = vpack.c.b16 %v3086, %v3084
  %v3831 = vpack.c.b16 %v3087, %v3085
  %v3832 = vpack.c.b16 %v3090, %v3088
  %v3833 = vpack.c.b16 %v3091, %v3089
  %v3834 = vpack.c.b16 %v3094, %v3092
  %v3835 = vpack.c.b16 %v3095, %v3093
  %v3836 = vpack.c.b16 %v3098, %v3096
  %v3837 = vpack.c.b16 %v3099, %v3097
  %v3838 = vpack.c.b16 %v3102, %v3100
  %v3839 = vpack.c.b16 %v3103, %v3101
  %v3840 = vpack.c.b16 %v3106, %v3104
  %v3841 = vpack.c.b16 %v3107, %v3105
  %v3842 = vpack.c.b16 %v3110, %v3108
  %v3843 = vpack.c.b16 %v3111, %v3109
  %v3844 = vpack.c.b16 %v3114, %v3112
  %v3845 = vpack.c.b16 %v3115, %v3113
  %v3846 = vpack.c.b16 %v3118, %v3116
  %v3847 = vpack.c.b16 %v3119, %v3117
  %v3848 = vpack.c.b16 %v3122, %v3120
  %v3849 = vpack.c.b16 %v3123, %v3121
  %v3850 = vpack.c.b16 %v3126, %v3124
  %v3851 = vpack.c.b16 %v3127, %v3125
  %v3852 = vpack.c.b16 %v3130, %v3128
  %v3853 = vpack.c.b16 %v3131, %v3129
  %v3854 = vpack.c.b16 %v3134, %v3132
  %v3855 = vpack.c.b16 %v3135, %v3133
  %v3856 = vpack.c.b16 %v3138, %v3136
  %v3857 = vpack.c.b16 %v3139, %v3137
  %v3858 = vpack.c.b16 %v3142, %v3140
  %v3859 = vpack.c.b16 %v3143, %v3141
  %v3860 = vpack.c.b16 %v3146, %v3144
  %v3861 = vpack.c.b16 %v3147, %v3145
  %v3862 = vpack.c.b16 %v3150, %v3148
  %v3863 = vpack.c.b16 %v3151, %v3149
  %v3864 = vpack.c.b16 %v3154, %v3152
  %v3865 = vpack.c.b16 %v3155, %v3153
  %v3866 = vpack.c.b16 %v3158, %v3156
  %v3867 = vpack.c.b16 %v3159, %v3157
  %v3868 = vpack.c.b16 %v3162, %v3160
  %v3869 = vpack.c.b16 %v3163, %v3161
  %v3870 = vpack.c.b16 %v3166, %v3164
  %v3871 = vpack.c.b16 %v3167, %v3165
  %v3872 = vpack.c.b16 %v3170, %v3168
  %v3873 = vpack.c.b16 %v3171, %v3169
  %v3874 = vpack.c.b16 %v3174, %v3172
  %v3875 = vpack.c.b16 %v3175, %v3173
  %v3876 = vpack.c.b16 %v3178, %v3176
  %v3877 = vpack.c.b16 %v3179, %v3177
  %v3878 = vpack.c.b16 %v3182, %v3180
  %v3879 = vpack.c.b16 %v3183, %v3181
  %v3880 = vpack.c.b16 %v3186, %v3184
  %v3881 = vpack.c.b16 %v3187, %v3185
  %v3882 = vpack.c.b16 %v3190, %v3188
  %v3883 = vpack.c.b16 %v3191, %v3189
  %v3884 = vpack.c.b16 %v3194, %v3192
  %v3885 = vpack.c.b16 %v3195, %v3193
  %v3886 = vpack.c.b16 %v3198, %v3196
  %v3887 = vpack.c.b16 %v3199, %v3197
  %v3888 = vpack.c.b16 %v3202, %v3200
  %v3889 = vpack.c.b16 %v3203, %v3201
  %v3890 = vpack.c.b16 %v3206, %v3204
  %v3891 = vpack.c.b16 %v3207, %v3205
  %v3892 = vpack.c.b16 %v3210, %v3208
  %v3893 = vpack.c.b16 %v3211, %v3209
  %v3894 = vpack.c.b16 %v3214, %v3212
  %v3895 = vpack.c.b16 %v3215, %v3213
  %v3896 = vpack.c.b16 %v3218, %v3216
  %v3897 = vpack.c.b16 %v3219, %v3217
  %v3898 = vpack.c.b16 %v3222, %v3220
  %v3899 = vpack.c.b16 %v3223, %v3221
  %v3900 = vpack.c.b16 %v3226, %v3224
  %v3901 = vpack.c.b16 %v3227, %v3225
  %v3902 = vpack.c.b16 %v3230, %v3228
  %v3903 = vpack.c.b16 %v3231, %v3229
  %v3904 = vpack.c.b16 %v3234, %v3232
  %v3905 = vpack.c.b16 %v3235, %v3233
  %v3906 = vpack.c.b16 %v3238, %v3236
  %v3907 = vpack.c.b16 %v3239, %v3237
  %v3908 = vpack.c.b16 %v3242, %v3240
  %v3909 = vpack.c.b16 %v3243, %v3241
  %v3910 = vpack.c.b16 %v3246, %v3244
  %v3911 = vpack.c.b16 %v3247, %v3245
  %v3912 = vpack.c.b16 %v3250, %v3248
  %v3913 = vpack.c.b16 %v3251, %v3249
  %v3914 = vpack.c.b16 %v3254, %v3252
  %v3915 = vpack.c.b16 %v3255, %v3253
  %v3916 = vpack.c.b16 %v3258, %v3256
  %v3917 = vpack.c.b16 %v3259, %v3257
  %v3918 = vpack.c.b16 %v3262, %v3260
  %v3919 = vpack.c.b16 %v3263, %v3261
  %v3920 = vpack.c.b16 %v3266, %v3264
  %v3921 = vpack.c.b16 %v3267, %v3265
  %v3922 = vpack.c.b16 %v3270, %v3268
  %v3923 = vpack.c.b16 %v3271, %v3269
  %v3924 = vpack.c.b16 %v3274, %v3272
  %v3925 = vpack.c.b16 %v3275, %v3273
  %v3926 = vpack.c.b16 %v3278, %v3276
  %v3927 = vpack.c.b16 %v3279, %v3277
  %v3928 = vpack.c.b16 %v3282, %v3280
  %v3929 = vpack.c.b16 %v3283, %v3281
  %v3930 = vpack.c.b16 %v3286, %v3284
  %v3931 = vpack.c.b16 %v3287, %v3285
  %v3932 = vpack.c.b16 %v3290, %v3288
  %v3933 = vpack.c.b16 %v3291, %v3289
  %v3934 = vpack.c.b16 %v3294, %v3292
  %v3935 = vpack.c.b16 %v3295, %v3293
  %v3936 = vpack.c.b16 %v3298, %v3296
  %v3937 = vpack.c.b16 %v3299, %v3297
  %v3938 = vpack.c.b16 %v3302, %v3300
  %v3939 = vpack.c.b16 %v3303, %v3301
  %v3940 = vpack.c.b16 %v3306, %v3304
  %v3941 = vpack.c.b16 %v3307, %v3305
  %v3942 = vpack.c.b16 %v3310, %v3308
  %v3943 = vpack.c.b16 %v3311, %v3309
  %v3944 = vpack.c.b16 %v3314, %v3312
  %v3945 = vpack.c.b16 %v3315, %v3313
  %v3946 = vpack.c.b16 %v3318, %v3316
  %v3947 = vpack.c.b16 %v3319, %v3317
  %v3948 = vpack.c.b16 %v3322, %v3320
  %v3949 = vpack.c.b16 %v3323, %v3321
  %v3950 = vpack.c.b16 %v3326, %v3324
  %v3951 = vpack.c.b16 %v3327, %v3325
  %v3952 = vpack.c.b16 %v3330, %v3328
  %v3953 = vpack.c.b16 %v3331, %v3329
  %v3954 = vpack.c.b16 %v3334, %v3332
  %v3955 = vpack.c.b16 %v3335, %v3333
  %v3956 = vpack.c.b16 %v3338, %v3336
  %v3957 = vpack.c.b16 %v3339, %v3337
  %v3958 = vpack.c.b16 %v3342, %v3340
  %v3959 = vpack.c.b16 %v3343, %v3341
  %v3960 = vpack.c.b16 %v3346, %v3344
  %v3961 = vpack.c.b16 %v3347, %v3345
  %v3962 = vpack.c.b16 %v3350, %v3348
  %v3963 = vpack.c.b16 %v3351, %v3349
  %v3964 = vpack.c.b16 %v3354, %v3352
  %v3965 = vpack.c.b16 %v3355, %v3353
  %v3966 = vpack.c.b16 %v3358, %v3356
  %v3967 = vpack.c.b16 %v3359, %v3357
  %v3968 = vpack.c.b16 %v3362, %v3360
  %v3969 = vpack.c.b16 %v3363, %v3361
  %v3970 = vpack.c.b16 %v3366, %v3364
  %v3971 = vpack.c.b16 %v3367, %v3365
  %v3972 = vpack.c.b16 %v3370, %v3368
  %v3973 = vpack.c.b16 %v3371, %v3369
  %v3974 = vpack.c.b16 %v3374, %v3372
  %v3975 = vpack.c.b16 %v3375, %v3373
  %v3976 = vpack.c.b16 %v3378, %v3376
  %v3977 = vpack.c.b16 %v3379, %v3377
  %v3978 = vpack.c.b16 %v3382, %v3380
  %v3979 = vpack.c.b16 %v3383, %v3381
  %v3980 = vpack.c.b16 %v3386, %v3384
  %v3981 = vpack.c.b16 %v3387, %v3385
  %v3982 = vpack.c.b16 %v3390, %v3388
  %v3983 = vpack.c.b16 %v3391, %v3389
  %v3984 = vpack.c.b16 %v3394, %v3392
  %v3985 = vpack.c.b16 %v3395, %v3393
  %v3986 = vpack.c.b16 %v3398, %v3396
  %v3987 = vpack.c.b16 %v3399, %v3397
  %v3988 = vpack.c.b16 %v3402, %v3400
  %v3989 = vpack.c.b16 %v3403, %v3401
  %v3990 = vpack.c.b16 %v3406, %v3404
  %v3991 = vpack.c.b16 %v3407, %v3405
  %v3992 = vpack.c.b16 %v3410, %v3408
  %v3993 = vpack.c.b16 %v3411, %v3409
  %v3994 = vpack.c.b16 %v3414, %v3412
  %v3995 = vpack.c.b16 %v3415, %v3413
  %v3996 = vpack.c.b16 %v3418, %v3416
  %v3997 = vpack.c.b16 %v3419, %v3417
  %v3998 = vpack.c.b16 %v3422, %v3420
  %v3999 = vpack.c.b16 %v3423, %v3421
  %v4000 = vpack.c.b16 %v3426, %v3424
  %v4001 = vpack.c.b16 %v3427, %v3425
  %v4002 = vpack.c.b16 %v3430, %v3428
  %v4003 = vpack.c.b16 %v3431, %v3429
  %v4004 = vpack.c.b16 %v3434, %v3432
  %v4005 = vpack.c.b16 %v3435, %v3433
  %v4006 = vpack.c.b16 %v3438, %v3436
  %v4007 = vpack.c.b16 %v3439, %v3437
  %v4008 = vpack.c.b16 %v3442, %v3440
  %v4009 = vpack.c.b16 %v3443, %v3441
  %v4010 = vpack.c.b16 %v3446, %v3444
  %v4011 = vpack.c.b16 %v3447, %v3445
  %v4012 = vpack.c.b16 %v3450, %v3448
  %v4013 = vpack.c.b16 %v3451, %v3449
  %v4014 = vpack.c.b16 %v3454, %v3452
  %v4015 = vpack.c.b16 %v3455, %v3453
  %v4016 = vpack.c.b16 %v3458, %v3456
  %v4017 = vpack.c.b16 %v3459, %v3457
  %v4018 = vpack.c.b16 %v3462, %v3460
  %v4019 = vpack.c.b16 %v3463, %v3461
  %v4020 = vpack.c.b16 %v3466, %v3464
  %v4021 = vpack.c.b16 %v3467, %v3465
  %v4022 = vpack.c.b16 %v3470, %v3468
  %v4023 = vpack.c.b16 %v3471, %v3469
  %v4024 = vpack.c.b16 %v3474, %v3472
  %v4025 = vpack.c.b16 %v3475, %v3473
  %v4026 = vpack.c.b16 %v3478, %v3476
  %v4027 = vpack.c.b16 %v3479, %v3477
  %v4028 = vpack.c.b16 %v3482, %v3480
  %v4029 = vpack.c.b16 %v3483, %v3481
  %v4030 = vpack.c.b16 %v3486, %v3484
  %v4031 = vpack.c.b16 %v3487, %v3485
  %v4032 = vpack.c.b16 %v3490, %v3488
  %v4033 = vpack.c.b16 %v3491, %v3489
  %v4034 = vpack.c.b16 %v3494, %v3492
  %v4035 = vpack.c.b16 %v3495, %v3493
  %v4036 = vpack.c.b16 %v3498, %v3496
  %v4037 = vpack.c.b16 %v3499, %v3497
  %v4038 = vpack.c.b16 %v3502, %v3500
  %v4039 = vpack.c.b16 %v3503, %v3501
  %v4040 = vpack.c.b16 %v3506, %v3504
  %v4041 = vpack.c.b16 %v3507, %v3505
  %v4042 = vpack.c.b16 %v3510, %v3508
  %v4043 = vpack.c.b16 %v3511, %v3509
  %v4044 = vpack.c.b16 %v3514, %v3512
  %v4045 = vpack.c.b16 %v3515, %v3513
  %v4046 = vpack.c.b16 %v3518, %v3516
  %v4047 = vpack.c.b16 %v3519, %v3517
  %v4048 = vpack.c.b16 %v3522, %v3520
  %v4049 = vpack.c.b16 %v3523, %v3521
  %v4050 = vpack.c.b16 %v3526, %v3524
  %v4051 = vpack.c.b16 %v3527, %v3525
  %v4052 = vpack.c.b16 %v3530, %v3528
  %v4053 = vpack.c.b16 %v3531, %v3529
  %v4054 = vpack.c.b16 %v3534, %v3532
  %v4055 = vpack.c.b16 %v3535, %v3533
  %v4056 = vpack.c.b16 %v3538, %v3536
  %v4057 = vpack.c.b16 %v3539, %v3537
  %v4058 = vpack.c.b16 %v3542, %v3540
  %v4059 = vpack.c.b16 %v3543, %v3541
  %v4060 = vpack.c.b16 %v3546, %v3544
  %v4061 = vpack.c.b16 %v3547, %v3545
  %v4062 = vpack.c.b16 %v3550, %v3548
  %v4063 = vpack.c.b16 %v3551, %v3549
  %v4064 = vpack.c.b16 %v3554, %v3552
  %v4065 = vpack.c.b16 %v3555, %v3553
  %v4066 = vpack.c.b16 %v3558, %v3556
  %v4067 = vpack.c.b16 %v3559, %v3557
  %v4068 = vpack.c.b16 %v3562, %v3560
  %v4069 = vpack.c.b16 %v3563, %v3561
  %v4070 = vpack.c.b16 %v3566, %v3564
  %v4071 = vpack.c.b16 %v3567, %v3565
  %v4072 = vpack.c.b16 %v3570, %v3568
  %v4073 = vpack.c.b16 %v3571, %v3569
  %v4074 = vpack.c.b16 %v3574, %v3572
  %v4075 = vpack.c.b16 %v3575, %v3573
  %v4076 = vpack.c.b16 %v3578, %v3576
  %v4077 = vpack.c.b16 %v3579, %v3577
  %v4078 = vpack.c.b16 %v3582, %v3580
  %v4079 = vpack.c.b16 %v3583, %v3581
  %v4080 = vpack.c.b16 %v3586, %v3584
  %v4081 = vpack.c.b16 %v3587, %v3585
  %v4082 = vpack.c.b16 %v3590, %v3588
  %v4083 = vpack.c.b16 %v3591, %v3589
  %v4084 = vpack.c.b16 %v3594, %v3592
  %v4085 = vpack.c.b16 %v3595, %v3593
  %v4086 = vpack.c.b16 %v3598, %v3596
  %v4087 = vpack.c.b16 %v3599, %v3597
  %v4088 = vpack.c.b16 %v3602, %v3600
  %v4089 = vpack.c.b16 %v3603, %v3601
  %v4090 = vpack.c.b16 %v3606, %v3604
  %v4091 = vpack.c.b16 %v3607, %v3605
  %v4092 = vpack.c.b16 %v3610, %v3608
  %v4093 = vpack.c.b16 %v3611, %v3609
  %v4094 = vpack.c.b16 %v3614, %v3612
  %v4095 = vpack.c.b16 %v3615, %v3613
  %v4096 = vpack.c.b16 %v3618, %v3616
  %v4097 = vpack.c.b16 %v3619, %v3617
  %v4098 = vpack.c.b16 %v3622, %v3620
  %v4099 = vpack.c.b16 %v3623, %v3621
  %v4100 = vpack.c.b16 %v3626, %v3624
  %v4101 = vpack.c.b16 %v3627, %v3625
  %v4102 = vpack.c.b16 %v3630, %v3628
  %v4103 = vpack.c.b16 %v3631, %v3629
  %v4104 = vpack.c.b16 %v3634, %v3632
  %v4105 = vpack.c.b16 %v3635, %v3633
  %v4106 = vpack.c.b16 %v3638, %v3636
  %v4107 = vpack.c.b16 %v3639, %v3637
  %v4108 = vpack.c.b16 %v3642, %v3640
  %v4109 = vpack.c.b16 %v3643, %v3641
  %v4110 = vpack.c.b16 %v3646, %v3644
  %v4111 = vpack.c.b16 %v3647, %v3645
  %v4112 = vpack.c.b16 %v3650, %v3648
  %v4113 = vpack.c.b16 %v3651, %v3649
  %v4114 = vpack.c.b16 %v3654, %v3652
  %v4115 = vpack.c.b16 %v3655, %v3653
  %v4116 = vpack.c.b16 %v3658, %v3656
  %v4117 = vpack.c.b16 %v3659, %v3657
  %v4118 = vpack.c.b16 %v3662, %v3660
  %v4119 = vpack.c.b16 %v3663, %v3661
  %v4120 = vpack.c.b16 %v3666, %v3664
  %v4121 = vpack.c.b16 %v3667, %v3665
  %v4122 = vpack.c.b16 %v3670, %v3668
  %v4123 = vpack.c.b16 %v3671, %v3669
  %v4124 = vpack.c.b16 %v3674, %v3672
  %v4125 = vpack.c.b16 %v3675, %v3673
  %v4126 = vpack.c.b16 %v3678, %v3676
  %v4127 = vpack.c.b16 %v3679, %v3677
  %v4128 = vpack.c.b16 %v3682, %v3680
  %v4129 = vpack.c.b16 %v3683, %v3681
  %v4130 = vpack.c.b16 %v3686, %v3684
  %v4131 = vpack.c.b16 %v3687, %v3685
  %v4132 = vpack.c.b16 %v3690, %v3688
  %v4133 = vpack.c.b16 %v3691, %v3689
  %v4134 = vpack.c.b16 %v3694, %v3692
  %v4135 = vpack.c.b16 %v3695, %v3693
  %v4136 = vpack.c.b16 %v3698, %v3696
  %v4137 = vpack.c.b16 %v3699, %v3697
  %v4138 = vpack.c.b16 %v3702, %v3700
  %v4139 = vpack.c.b16 %v3703, %v3701
  %v4140 = vpack.c.b16 %v3706, %v3704
  %v4141 = vpack.c.b16 %v3707, %v3705
  %v4142 = vpack.c.b16 %v3710, %v3708
  %v4143 = vpack.c.b16 %v3711, %v3709
  %v4144 = vpack.c.b16 %v3714, %v3712
  %v4145 = vpack.c.b16 %v3715, %v3713
  %v4146 = vpack.c.b16 %v3718, %v3716
  %v4147 = vpack.c.b16 %v3719, %v3717
  %v4148 = vpack.c.b16 %v3722, %v3720
  %v4149 = vpack.c.b16 %v3723, %v3721
  %v4150 = vpack.c.b16 %v3726, %v3724
  %v4151 = vpack.c.b16 %v3727, %v3725
  %v4152 = vpack.c.b16 %v3730, %v3728
  %v4153 = vpack.c.b16 %v3731, %v3729
  %v4154 = vpack.c.b16 %v3734, %v3732
  %v4155 = vpack.c.b16 %v3735, %v3733
  %v4156 = vpack.c.b16 %v3738, %v3736
  %v4157 = vpack.c.b16 %v3739, %v3737
  %v4158 = vpack.c.b16 %v3742, %v3740
  %v4159 = vpack.c.b16 %v3743, %v3741
  %v4160 = vpack.c.b16 %v3746, %v3744
  %v4161 = vpack.c.b16 %v3747, %v3745
  %v4162 = vpack.c.b16 %v3750, %v3748
  %v4163 = vpack.c.b16 %v3751, %v3749
  %v4164 = vpack.c.b16 %v3754, %v3752
  %v4165 = vpack.c.b16 %v3755, %v3753
  %v4166 = vpack.c.b16 %v3758, %v3756
  %v4167 = vpack.c.b16 %v3759, %v3757
  %v4168 = vpack.c.b16 %v3762, %v3760
  %v4169 = vpack.c.b16 %v3763, %v3761
  %v4170 = vpack.c.b16 %v3766, %v3764
  %v4171 = vpack.c.b16 %v3767, %v3765
  %v4172 = vpack.c.b16 %v3770, %v3768
  %v4173 = vpack.c.b16 %v3771, %v3769
  %v4174 = vpack.c.b16 %v3774, %v3772
  %v4175 = vpack.c.b16 %v3775, %v3773
  %v4577 = vlaneseq
  %v4578 = vshrl.u32 %v4577, 7
  %v4579 = vsub.s32 0, %v4578
  %v4580 = vrot.slane %v2575, %v4579
  %v4581 = vlaneseq
  %v4582 = vshrl.u32 %v4581, 7
  %v4583 = vsub.s32 1, %v4582
  %v4584 = vrot.slane %v2575, %v4583
  %4587 = vmatprep.subr.bf16.mxu0 %v3791
  %4588 = vmatpush1.bf16.msra.mxu0 %v3790
  %4589 = vmatprep.subr.bf16.mxu0 %v3789
  %4590 = vmatpush1.bf16.msra.mxu0 %v3788
  %4591 = vmatprep.subr.bf16.mxu0 %v3787
  %4592 = vmatpush1.bf16.msra.mxu0 %v3786
  %4593 = vmatprep.subr.bf16.mxu0 %v3785
  %4594 = vmatpush1.bf16.msra.mxu0 %v3784
  %4595 = vmatprep.subr.bf16.mxu0 %v3783
  %4596 = vmatpush1.bf16.msra.mxu0 %v3782
  %4597 = vmatprep.subr.bf16.mxu0 %v3781
  %4598 = vmatpush1.bf16.msra.mxu0 %v3780
  %4599 = vmatprep.subr.bf16.mxu0 %v3779
  %4600 = vmatpush1.bf16.msra.mxu0 %v3778
  %4601 = vmatprep.subr.bf16.mxu0 %v3777
  %4602 = vmatpush1.bf16.msra.mxu0 %v3776
  %4603 = vmatprep.subr.bf16.mxu0 %v3807
  %4604 = vmatpush2.bf16.msra.mxu0 %v3806
  %4605 = vmatprep.subr.bf16.mxu0 %v3805
  %4606 = vmatpush2.bf16.msra.mxu0 %v3804
  %4607 = vmatprep.subr.bf16.mxu0 %v3803
  %4608 = vmatpush2.bf16.msra.mxu0 %v3802
  %4609 = vmatprep.subr.bf16.mxu0 %v3801
  %4610 = vmatpush2.bf16.msra.mxu0 %v3800
  %4611 = vmatprep.subr.bf16.mxu0 %v3799
  %4612 = vmatpush2.bf16.msra.mxu0 %v3798
  %4613 = vmatprep.subr.bf16.mxu0 %v3797
  %4614 = vmatpush2.bf16.msra.mxu0 %v3796
  %4615 = vmatprep.subr.bf16.mxu0 %v3795
  %4616 = vmatpush2.bf16.msra.mxu0 %v3794
  %4617 = vmatprep.subr.bf16.mxu0 %v3793
  %4618 = vmatpush2.bf16.msra.mxu0 %v3792
  %4619 = vmatprep.mubr.bf16.mxu0 %v2151
  %4620 = vmatmul.mubr.bf16.gmra.mxu0 %v2150
  %v4621 = vpop.f32.mrf.mxu0
  %v4622 = vadd.f32 %v4580, %v4621
  %v4623 = vpop.f32.mrf.mxu0
  %v4624 = vadd.f32 %v4584, %v4623
  %v4625 = vpop.f32.mrf.mxu0
  %v4626 = vpop.f32.mrf.mxu0
  %4627 = vdwg.mxu0
  %4628 = vmatprep.subr.bf16.mxu0 %v3823
  %4629 = vmatpush1.bf16.msra.mxu0 %v3822
  %4630 = vmatprep.subr.bf16.mxu0 %v3821
  %4631 = vmatpush1.bf16.msra.mxu0 %v3820
  %4632 = vmatprep.subr.bf16.mxu0 %v3819
  %4633 = vmatpush1.bf16.msra.mxu0 %v3818
  %4634 = vmatprep.subr.bf16.mxu0 %v3817
  %4635 = vmatpush1.bf16.msra.mxu0 %v3816
  %4636 = vmatprep.subr.bf16.mxu0 %v3815
  %4637 = vmatpush1.bf16.msra.mxu0 %v3814
  %4638 = vmatprep.subr.bf16.mxu0 %v3813
  %4639 = vmatpush1.bf16.msra.mxu0 %v3812
  %4640 = vmatprep.subr.bf16.mxu0 %v3811
  %4641 = vmatpush1.bf16.msra.mxu0 %v3810
  %4642 = vmatprep.subr.bf16.mxu0 %v3809
  %4643 = vmatpush1.bf16.msra.mxu0 %v3808
  %4644 = vmatprep.subr.bf16.mxu0 %v3839
  %4645 = vmatpush2.bf16.msra.mxu0 %v3838
  %4646 = vmatprep.subr.bf16.mxu0 %v3837
  %4647 = vmatpush2.bf16.msra.mxu0 %v3836
  %4648 = vmatprep.subr.bf16.mxu0 %v3835
  %4649 = vmatpush2.bf16.msra.mxu0 %v3834
  %4650 = vmatprep.subr.bf16.mxu0 %v3833
  %4651 = vmatpush2.bf16.msra.mxu0 %v3832
  %4652 = vmatprep.subr.bf16.mxu0 %v3831
  %4653 = vmatpush2.bf16.msra.mxu0 %v3830
  %4654 = vmatprep.subr.bf16.mxu0 %v3829
  %4655 = vmatpush2.bf16.msra.mxu0 %v3828
  %4656 = vmatprep.subr.bf16.mxu0 %v3827
  %4657 = vmatpush2.bf16.msra.mxu0 %v3826
  %4658 = vmatprep.subr.bf16.mxu0 %v3825
  %4659 = vmatpush2.bf16.msra.mxu0 %v3824
  %4660 = vmatprep.mubr.bf16.mxu0 %v2153
  %4661 = vmatmul.mubr.bf16.gmra.mxu0 %v2152
  %v4662 = vpop.f32.mrf.mxu0
  %v4663 = vadd.f32 %v4622, %v4662
  %v4664 = vpop.f32.mrf.mxu0
  %v4665 = vadd.f32 %v4624, %v4664
  %v4666 = vpop.f32.mrf.mxu0
  %v4667 = vpop.f32.mrf.mxu0
  %4668 = vdwg.mxu0
  %4669 = vmatprep.subr.bf16.mxu0 %v3855
  %4670 = vmatpush1.bf16.msra.mxu0 %v3854
  %4671 = vmatprep.subr.bf16.mxu0 %v3853
  %4672 = vmatpush1.bf16.msra.mxu0 %v3852
  %4673 = vmatprep.subr.bf16.mxu0 %v3851
  %4674 = vmatpush1.bf16.msra.mxu0 %v3850
  %4675 = vmatprep.subr.bf16.mxu0 %v3849
  %4676 = vmatpush1.bf16.msra.mxu0 %v3848
  %4677 = vmatprep.subr.bf16.mxu0 %v3847
  %4678 = vmatpush1.bf16.msra.mxu0 %v3846
  %4679 = vmatprep.subr.bf16.mxu0 %v3845
  %4680 = vmatpush1.bf16.msra.mxu0 %v3844
  %4681 = vmatprep.subr.bf16.mxu0 %v3843
  %4682 = vmatpush1.bf16.msra.mxu0 %v3842
  %4683 = vmatprep.subr.bf16.mxu0 %v3841
  %4684 = vmatpush1.bf16.msra.mxu0 %v3840
  %4685 = vmatprep.subr.bf16.mxu0 %v3871
  %4686 = vmatpush2.bf16.msra.mxu0 %v3870
  %4687 = vmatprep.subr.bf16.mxu0 %v3869
  %4688 = vmatpush2.bf16.msra.mxu0 %v3868
  %4689 = vmatprep.subr.bf16.mxu0 %v3867
  %4690 = vmatpush2.bf16.msra.mxu0 %v3866
  %4691 = vmatprep.subr.bf16.mxu0 %v3865
  %4692 = vmatpush2.bf16.msra.mxu0 %v3864
  %4693 = vmatprep.subr.bf16.mxu0 %v3863
  %4694 = vmatpush2.bf16.msra.mxu0 %v3862
  %4695 = vmatprep.subr.bf16.mxu0 %v3861
  %4696 = vmatpush2.bf16.msra.mxu0 %v3860
  %4697 = vmatprep.subr.bf16.mxu0 %v3859
  %4698 = vmatpush2.bf16.msra.mxu0 %v3858
  %4699 = vmatprep.subr.bf16.mxu0 %v3857
  %4700 = vmatpush2.bf16.msra.mxu0 %v3856
  %4701 = vmatprep.mubr.bf16.mxu0 %v2155
  %4702 = vmatmul.mubr.bf16.gmra.mxu0 %v2154
  %v4703 = vpop.f32.mrf.mxu0
  %v4704 = vadd.f32 %v4663, %v4703
  %v4705 = vpop.f32.mrf.mxu0
  %v4706 = vadd.f32 %v4665, %v4705
  %v4707 = vpop.f32.mrf.mxu0
  %v4708 = vpop.f32.mrf.mxu0
  %4709 = vdwg.mxu0
  %4710 = vmatprep.subr.bf16.mxu0 %v3887
  %4711 = vmatpush1.bf16.msra.mxu0 %v3886
  %4712 = vmatprep.subr.bf16.mxu0 %v3885
  %4713 = vmatpush1.bf16.msra.mxu0 %v3884
  %4714 = vmatprep.subr.bf16.mxu0 %v3883
  %4715 = vmatpush1.bf16.msra.mxu0 %v3882
  %4716 = vmatprep.subr.bf16.mxu0 %v3881
  %4717 = vmatpush1.bf16.msra.mxu0 %v3880
  %4718 = vmatprep.subr.bf16.mxu0 %v3879
  %4719 = vmatpush1.bf16.msra.mxu0 %v3878
  %4720 = vmatprep.subr.bf16.mxu0 %v3877
  %4721 = vmatpush1.bf16.msra.mxu0 %v3876
  %4722 = vmatprep.subr.bf16.mxu0 %v3875
  %4723 = vmatpush1.bf16.msra.mxu0 %v3874
  %4724 = vmatprep.subr.bf16.mxu0 %v3873
  %4725 = vmatpush1.bf16.msra.mxu0 %v3872
  %4726 = vmatprep.subr.bf16.mxu0 %v3903
  %4727 = vmatpush2.bf16.msra.mxu0 %v3902
  %4728 = vmatprep.subr.bf16.mxu0 %v3901
  %4729 = vmatpush2.bf16.msra.mxu0 %v3900
  %4730 = vmatprep.subr.bf16.mxu0 %v3899
  %4731 = vmatpush2.bf16.msra.mxu0 %v3898
  %4732 = vmatprep.subr.bf16.mxu0 %v3897
  %4733 = vmatpush2.bf16.msra.mxu0 %v3896
  %4734 = vmatprep.subr.bf16.mxu0 %v3895
  %4735 = vmatpush2.bf16.msra.mxu0 %v3894
  %4736 = vmatprep.subr.bf16.mxu0 %v3893
  %4737 = vmatpush2.bf16.msra.mxu0 %v3892
  %4738 = vmatprep.subr.bf16.mxu0 %v3891
  %4739 = vmatpush2.bf16.msra.mxu0 %v3890
  %4740 = vmatprep.subr.bf16.mxu0 %v3889
  %4741 = vmatpush2.bf16.msra.mxu0 %v3888
  %4742 = vmatprep.mubr.bf16.mxu0 %v2157
  %4743 = vmatmul.mubr.bf16.gmra.mxu0 %v2156
  %v4744 = vpop.f32.mrf.mxu0
  %v4745 = vadd.f32 %v4704, %v4744
  %v4746 = vpop.f32.mrf.mxu0
  %v4747 = vadd.f32 %v4706, %v4746
  %v4748 = vpop.f32.mrf.mxu0
  %v4749 = vpop.f32.mrf.mxu0
  %4750 = vdwg.mxu0
  %4751 = vmatprep.subr.bf16.mxu0 %v3919
  %4752 = vmatpush1.bf16.msra.mxu0 %v3918
  %4753 = vmatprep.subr.bf16.mxu0 %v3917
  %4754 = vmatpush1.bf16.msra.mxu0 %v3916
  %4755 = vmatprep.subr.bf16.mxu0 %v3915
  %4756 = vmatpush1.bf16.msra.mxu0 %v3914
  %4757 = vmatprep.subr.bf16.mxu0 %v3913
  %4758 = vmatpush1.bf16.msra.mxu0 %v3912
  %4759 = vmatprep.subr.bf16.mxu0 %v3911
  %4760 = vmatpush1.bf16.msra.mxu0 %v3910
  %4761 = vmatprep.subr.bf16.mxu0 %v3909
  %4762 = vmatpush1.bf16.msra.mxu0 %v3908
  %4763 = vmatprep.subr.bf16.mxu0 %v3907
  %4764 = vmatpush1.bf16.msra.mxu0 %v3906
  %4765 = vmatprep.subr.bf16.mxu0 %v3905
  %4766 = vmatpush1.bf16.msra.mxu0 %v3904
  %4767 = vmatprep.subr.bf16.mxu0 %v3935
  %4768 = vmatpush2.bf16.msra.mxu0 %v3934
  %4769 = vmatprep.subr.bf16.mxu0 %v3933
  %4770 = vmatpush2.bf16.msra.mxu0 %v3932
  %4771 = vmatprep.subr.bf16.mxu0 %v3931
  %4772 = vmatpush2.bf16.msra.mxu0 %v3930
  %4773 = vmatprep.subr.bf16.mxu0 %v3929
  %4774 = vmatpush2.bf16.msra.mxu0 %v3928
  %4775 = vmatprep.subr.bf16.mxu0 %v3927
  %4776 = vmatpush2.bf16.msra.mxu0 %v3926
  %4777 = vmatprep.subr.bf16.mxu0 %v3925
  %4778 = vmatpush2.bf16.msra.mxu0 %v3924
  %4779 = vmatprep.subr.bf16.mxu0 %v3923
  %4780 = vmatpush2.bf16.msra.mxu0 %v3922
  %4781 = vmatprep.subr.bf16.mxu0 %v3921
  %4782 = vmatpush2.bf16.msra.mxu0 %v3920
  %4783 = vmatprep.mubr.bf16.mxu0 %v2159
  %4784 = vmatmul.mubr.bf16.gmra.mxu0 %v2158
  %v4785 = vpop.f32.mrf.mxu0
  %v4786 = vadd.f32 %v4745, %v4785
  %v4787 = vpop.f32.mrf.mxu0
  %v4788 = vadd.f32 %v4747, %v4787
  %v4789 = vpop.f32.mrf.mxu0
  %v4790 = vpop.f32.mrf.mxu0
  %4791 = vdwg.mxu0
  %4792 = vmatprep.subr.bf16.mxu0 %v3951
  %4793 = vmatpush1.bf16.msra.mxu0 %v3950
  %4794 = vmatprep.subr.bf16.mxu0 %v3949
  %4795 = vmatpush1.bf16.msra.mxu0 %v3948
  %4796 = vmatprep.subr.bf16.mxu0 %v3947
  %4797 = vmatpush1.bf16.msra.mxu0 %v3946
  %4798 = vmatprep.subr.bf16.mxu0 %v3945
  %4799 = vmatpush1.bf16.msra.mxu0 %v3944
  %4800 = vmatprep.subr.bf16.mxu0 %v3943
  %4801 = vmatpush1.bf16.msra.mxu0 %v3942
  %4802 = vmatprep.subr.bf16.mxu0 %v3941
  %4803 = vmatpush1.bf16.msra.mxu0 %v3940
  %4804 = vmatprep.subr.bf16.mxu0 %v3939
  %4805 = vmatpush1.bf16.msra.mxu0 %v3938
  %4806 = vmatprep.subr.bf16.mxu0 %v3937
  %4807 = vmatpush1.bf16.msra.mxu0 %v3936
  %4808 = vmatprep.subr.bf16.mxu0 %v3967
  %4809 = vmatpush2.bf16.msra.mxu0 %v3966
  %4810 = vmatprep.subr.bf16.mxu0 %v3965
  %4811 = vmatpush2.bf16.msra.mxu0 %v3964
  %4812 = vmatprep.subr.bf16.mxu0 %v3963
  %4813 = vmatpush2.bf16.msra.mxu0 %v3962
  %4814 = vmatprep.subr.bf16.mxu0 %v3961
  %4815 = vmatpush2.bf16.msra.mxu0 %v3960
  %4816 = vmatprep.subr.bf16.mxu0 %v3959
  %4817 = vmatpush2.bf16.msra.mxu0 %v3958
  %4818 = vmatprep.subr.bf16.mxu0 %v3957
  %4819 = vmatpush2.bf16.msra.mxu0 %v3956
  %4820 = vmatprep.subr.bf16.mxu0 %v3955
  %4821 = vmatpush2.bf16.msra.mxu0 %v3954
  %4822 = vmatprep.subr.bf16.mxu0 %v3953
  %4823 = vmatpush2.bf16.msra.mxu0 %v3952
  %4824 = vmatprep.mubr.bf16.mxu0 %v2161
  %4825 = vmatmul.mubr.bf16.gmra.mxu0 %v2160
  %v4826 = vpop.f32.mrf.mxu0
  %v4827 = vadd.f32 %v4786, %v4826
  %v4828 = vpop.f32.mrf.mxu0
  %v4829 = vadd.f32 %v4788, %v4828
  %v4830 = vpop.f32.mrf.mxu0
  %v4831 = vpop.f32.mrf.mxu0
  %4832 = vdwg.mxu0
  %4833 = vmatprep.subr.bf16.mxu0 %v3983
  %4834 = vmatpush1.bf16.msra.mxu0 %v3982
  %4835 = vmatprep.subr.bf16.mxu0 %v3981
  %4836 = vmatpush1.bf16.msra.mxu0 %v3980
  %4837 = vmatprep.subr.bf16.mxu0 %v3979
  %4838 = vmatpush1.bf16.msra.mxu0 %v3978
  %4839 = vmatprep.subr.bf16.mxu0 %v3977
  %4840 = vmatpush1.bf16.msra.mxu0 %v3976
  %4841 = vmatprep.subr.bf16.mxu0 %v3975
  %4842 = vmatpush1.bf16.msra.mxu0 %v3974
  %4843 = vmatprep.subr.bf16.mxu0 %v3973
  %4844 = vmatpush1.bf16.msra.mxu0 %v3972
  %4845 = vmatprep.subr.bf16.mxu0 %v3971
  %4846 = vmatpush1.bf16.msra.mxu0 %v3970
  %4847 = vmatprep.subr.bf16.mxu0 %v3969
  %4848 = vmatpush1.bf16.msra.mxu0 %v3968
  %4849 = vmatprep.subr.bf16.mxu0 %v3999
  %4850 = vmatpush2.bf16.msra.mxu0 %v3998
  %4851 = vmatprep.subr.bf16.mxu0 %v3997
  %4852 = vmatpush2.bf16.msra.mxu0 %v3996
  %4853 = vmatprep.subr.bf16.mxu0 %v3995
  %4854 = vmatpush2.bf16.msra.mxu0 %v3994
  %4855 = vmatprep.subr.bf16.mxu0 %v3993
  %4856 = vmatpush2.bf16.msra.mxu0 %v3992
  %4857 = vmatprep.subr.bf16.mxu0 %v3991
  %4858 = vmatpush2.bf16.msra.mxu0 %v3990
  %4859 = vmatprep.subr.bf16.mxu0 %v3989
  %4860 = vmatpush2.bf16.msra.mxu0 %v3988
  %4861 = vmatprep.subr.bf16.mxu0 %v3987
  %4862 = vmatpush2.bf16.msra.mxu0 %v3986
  %4863 = vmatprep.subr.bf16.mxu0 %v3985
  %4864 = vmatpush2.bf16.msra.mxu0 %v3984
  %4865 = vmatprep.mubr.bf16.mxu0 %v2163
  %4866 = vmatmul.mubr.bf16.gmra.mxu0 %v2162
  %v4867 = vpop.f32.mrf.mxu0
  %v4868 = vadd.f32 %v4827, %v4867
  %v4869 = vpop.f32.mrf.mxu0
  %v4870 = vadd.f32 %v4829, %v4869
  %v4871 = vpop.f32.mrf.mxu0
  %v4872 = vpop.f32.mrf.mxu0
  %4873 = vdwg.mxu0
  %4874 = vmatprep.subr.bf16.mxu0 %v4015
  %4875 = vmatpush1.bf16.msra.mxu0 %v4014
  %4876 = vmatprep.subr.bf16.mxu0 %v4013
  %4877 = vmatpush1.bf16.msra.mxu0 %v4012
  %4878 = vmatprep.subr.bf16.mxu0 %v4011
  %4879 = vmatpush1.bf16.msra.mxu0 %v4010
  %4880 = vmatprep.subr.bf16.mxu0 %v4009
  %4881 = vmatpush1.bf16.msra.mxu0 %v4008
  %4882 = vmatprep.subr.bf16.mxu0 %v4007
  %4883 = vmatpush1.bf16.msra.mxu0 %v4006
  %4884 = vmatprep.subr.bf16.mxu0 %v4005
  %4885 = vmatpush1.bf16.msra.mxu0 %v4004
  %4886 = vmatprep.subr.bf16.mxu0 %v4003
  %4887 = vmatpush1.bf16.msra.mxu0 %v4002
  %4888 = vmatprep.subr.bf16.mxu0 %v4001
  %4889 = vmatpush1.bf16.msra.mxu0 %v4000
  %4890 = vmatprep.subr.bf16.mxu0 %v4031
  %4891 = vmatpush2.bf16.msra.mxu0 %v4030
  %4892 = vmatprep.subr.bf16.mxu0 %v4029
  %4893 = vmatpush2.bf16.msra.mxu0 %v4028
  %4894 = vmatprep.subr.bf16.mxu0 %v4027
  %4895 = vmatpush2.bf16.msra.mxu0 %v4026
  %4896 = vmatprep.subr.bf16.mxu0 %v4025
  %4897 = vmatpush2.bf16.msra.mxu0 %v4024
  %4898 = vmatprep.subr.bf16.mxu0 %v4023
  %4899 = vmatpush2.bf16.msra.mxu0 %v4022
  %4900 = vmatprep.subr.bf16.mxu0 %v4021
  %4901 = vmatpush2.bf16.msra.mxu0 %v4020
  %4902 = vmatprep.subr.bf16.mxu0 %v4019
  %4903 = vmatpush2.bf16.msra.mxu0 %v4018
  %4904 = vmatprep.subr.bf16.mxu0 %v4017
  %4905 = vmatpush2.bf16.msra.mxu0 %v4016
  %4906 = vmatprep.mubr.bf16.mxu0 %v2165
  %4907 = vmatmul.mubr.bf16.gmra.mxu0 %v2164
  %v4908 = vpop.f32.mrf.mxu0
  %v4909 = vadd.f32 %v4868, %v4908
  %v4910 = vpop.f32.mrf.mxu0
  %v4911 = vadd.f32 %v4870, %v4910
  %v4912 = vpop.f32.mrf.mxu0
  %v4913 = vpop.f32.mrf.mxu0
  %4914 = vdwg.mxu0
  %4915 = vmatprep.subr.bf16.mxu0 %v4047
  %4916 = vmatpush1.bf16.msra.mxu0 %v4046
  %4917 = vmatprep.subr.bf16.mxu0 %v4045
  %4918 = vmatpush1.bf16.msra.mxu0 %v4044
  %4919 = vmatprep.subr.bf16.mxu0 %v4043
  %4920 = vmatpush1.bf16.msra.mxu0 %v4042
  %4921 = vmatprep.subr.bf16.mxu0 %v4041
  %4922 = vmatpush1.bf16.msra.mxu0 %v4040
  %4923 = vmatprep.subr.bf16.mxu0 %v4039
  %4924 = vmatpush1.bf16.msra.mxu0 %v4038
  %4925 = vmatprep.subr.bf16.mxu0 %v4037
  %4926 = vmatpush1.bf16.msra.mxu0 %v4036
  %4927 = vmatprep.subr.bf16.mxu0 %v4035
  %4928 = vmatpush1.bf16.msra.mxu0 %v4034
  %4929 = vmatprep.subr.bf16.mxu0 %v4033
  %4930 = vmatpush1.bf16.msra.mxu0 %v4032
  %4931 = vmatprep.subr.bf16.mxu0 %v4063
  %4932 = vmatpush2.bf16.msra.mxu0 %v4062
  %4933 = vmatprep.subr.bf16.mxu0 %v4061
  %4934 = vmatpush2.bf16.msra.mxu0 %v4060
  %4935 = vmatprep.subr.bf16.mxu0 %v4059
  %4936 = vmatpush2.bf16.msra.mxu0 %v4058
  %4937 = vmatprep.subr.bf16.mxu0 %v4057
  %4938 = vmatpush2.bf16.msra.mxu0 %v4056
  %4939 = vmatprep.subr.bf16.mxu0 %v4055
  %4940 = vmatpush2.bf16.msra.mxu0 %v4054
  %4941 = vmatprep.subr.bf16.mxu0 %v4053
  %4942 = vmatpush2.bf16.msra.mxu0 %v4052
  %4943 = vmatprep.subr.bf16.mxu0 %v4051
  %4944 = vmatpush2.bf16.msra.mxu0 %v4050
  %4945 = vmatprep.subr.bf16.mxu0 %v4049
  %4946 = vmatpush2.bf16.msra.mxu0 %v4048
  %4947 = vmatprep.mubr.bf16.mxu0 %v2167
  %4948 = vmatmul.mubr.bf16.gmra.mxu0 %v2166
  %v4949 = vpop.f32.mrf.mxu0
  %v4950 = vadd.f32 %v4909, %v4949
  %v4951 = vpop.f32.mrf.mxu0
  %v4952 = vadd.f32 %v4911, %v4951
  %v4953 = vpop.f32.mrf.mxu0
  %v4954 = vpop.f32.mrf.mxu0
  %4955 = vdwg.mxu0
  %4956 = vmatprep.subr.bf16.mxu0 %v4079
  %4957 = vmatpush1.bf16.msra.mxu0 %v4078
  %4958 = vmatprep.subr.bf16.mxu0 %v4077
  %4959 = vmatpush1.bf16.msra.mxu0 %v4076
  %4960 = vmatprep.subr.bf16.mxu0 %v4075
  %4961 = vmatpush1.bf16.msra.mxu0 %v4074
  %4962 = vmatprep.subr.bf16.mxu0 %v4073
  %4963 = vmatpush1.bf16.msra.mxu0 %v4072
  %4964 = vmatprep.subr.bf16.mxu0 %v4071
  %4965 = vmatpush1.bf16.msra.mxu0 %v4070
  %4966 = vmatprep.subr.bf16.mxu0 %v4069
  %4967 = vmatpush1.bf16.msra.mxu0 %v4068
  %4968 = vmatprep.subr.bf16.mxu0 %v4067
  %4969 = vmatpush1.bf16.msra.mxu0 %v4066
  %4970 = vmatprep.subr.bf16.mxu0 %v4065
  %4971 = vmatpush1.bf16.msra.mxu0 %v4064
  %4972 = vmatprep.subr.bf16.mxu0 %v4095
  %4973 = vmatpush2.bf16.msra.mxu0 %v4094
  %4974 = vmatprep.subr.bf16.mxu0 %v4093
  %4975 = vmatpush2.bf16.msra.mxu0 %v4092
  %4976 = vmatprep.subr.bf16.mxu0 %v4091
  %4977 = vmatpush2.bf16.msra.mxu0 %v4090
  %4978 = vmatprep.subr.bf16.mxu0 %v4089
  %4979 = vmatpush2.bf16.msra.mxu0 %v4088
  %4980 = vmatprep.subr.bf16.mxu0 %v4087
  %4981 = vmatpush2.bf16.msra.mxu0 %v4086
  %4982 = vmatprep.subr.bf16.mxu0 %v4085
  %4983 = vmatpush2.bf16.msra.mxu0 %v4084
  %4984 = vmatprep.subr.bf16.mxu0 %v4083
  %4985 = vmatpush2.bf16.msra.mxu0 %v4082
  %4986 = vmatprep.subr.bf16.mxu0 %v4081
  %4987 = vmatpush2.bf16.msra.mxu0 %v4080
  %4988 = vmatprep.mubr.bf16.mxu0 %v2169
  %4989 = vmatmul.mubr.bf16.gmra.mxu0 %v2168
  %v4990 = vpop.f32.mrf.mxu0
  %v4991 = vadd.f32 %v4950, %v4990
  %v4992 = vpop.f32.mrf.mxu0
  %v4993 = vadd.f32 %v4952, %v4992
  %v4994 = vpop.f32.mrf.mxu0
  %v4995 = vpop.f32.mrf.mxu0
  %4996 = vdwg.mxu0
  %4997 = vmatprep.subr.bf16.mxu0 %v4111
  %4998 = vmatpush1.bf16.msra.mxu0 %v4110
  %4999 = vmatprep.subr.bf16.mxu0 %v4109
  %5000 = vmatpush1.bf16.msra.mxu0 %v4108
  %5001 = vmatprep.subr.bf16.mxu0 %v4107
  %5002 = vmatpush1.bf16.msra.mxu0 %v4106
  %5003 = vmatprep.subr.bf16.mxu0 %v4105
  %5004 = vmatpush1.bf16.msra.mxu0 %v4104
  %5005 = vmatprep.subr.bf16.mxu0 %v4103
  %5006 = vmatpush1.bf16.msra.mxu0 %v4102
  %5007 = vmatprep.subr.bf16.mxu0 %v4101
  %5008 = vmatpush1.bf16.msra.mxu0 %v4100
  %5009 = vmatprep.subr.bf16.mxu0 %v4099
  %5010 = vmatpush1.bf16.msra.mxu0 %v4098
  %5011 = vmatprep.subr.bf16.mxu0 %v4097
  %5012 = vmatpush1.bf16.msra.mxu0 %v4096
  %5013 = vmatprep.subr.bf16.mxu0 %v4127
  %5014 = vmatpush2.bf16.msra.mxu0 %v4126
  %5015 = vmatprep.subr.bf16.mxu0 %v4125
  %5016 = vmatpush2.bf16.msra.mxu0 %v4124
  %5017 = vmatprep.subr.bf16.mxu0 %v4123
  %5018 = vmatpush2.bf16.msra.mxu0 %v4122
  %5019 = vmatprep.subr.bf16.mxu0 %v4121
  %5020 = vmatpush2.bf16.msra.mxu0 %v4120
  %5021 = vmatprep.subr.bf16.mxu0 %v4119
  %5022 = vmatpush2.bf16.msra.mxu0 %v4118
  %5023 = vmatprep.subr.bf16.mxu0 %v4117
  %5024 = vmatpush2.bf16.msra.mxu0 %v4116
  %5025 = vmatprep.subr.bf16.mxu0 %v4115
  %5026 = vmatpush2.bf16.msra.mxu0 %v4114
  %5027 = vmatprep.subr.bf16.mxu0 %v4113
  %5028 = vmatpush2.bf16.msra.mxu0 %v4112
  %5029 = vmatprep.mubr.bf16.mxu0 %v2171
  %5030 = vmatmul.mubr.bf16.gmra.mxu0 %v2170
  %v5031 = vpop.f32.mrf.mxu0
  %v5032 = vadd.f32 %v4991, %v5031
  %v5033 = vpop.f32.mrf.mxu0
  %v5034 = vadd.f32 %v4993, %v5033
  %v5035 = vpop.f32.mrf.mxu0
  %v5036 = vpop.f32.mrf.mxu0
  %5037 = vdwg.mxu0
  %5038 = vmatprep.subr.bf16.mxu0 %v4143
  %5039 = vmatpush1.bf16.msra.mxu0 %v4142
  %5040 = vmatprep.subr.bf16.mxu0 %v4141
  %5041 = vmatpush1.bf16.msra.mxu0 %v4140
  %5042 = vmatprep.subr.bf16.mxu0 %v4139
  %5043 = vmatpush1.bf16.msra.mxu0 %v4138
  %5044 = vmatprep.subr.bf16.mxu0 %v4137
  %5045 = vmatpush1.bf16.msra.mxu0 %v4136
  %5046 = vmatprep.subr.bf16.mxu0 %v4135
  %5047 = vmatpush1.bf16.msra.mxu0 %v4134
  %5048 = vmatprep.subr.bf16.mxu0 %v4133
  %5049 = vmatpush1.bf16.msra.mxu0 %v4132
  %5050 = vmatprep.subr.bf16.mxu0 %v4131
  %5051 = vmatpush1.bf16.msra.mxu0 %v4130
  %5052 = vmatprep.subr.bf16.mxu0 %v4129
  %5053 = vmatpush1.bf16.msra.mxu0 %v4128
  %5054 = vmatprep.subr.bf16.mxu0 %v4159
  %5055 = vmatpush2.bf16.msra.mxu0 %v4158
  %5056 = vmatprep.subr.bf16.mxu0 %v4157
  %5057 = vmatpush2.bf16.msra.mxu0 %v4156
  %5058 = vmatprep.subr.bf16.mxu0 %v4155
  %5059 = vmatpush2.bf16.msra.mxu0 %v4154
  %5060 = vmatprep.subr.bf16.mxu0 %v4153
  %5061 = vmatpush2.bf16.msra.mxu0 %v4152
  %5062 = vmatprep.subr.bf16.mxu0 %v4151
  %5063 = vmatpush2.bf16.msra.mxu0 %v4150
  %5064 = vmatprep.subr.bf16.mxu0 %v4149
  %5065 = vmatpush2.bf16.msra.mxu0 %v4148
  %5066 = vmatprep.subr.bf16.mxu0 %v4147
  %5067 = vmatpush2.bf16.msra.mxu0 %v4146
  %5068 = vmatprep.subr.bf16.mxu0 %v4145
  %5069 = vmatpush2.bf16.msra.mxu0 %v4144
  %5070 = vmatprep.mubr.bf16.mxu0 %v2173
  %5071 = vmatmul.mubr.bf16.gmra.mxu0 %v2172
  %v5072 = vpop.f32.mrf.mxu0
  %v5073 = vadd.f32 %v5032, %v5072
  %v5074 = vpop.f32.mrf.mxu0
  %v5075 = vadd.f32 %v5034, %v5074
  %v5076 = vpop.f32.mrf.mxu0
  %v5077 = vpop.f32.mrf.mxu0
  %5078 = vdwg.mxu0
  %5079 = vmatprep.subr.bf16.mxu0 %v4175
  %5080 = vmatpush1.bf16.msra.mxu0 %v4174
  %5081 = vmatprep.subr.bf16.mxu0 %v4173
  %5082 = vmatpush1.bf16.msra.mxu0 %v4172
  %5083 = vmatprep.subr.bf16.mxu0 %v4171
  %5084 = vmatpush1.bf16.msra.mxu0 %v4170
  %5085 = vmatprep.subr.bf16.mxu0 %v4169
  %5086 = vmatpush1.bf16.msra.mxu0 %v4168
  %5087 = vmatprep.subr.bf16.mxu0 %v4167
  %5088 = vmatpush1.bf16.msra.mxu0 %v4166
  %5089 = vmatprep.subr.bf16.mxu0 %v4165
  %5090 = vmatpush1.bf16.msra.mxu0 %v4164
  %5091 = vmatprep.subr.bf16.mxu0 %v4163
  %5092 = vmatpush1.bf16.msra.mxu0 %v4162
  %5093 = vmatprep.subr.bf16.mxu0 %v4161
  %5094 = vmatpush1.bf16.msra.mxu0 %v4160
  %5095 = vmatprep.subr.bf16.mxu0 0
  %5096 = vmatpush2.bf16.msra.mxu0 0
  %5097 = vmatprep.subr.bf16.mxu0 0
  %5098 = vmatpush2.bf16.msra.mxu0 0
  %5099 = vmatprep.subr.bf16.mxu0 0
  %5100 = vmatpush2.bf16.msra.mxu0 0
  %5101 = vmatprep.subr.bf16.mxu0 0
  %5102 = vmatpush2.bf16.msra.mxu0 0
  %5103 = vmatprep.subr.bf16.mxu0 0
  %5104 = vmatpush2.bf16.msra.mxu0 0
  %5105 = vmatprep.subr.bf16.mxu0 0
  %5106 = vmatpush2.bf16.msra.mxu0 0
  %5107 = vmatprep.subr.bf16.mxu0 0
  %5108 = vmatpush2.bf16.msra.mxu0 0
  %5109 = vmatprep.subr.bf16.mxu0 0
  %5110 = vmatpush2.bf16.msra.mxu0 0
  %5111 = vmatprep.mubr.bf16.mxu0 0
  %5112 = vmatmul.mubr.bf16.gmra.mxu0 %v2174
  %v5113 = vpop.f32.mrf.mxu0
  %v5114 = vadd.f32 %v5073, %v5113
  %v5115 = vpop.f32.mrf.mxu0
  %v5116 = vadd.f32 %v5075, %v5115
  %v5117 = vpop.f32.mrf.mxu0
  %v5118 = vpop.f32.mrf.mxu0
  %5119 = vdwg.mxu0
  %v5120 = vmax.f32 %v5114, 0.0
  %v5121 = vmax.f32 %v5116, 0.0
  %v5122 = vpack.c.bf16 %v5120, %v5120
  %v5123 = vpack.c.bf16 %v5121, %v5121
  %v5124 = vld [vmem:[%s7] sm:$0xf]
  %v5125 = vld [vmem:[%s7 + $0x4] sm:$0xf]
  %v5126 = vld [vmem:[%s7 + $0x8] sm:$0xf]
  %v5127 = vld [vmem:[%s7 + $0xc] sm:$0xf]
  %v5128 = vld [vmem:[%s7 + $0x10] sm:$0xf]
  %v5129 = vld [vmem:[%s7 + $0x14] sm:$0xf]
  %v5130 = vld [vmem:[%s7 + $0x18] sm:$0xf]
  %v5131 = vld [vmem:[%s7 + $0x1c] sm:$0xf]
  %v5132 = vld [vmem:[%s7 + $0x20] sm:$0xf]
  %v5133 = vld [vmem:[%s7 + $0x24] sm:$0xf]
  %v5134 = vld [vmem:[%s7 + $0x28] sm:$0xf]
  %v5135 = vld [vmem:[%s7 + $0x2c] sm:$0xf]
  %v5136 = vld [vmem:[%s7 + $0x30] sm:$0xf]
  %v5137 = vld [vmem:[%s7 + $0x34] sm:$0xf]
  %v5138 = vld [vmem:[%s7 + $0x38] sm:$0xf]
  %v5139 = vld [vmem:[%s7 + $0x3c] sm:$0xf]
  %v5140 = vld [vmem:[%s7 + $0x40] sm:$0xf]
  %v5141 = vld [vmem:[%s7 + $0x44] sm:$0xf]
  %v5142 = vld [vmem:[%s7 + $0x48] sm:$0xf]
  %v5143 = vld [vmem:[%s7 + $0x4c] sm:$0xf]
  %v5144 = vld [vmem:[%s7 + $0x50] sm:$0xf]
  %v5145 = vld [vmem:[%s7 + $0x54] sm:$0xf]
  %v5146 = vld [vmem:[%s7 + $0x58] sm:$0xf]
  %v5147 = vld [vmem:[%s7 + $0x5c] sm:$0xf]
  %v5148 = vld [vmem:[%s7 + $0x60] sm:$0xf]
  %v5149 = vld [vmem:[%s7 + $0x64] sm:$0xf]
  %v5150 = vld [vmem:[%s7 + $0x68] sm:$0xf]
  %v5151 = vld [vmem:[%s7 + $0x6c] sm:$0xf]
  %v5152 = vld [vmem:[%s7 + $0x70] sm:$0xf]
  %v5153 = vld [vmem:[%s7 + $0x74] sm:$0xf]
  %v5154 = vld [vmem:[%s7 + $0x78] sm:$0xf]
  %v5155 = vld [vmem:[%s7 + $0x7c] sm:$0xf]
  %v5156 = vld [vmem:[%s8] sm:$0x1]
  %v5189 = vunpack.c.l.b16 %v5124
  %v5190 = vunpack.c.l.b16 %v5125
  %v5191 = vunpack.c.l.b16 %v5126
  %v5192 = vunpack.c.l.b16 %v5127
  %v5193 = vunpack.c.l.b16 %v5128
  %v5194 = vunpack.c.l.b16 %v5129
  %v5195 = vunpack.c.l.b16 %v5130
  %v5196 = vunpack.c.l.b16 %v5131
  %v5197 = vunpack.c.l.b16 %v5132
  %v5198 = vunpack.c.l.b16 %v5133
  %v5199 = vunpack.c.l.b16 %v5134
  %v5200 = vunpack.c.l.b16 %v5135
  %v5201 = vunpack.c.l.b16 %v5136
  %v5202 = vunpack.c.l.b16 %v5137
  %v5203 = vunpack.c.l.b16 %v5138
  %v5204 = vunpack.c.l.b16 %v5139
  %v5205 = vunpack.c.l.b16 %v5140
  %v5206 = vunpack.c.l.b16 %v5141
  %v5207 = vunpack.c.l.b16 %v5142
  %v5208 = vunpack.c.l.b16 %v5143
  %v5209 = vunpack.c.l.b16 %v5144
  %v5210 = vunpack.c.l.b16 %v5145
  %v5211 = vunpack.c.l.b16 %v5146
  %v5212 = vunpack.c.l.b16 %v5147
  %v5213 = vunpack.c.l.b16 %v5148
  %v5214 = vunpack.c.l.b16 %v5149
  %v5215 = vunpack.c.l.b16 %v5150
  %v5216 = vunpack.c.l.b16 %v5151
  %v5217 = vunpack.c.l.b16 %v5152
  %v5218 = vunpack.c.l.b16 %v5153
  %v5219 = vunpack.c.l.b16 %v5154
  %v5220 = vunpack.c.l.b16 %v5155
  %v5221 = vpack.c.b16 %v5190, %v5189
  %v5222 = vpack.c.b16 %v5192, %v5191
  %v5223 = vpack.c.b16 %v5194, %v5193
  %v5224 = vpack.c.b16 %v5196, %v5195
  %v5225 = vpack.c.b16 %v5198, %v5197
  %v5226 = vpack.c.b16 %v5200, %v5199
  %v5227 = vpack.c.b16 %v5202, %v5201
  %v5228 = vpack.c.b16 %v5204, %v5203
  %v5229 = vpack.c.b16 %v5206, %v5205
  %v5230 = vpack.c.b16 %v5208, %v5207
  %v5231 = vpack.c.b16 %v5210, %v5209
  %v5232 = vpack.c.b16 %v5212, %v5211
  %v5233 = vpack.c.b16 %v5214, %v5213
  %v5234 = vpack.c.b16 %v5216, %v5215
  %v5235 = vpack.c.b16 %v5218, %v5217
  %v5236 = vpack.c.b16 %v5220, %v5219
  %5253 = vmatprep.subr.bf16.mxu0 0
  %5254 = vmatpush1.bf16.msra.mxu0 %v5228
  %5255 = vmatprep.subr.bf16.mxu0 0
  %5256 = vmatpush1.bf16.msra.mxu0 %v5227
  %5257 = vmatprep.subr.bf16.mxu0 0
  %5258 = vmatpush1.bf16.msra.mxu0 %v5226
  %5259 = vmatprep.subr.bf16.mxu0 0
  %5260 = vmatpush1.bf16.msra.mxu0 %v5225
  %5261 = vmatprep.subr.bf16.mxu0 0
  %5262 = vmatpush1.bf16.msra.mxu0 %v5224
  %5263 = vmatprep.subr.bf16.mxu0 0
  %5264 = vmatpush1.bf16.msra.mxu0 %v5223
  %5265 = vmatprep.subr.bf16.mxu0 0
  %5266 = vmatpush1.bf16.msra.mxu0 %v5222
  %5267 = vmatprep.subr.bf16.mxu0 0
  %5268 = vmatpush1.bf16.msra.mxu0 %v5221
  %5269 = vmatprep.subr.bf16.mxu0 0
  %5270 = vmatpush2.bf16.msra.mxu0 %v5236
  %5271 = vmatprep.subr.bf16.mxu0 0
  %5272 = vmatpush2.bf16.msra.mxu0 %v5235
  %5273 = vmatprep.subr.bf16.mxu0 0
  %5274 = vmatpush2.bf16.msra.mxu0 %v5234
  %5275 = vmatprep.subr.bf16.mxu0 0
  %5276 = vmatpush2.bf16.msra.mxu0 %v5233
  %5277 = vmatprep.subr.bf16.mxu0 0
  %5278 = vmatpush2.bf16.msra.mxu0 %v5232
  %5279 = vmatprep.subr.bf16.mxu0 0
  %5280 = vmatpush2.bf16.msra.mxu0 %v5231
  %5281 = vmatprep.subr.bf16.mxu0 0
  %5282 = vmatpush2.bf16.msra.mxu0 %v5230
  %5283 = vmatprep.subr.bf16.mxu0 0
  %5284 = vmatpush2.bf16.msra.mxu0 %v5229
  %5285 = vmatprep.mubr.bf16.mxu0 %v5123
  %5286 = vmatmul.mubr.bf16.gmra.mxu0 %v5122
  %v5287 = vpop.f32.mrf.mxu0
  %v5288 = vadd.f32 %v5156, %v5287
  %v5289 = vpop.f32.mrf.mxu0
  %v5290 = vpop.f32.mrf.mxu0
  %v5291 = vpop.f32.mrf.mxu0
  %5292 = vdwg.mxu0
  %5293 = vst [vmem:[%s9] sm:$0x1] %v5288
  // Predicated region
  $region68: #{deep_q_net_forward.1} parent=0 // pred_check
    _
  $region69: #{deep_q_net_forward.1} parent=0 // pred_check_branch
    %5295 = sbr.rel (0) target = $region71
  $region70: #{deep_q_net_forward.1} parent=0 // pred_region
    _
  $region71: #{deep_q_net_forward.1} parent=0 // pred_fallthru
    _
  // Predicated region
  $region72: #{deep_q_net_forward.1} parent=0 // pred_check
    _
  $region73: #{deep_q_net_forward.1} parent=0 // pred_check_branch
    %5297 = sbr.rel (0) target = $region75
  $region74: #{deep_q_net_forward.1} parent=0 // pred_region
    _
  $region75: #{deep_q_net_forward.1} parent=0 // pred_fallthru
    _
  %5298 = vsyncmov [#allocation4]
  %s5299 = vpop.sfrf %5298
  %p5300 = scmp.eq.s32.totalorder %s5299, 0
  %p5301 = pneg %p5300
  %5303 = shalt.err (%p5301)

</llo_original>
